<compile_context>
chip_gen: v7x
topology: tpu7x:2x2x1
jax: 0.10.0
libtpu: 0.0.40
codegen_flags: <defaults>
</compile_context>

<pallas_src>
import functools

import jax
import jax.numpy as jnp
from jax import lax
from jax.experimental import pallas as pl
from jax.experimental.pallas import tpu as pltpu

BF16 = jnp.bfloat16
F32 = jnp.float32


# ----------------------------- activations ----------------------------------

def _hardswish(x):
    # x * relu6(x + 3) / 6 (matches yolov5 Hardswish / nn.Hardswish)
    return x * jnp.clip(x + 3.0, 0.0, 6.0) * (1.0 / 6.0)


def _mish_exact(x):
    # reference-only: x * tanh(softplus(x)) with stable softplus
    sp = jnp.maximum(x, 0.0) + jnp.log1p(jnp.exp(-jnp.abs(x)))
    return x * jnp.tanh(sp)


def _mish_fast(x):
    # mish(x) = x * tanh(softplus(x)) = x * (1 - 2 / ((1 + e^x)^2 + 1))
    # single exp + EUP approx reciprocal (+ one Newton step back to ~f32 accuracy).
    # exp input clamped: for x > 20, mish(x) == x to f32 precision anyway.
    e = jnp.exp(jnp.minimum(x, 20.0))
    npe = 1.0 + e
    d = npe * npe + 1.0
    r = pl.reciprocal(d, approx=True)
    r = r * (2.0 - d * r)                 # one Newton-Raphson refinement
    return x * (1.0 - 2.0 * r)


# ------------------------------- kernel --------------------------------------

def _conv3x3_im2col(t_hw, w9):
    """3x3 / stride-1 / pad-1 conv on (H, W, C) as ONE im2col MXU matmul.

    Pads along H only (row stride stays W -> sublane-aligned row slices),
    builds the two column-shifted copies once, lane-concats the 9 aligned
    row-slices into a (H*W, 9*C) bf16 slab and contracts against
    w9 (9*C, Cout) with f32 accumulation.
    """
    H, W, C = t_hw.shape
    zrow = jnp.zeros((1, W, C), F32)
    zcol = jnp.zeros((H + 2, 1, C), F32)
    xp = jnp.concatenate([zrow, t_hw, zrow], axis=0)            # (H+2, W, C)
    left = jnp.concatenate([zcol, xp[:, :W - 1, :]], axis=1)    # value(h,w) = x(h, w-1)
    right = jnp.concatenate([xp[:, 1:, :], zcol], axis=1)       # value(h,w) = x(h, w+1)
    shifted = (left, xp, right)                                 # kx = 0, 1, 2
    taps = []
    for ky in range(3):
        for kx in range(3):
            taps.append(shifted[kx][ky:ky + H].reshape(H * W, C).astype(BF16))
    x_col = jnp.concatenate(taps, axis=1)                       # (H*W, 9*C) bf16
    return jnp.dot(x_col, w9, preferred_element_type=F32)


def csp2_kernel(x_ref, w1_ref, b1_ref, wb1_ref, bb1_ref, wb2_ref, bb2_ref,
                w2_ref, b2_ref, bns_ref, bnt_ref, w3_ref, b3_ref, o_ref,
                *, n, shortcut):
    x = x_ref[0]                                  # (H, W, C1) f32 -- one image
    H, W, C1 = x.shape
    c_ = w1_ref.shape[1]
    c2 = w3_ref.shape[1]
    P = H * W

    # cv1: 1x1 conv (BN folded) + hardswish -- bf16 operands, f32 accumulation
    x1 = jnp.dot(x.reshape(P, C1).astype(BF16), w1_ref[...],
                 preferred_element_type=F32)
    x1 = _hardswish(x1 + b1_ref[...])             # (P, c_) f32

    # m: chain of n Bottleneck(c_, c_, e=1.0)
    y = x1
    for i in range(n):
        t = jnp.dot(y.astype(BF16), wb1_ref[i], preferred_element_type=F32)
        t = _hardswish(t + bb1_ref[i])                               # (P, c_)
        z = _conv3x3_im2col(t.reshape(H, W, c_), wb2_ref[i])         # (P, c_)
        z = _hardswish(z + bb2_ref[i])
        y = (y + z) if shortcut else z

    # standalone BN on the concat, split per branch:
    #   channels [0:c_]   -> scale/shift applied to y1 (hardswish in between, can't fold)
    #   channels [c_:2c_] -> folded into cv2's weights/bias
    y1m = _mish_fast(y * bns_ref[...] + bnt_ref[...])
    y2 = jnp.dot(x1.astype(BF16), w2_ref[...], preferred_element_type=F32)
    y2m = _mish_fast(y2 + b2_ref[...])

    # cv3 over the lane-concat (free, 128-aligned): one K = 2*c_ matmul + folded BN + hardswish
    cat = jnp.concatenate([y1m.astype(BF16), y2m.astype(BF16)], axis=1)
    out = jnp.dot(cat, w3_ref[...], preferred_element_type=F32)
    out = _hardswish(out + b3_ref[...])
    o_ref[0] = out.reshape(H, W, c2).astype(o_ref.dtype)


# ------------------------------ wrapper ---------------------------------------

def csp2_forward_nhwc(x_nhwc, p, n=1, shortcut=False):
    N, H, W, C1 = x_nhwc.shape
    c2 = p["w3"].shape[1]
    kernel = functools.partial(csp2_kernel, n=n, shortcut=shortcut)

    def const2(b): return (0, 0)
    def const3(b): return (0, 0, 0)

    return pl.pallas_call(
        kernel,
        out_shape=jax.ShapeDtypeStruct((N, H, W, c2), x_nhwc.dtype),
        grid=(N,),
        in_specs=[
            pl.BlockSpec((1, H, W, C1), lambda b: (b, 0, 0, 0)),
            pl.BlockSpec(p["w1"].shape, const2),
            pl.BlockSpec(p["b1"].shape, const2),
            pl.BlockSpec(p["wb1"].shape, const3),
            pl.BlockSpec(p["bb1"].shape, const3),
            pl.BlockSpec(p["wb2"].shape, const3),
            pl.BlockSpec(p["bb2"].shape, const3),
            pl.BlockSpec(p["w2"].shape, const2),
            pl.BlockSpec(p["b2"].shape, const2),
            pl.BlockSpec(p["bn_s"].shape, const2),
            pl.BlockSpec(p["bn_t"].shape, const2),
            pl.BlockSpec(p["w3"].shape, const2),
            pl.BlockSpec(p["b3"].shape, const2),
        ],
        out_specs=pl.BlockSpec((1, H, W, c2), lambda b: (b, 0, 0, 0)),
        compiler_params=pltpu.CompilerParams(
            dimension_semantics=("parallel",),        # batch images are independent
            vmem_limit_bytes=48 * 1024 * 1024),
    )(x_nhwc, p["w1"], p["b1"], p["wb1"], p["bb1"], p["wb2"], p["bb2"],
      p["w2"], p["b2"], p["bn_s"], p["bn_t"], p["w3"], p["b3"])


# --------------------------- parameter plumbing --------------------------------

def _fold_bn(w, gamma, beta, mean, var, eps=1e-5):
    # BN(conv(x)) == conv(x) * scale + shift; fold over the output-channel axis (last).
    scale = gamma / jnp.sqrt(var + eps)
    return w * scale, beta - mean * scale


def make_params(key, c1, c2, n=1, eps=1e-5):
    c_ = int(c2)
    keys = iter(jax.random.split(key, 8 + 6 * n))
    nk = lambda: next(keys)

    def bn(k, c):
        k1, k2, k3, k4 = jax.random.split(k, 4)
        gamma = 1.0 + 0.1 * jax.random.normal(k1, (c,), F32)
        beta = 0.1 * jax.random.normal(k2, (c,), F32)
        mean = 0.1 * jax.random.normal(k3, (c,), F32)
        var = jnp.abs(jax.random.normal(k4, (c,), F32)) + 0.5
        return gamma, beta, mean, var

    # cv1 (Conv + BN + hardswish)
    w1 = jax.random.normal(nk(), (c1, c_), F32) / jnp.sqrt(float(c1))
    w1f, b1f = _fold_bn(w1, *bn(nk(), c_), eps=eps)

    # Bottlenecks
    wb1_l, bb1_l, wb2_l, bb2_l = [], [], [], []
    for _ in range(n):
        wa = jax.random.normal(nk(), (c_, c_), F32) / jnp.sqrt(float(c_))
        waf, baf = _fold_bn(wa, *bn(nk(), c_), eps=eps)
        wb1_l.append(waf.astype(BF16))
        bb1_l.append(baf[None, :])
        wc = jax.random.normal(nk(), (3, 3, c_, c_), F32) / jnp.sqrt(9.0 * c_)
        wcf, bcf = _fold_bn(wc, *bn(nk(), c_), eps=eps)
        # (3,3,Cin,Cout) -> (9*Cin, Cout); row block k*c_:(k+1)*c_ is tap k = 3*ky + kx
        wb2_l.append(wcf.reshape(9 * c_, c_).astype(BF16))
        bb2_l.append(bcf[None, :])

    # cv2 (plain 1x1 conv) + second half of the standalone BN folded in
    w2 = jax.random.normal(nk(), (c_, c_), F32) / jnp.sqrt(float(c_))
    g, b, m, v = bn(nk(), 2 * c_)
    s = g / jnp.sqrt(v + eps)
    t = b - m * s
    s_a, t_a = s[:c_], t[:c_]        # first half -> applied to y1 in-kernel
    s_b, t_b = s[c_:], t[c_:]        # second half -> folded into cv2
    w2f = (w2 * s_b).astype(BF16)
    b2f = t_b

    # cv3 (Conv + BN + hardswish), kept whole: K = 2*c_ contraction in-kernel
    w3 = jax.random.normal(nk(), (2 * c_, c2), F32) / jnp.sqrt(2.0 * c_)
    w3f, b3f = _fold_bn(w3, *bn(nk(), c2), eps=eps)

    return {
        "w1": w1f.astype(BF16), "b1": b1f[None, :],
        "wb1": jnp.stack(wb1_l), "bb1": jnp.stack(bb1_l),
        "wb2": jnp.stack(wb2_l), "bb2": jnp.stack(bb2_l),
        "w2": w2f, "b2": b2f[None, :],
        "bn_s": s_a[None, :], "bn_t": t_a[None, :],
        "w3": w3f.astype(BF16), "b3": b3f[None, :],
    }


# --------------------------- pure-JAX reference --------------------------------

def csp2_reference_nhwc(x, p, n=1, shortcut=False):
    # bf16-matched reference (same operand rounding points, f32 accumulation),
    # exact Mish (numerically safe baseline).
    def mm(a, w):
        return jnp.einsum("nhwc,cd->nhwd", a.astype(BF16), w,
                          preferred_element_type=F32)

    c_ = p["w1"].shape[1]
    x1 = _hardswish(mm(x.astype(F32), p["w1"]) + p["b1"][0])
    y = x1
    for i in range(n):
        t = _hardswish(mm(y, p["wb1"][i]) + p["bb1"][i, 0])
        w33 = p["wb2"][i].reshape(3, 3, c_, c_)
        z = lax.conv_general_dilated(
            t.astype(BF16), w33, window_strides=(1, 1),
            padding=((1, 1), (1, 1)),
            dimension_numbers=("NHWC", "HWIO", "NHWC"),
            preferred_element_type=F32)
        z = _hardswish(z + p["bb2"][i, 0])
        y = (y + z) if shortcut else z

    y1m = _mish_exact(y * p["bn_s"][0] + p["bn_t"][0])
    y2m = _mish_exact(mm(x1, p["w2"]) + p["b2"][0])
    cat = jnp.concatenate([y1m, y2m], axis=-1)
    out = _hardswish(mm(cat, p["w3"]) + p["b3"][0])
    return out


# ---------------------------------- main ---------------------------------------

if __name__ == "__main__":
    key = jax.random.PRNGKey(0)
    kx, kp = jax.random.split(key)

    # BottleneckCSP2(c1=64, c2=128, n=1, shortcut=False): c_ = 128, concat = 256.
    # NHWC layout end-to-end (no NCHW<->NHWC transposes around the kernel).
    N, H, W, C1 = 2, 16, 16, 64
    C2 = 128
    n_blocks = 1
    shortcut = False

    x = jax.random.normal(kx, (N, H, W, C1), F32)
    params = make_params(kp, C1, C2, n=n_blocks)

    out = jax.block_until_ready(
        csp2_forward_nhwc(x, params, n=n_blocks, shortcut=shortcut))
    ref = jax.block_until_ready(
        csp2_reference_nhwc(x, params, n=n_blocks, shortcut=shortcut))

    assert out.shape == (N, H, W, C2), out.shape
    max_err = float(jnp.max(jnp.abs(out - ref)))
    assert jnp.allclose(out, ref, atol=1e-2, rtol=1e-2), max_err

    print("KERNEL_OK")
</pallas_src>

<mosaic_0001>
module attributes {stable_mosaic.version = 11 : i64} {
  func.func @csp2_kernel(%arg0: i32, %arg1: memref<1x16x16x64xf32, #tpu.memory_space<vmem>>, %arg2: memref<64x128xbf16, #tpu.memory_space<vmem>>, %arg3: memref<1x128xf32, #tpu.memory_space<vmem>>, %arg4: memref<1x128x128xbf16, #tpu.memory_space<vmem>>, %arg5: memref<1x1x128xf32, #tpu.memory_space<vmem>>, %arg6: memref<1x1152x128xbf16, #tpu.memory_space<vmem>>, %arg7: memref<1x1x128xf32, #tpu.memory_space<vmem>>, %arg8: memref<128x128xbf16, #tpu.memory_space<vmem>>, %arg9: memref<1x128xf32, #tpu.memory_space<vmem>>, %arg10: memref<1x128xf32, #tpu.memory_space<vmem>>, %arg11: memref<1x128xf32, #tpu.memory_space<vmem>>, %arg12: memref<256x128xbf16, #tpu.memory_space<vmem>>, %arg13: memref<1x128xf32, #tpu.memory_space<vmem>>, %arg14: memref<1x16x16x128xf32, #tpu.memory_space<vmem>>) attributes {dimension_semantics = [#tpu.dimension_semantics<parallel>], iteration_bounds = array<i64: 2>, scalar_prefetch = 0 : i64, scratch_operands = 0 : i64, tpu.core_type = #tpu.core_type<tc>, window_params = [{transform_indices = @transform_0, window_bounds = array<i64: 1, 16, 16, 64>}, {pipeline_mode = #tpu.pipeline_mode<synchronous>, transform_indices = @transform_1, window_bounds = array<i64: 64, 128>}, {pipeline_mode = #tpu.pipeline_mode<synchronous>, transform_indices = @transform_2, window_bounds = array<i64: 1, 128>}, {pipeline_mode = #tpu.pipeline_mode<synchronous>, transform_indices = @transform_3, window_bounds = array<i64: 1, 128, 128>}, {pipeline_mode = #tpu.pipeline_mode<synchronous>, transform_indices = @transform_4, window_bounds = array<i64: 1, 1, 128>}, {pipeline_mode = #tpu.pipeline_mode<synchronous>, transform_indices = @transform_5, window_bounds = array<i64: 1, 1152, 128>}, {pipeline_mode = #tpu.pipeline_mode<synchronous>, transform_indices = @transform_6, window_bounds = array<i64: 1, 1, 128>}, {pipeline_mode = #tpu.pipeline_mode<synchronous>, transform_indices = @transform_7, window_bounds = array<i64: 128, 128>}, {pipeline_mode = #tpu.pipeline_mode<synchronous>, transform_indices = @transform_8, window_bounds = array<i64: 1, 128>}, {pipeline_mode = #tpu.pipeline_mode<synchronous>, transform_indices = @transform_9, window_bounds = array<i64: 1, 128>}, {pipeline_mode = #tpu.pipeline_mode<synchronous>, transform_indices = @transform_10, window_bounds = array<i64: 1, 128>}, {pipeline_mode = #tpu.pipeline_mode<synchronous>, transform_indices = @transform_11, window_bounds = array<i64: 256, 128>}, {pipeline_mode = #tpu.pipeline_mode<synchronous>, transform_indices = @transform_12, window_bounds = array<i64: 1, 128>}, {transform_indices = @transform_13, window_bounds = array<i64: 1, 16, 16, 128>}]} {
    %c0 = arith.constant 0 : index
    %c0_0 = arith.constant 0 : index
    %c0_1 = arith.constant 0 : index
    %c0_2 = arith.constant 0 : index
    %0 = vector.load %arg1[%c0, %c0_0, %c0_1, %c0_2] : memref<1x16x16x64xf32, #tpu.memory_space<vmem>>, vector<1x16x16x64xf32>
    %1 = vector.shape_cast %0 : vector<1x16x16x64xf32> to vector<16x16x64xf32>
    %2 = vector.shape_cast %1 : vector<16x16x64xf32> to vector<256x64xf32>
    %3 = arith.truncf %2 : vector<256x64xf32> to vector<256x64xbf16>
    %c0_3 = arith.constant 0 : index
    %c0_4 = arith.constant 0 : index
    %4 = vector.load %arg2[%c0_3, %c0_4] : memref<64x128xbf16, #tpu.memory_space<vmem>>, vector<64x128xbf16>
    %cst = arith.constant dense<0.000000e+00> : vector<256x128xf32>
    %5 = tpu.matmul %3, %4, %cst {dimension_numbers = #tpu.dot_dimension_numbers<[1], [0], [0], [1], [0, 0, 1, 1], [], []>} : vector<256x64xbf16>, vector<64x128xbf16>, vector<256x128xf32> -> vector<256x128xf32>
    %c0_5 = arith.constant 0 : index
    %c0_6 = arith.constant 0 : index
    %6 = vector.load %arg3[%c0_5, %c0_6] : memref<1x128xf32, #tpu.memory_space<vmem>>, vector<1x128xf32>
    %7 = vector.broadcast %6 : vector<1x128xf32> to vector<256x128xf32>
    %8 = arith.addf %5, %7 : vector<256x128xf32>
    %cst_7 = arith.constant 3.000000e+00 : f32
    %9 = vector.broadcast %cst_7 : f32 to vector<256x128xf32>
    %10 = arith.addf %8, %9 : vector<256x128xf32>
    %cst_8 = arith.constant 0.000000e+00 : f32
    %cst_9 = arith.constant 6.000000e+00 : f32
    %11 = vector.broadcast %cst_8 : f32 to vector<256x128xf32>
    %12 = arith.maximumf %11, %10 : vector<256x128xf32>
    %13 = vector.broadcast %cst_9 : f32 to vector<256x128xf32>
    %14 = arith.minimumf %13, %12 : vector<256x128xf32>
    %15 = arith.mulf %8, %14 : vector<256x128xf32>
    %cst_10 = arith.constant 0.166666672 : f32
    %16 = vector.broadcast %cst_10 : f32 to vector<256x128xf32>
    %17 = arith.mulf %15, %16 : vector<256x128xf32>
    %18 = arith.truncf %17 : vector<256x128xf32> to vector<256x128xbf16>
    %c0_11 = arith.constant 0 : index
    %c0_12 = arith.constant 0 : index
    %c0_13 = arith.constant 0 : index
    %19 = vector.load %arg4[%c0_11, %c0_12, %c0_13] : memref<1x128x128xbf16, #tpu.memory_space<vmem>>, vector<1x128x128xbf16>
    %20 = vector.shape_cast %19 : vector<1x128x128xbf16> to vector<128x128xbf16>
    %cst_14 = arith.constant dense<0.000000e+00> : vector<256x128xf32>
    %21 = tpu.matmul %18, %20, %cst_14 {dimension_numbers = #tpu.dot_dimension_numbers<[1], [0], [0], [1], [0, 0, 1, 1], [], []>} : vector<256x128xbf16>, vector<128x128xbf16>, vector<256x128xf32> -> vector<256x128xf32>
    %c0_15 = arith.constant 0 : index
    %c0_16 = arith.constant 0 : index
    %c0_17 = arith.constant 0 : index
    %22 = vector.load %arg5[%c0_15, %c0_16, %c0_17] : memref<1x1x128xf32, #tpu.memory_space<vmem>>, vector<1x1x128xf32>
    %23 = vector.shape_cast %22 : vector<1x1x128xf32> to vector<1x128xf32>
    %24 = vector.broadcast %23 : vector<1x128xf32> to vector<256x128xf32>
    %25 = arith.addf %21, %24 : vector<256x128xf32>
    %cst_18 = arith.constant 3.000000e+00 : f32
    %26 = vector.broadcast %cst_18 : f32 to vector<256x128xf32>
    %27 = arith.addf %25, %26 : vector<256x128xf32>
    %cst_19 = arith.constant 0.000000e+00 : f32
    %cst_20 = arith.constant 6.000000e+00 : f32
    %28 = vector.broadcast %cst_19 : f32 to vector<256x128xf32>
    %29 = arith.maximumf %28, %27 : vector<256x128xf32>
    %30 = vector.broadcast %cst_20 : f32 to vector<256x128xf32>
    %31 = arith.minimumf %30, %29 : vector<256x128xf32>
    %32 = arith.mulf %25, %31 : vector<256x128xf32>
    %cst_21 = arith.constant 0.166666672 : f32
    %33 = vector.broadcast %cst_21 : f32 to vector<256x128xf32>
    %34 = arith.mulf %32, %33 : vector<256x128xf32>
    %35 = vector.shape_cast %34 : vector<256x128xf32> to vector<16x16x128xf32>
    %c0_22 = arith.constant 0 : index
    %c0_23 = arith.constant 0 : index
    %c0_24 = arith.constant 0 : index
    %36 = vector.load %arg6[%c0_22, %c0_23, %c0_24] : memref<1x1152x128xbf16, #tpu.memory_space<vmem>>, vector<1x1152x128xbf16>
    %37 = vector.shape_cast %36 : vector<1x1152x128xbf16> to vector<1152x128xbf16>
    %cst_25 = arith.constant 0.000000e+00 : f32
    %38 = vector.broadcast %cst_25 : f32 to vector<1x16x128xf32>
    %cst_26 = arith.constant 0.000000e+00 : f32
    %39 = vector.broadcast %cst_26 : f32 to vector<18x1x128xf32>
    %40 = tpu.concatenate %38, %35, %38 in 0 : vector<1x16x128xf32>, vector<16x16x128xf32>, vector<1x16x128xf32> -> vector<18x16x128xf32>
    %41 = vector.extract_strided_slice %40 {offsets = [0, 0, 0], sizes = [18, 15, 128], strides = [1, 1, 1]} : vector<18x16x128xf32> to vector<18x15x128xf32>
    %42 = tpu.concatenate %39, %41 in 1 : vector<18x1x128xf32>, vector<18x15x128xf32> -> vector<18x16x128xf32>
    %43 = vector.extract_strided_slice %40 {offsets = [0, 1, 0], sizes = [18, 15, 128], strides = [1, 1, 1]} : vector<18x16x128xf32> to vector<18x15x128xf32>
    %44 = tpu.concatenate %43, %39 in 1 : vector<18x15x128xf32>, vector<18x1x128xf32> -> vector<18x16x128xf32>
    %45 = vector.extract_strided_slice %42 {offsets = [0, 0, 0], sizes = [16, 16, 128], strides = [1, 1, 1]} : vector<18x16x128xf32> to vector<16x16x128xf32>
    %46 = vector.shape_cast %45 : vector<16x16x128xf32> to vector<256x128xf32>
    %47 = arith.truncf %46 : vector<256x128xf32> to vector<256x128xbf16>
    %48 = vector.extract_strided_slice %40 {offsets = [0, 0, 0], sizes = [16, 16, 128], strides = [1, 1, 1]} : vector<18x16x128xf32> to vector<16x16x128xf32>
    %49 = vector.shape_cast %48 : vector<16x16x128xf32> to vector<256x128xf32>
    %50 = arith.truncf %49 : vector<256x128xf32> to vector<256x128xbf16>
    %51 = vector.extract_strided_slice %44 {offsets = [0, 0, 0], sizes = [16, 16, 128], strides = [1, 1, 1]} : vector<18x16x128xf32> to vector<16x16x128xf32>
    %52 = vector.shape_cast %51 : vector<16x16x128xf32> to vector<256x128xf32>
    %53 = arith.truncf %52 : vector<256x128xf32> to vector<256x128xbf16>
    %54 = vector.extract_strided_slice %42 {offsets = [1, 0, 0], sizes = [16, 16, 128], strides = [1, 1, 1]} : vector<18x16x128xf32> to vector<16x16x128xf32>
    %55 = vector.shape_cast %54 : vector<16x16x128xf32> to vector<256x128xf32>
    %56 = arith.truncf %55 : vector<256x128xf32> to vector<256x128xbf16>
    %57 = vector.extract_strided_slice %40 {offsets = [1, 0, 0], sizes = [16, 16, 128], strides = [1, 1, 1]} : vector<18x16x128xf32> to vector<16x16x128xf32>
    %58 = vector.shape_cast %57 : vector<16x16x128xf32> to vector<256x128xf32>
    %59 = arith.truncf %58 : vector<256x128xf32> to vector<256x128xbf16>
    %60 = vector.extract_strided_slice %44 {offsets = [1, 0, 0], sizes = [16, 16, 128], strides = [1, 1, 1]} : vector<18x16x128xf32> to vector<16x16x128xf32>
    %61 = vector.shape_cast %60 : vector<16x16x128xf32> to vector<256x128xf32>
    %62 = arith.truncf %61 : vector<256x128xf32> to vector<256x128xbf16>
    %63 = vector.extract_strided_slice %42 {offsets = [2, 0, 0], sizes = [16, 16, 128], strides = [1, 1, 1]} : vector<18x16x128xf32> to vector<16x16x128xf32>
    %64 = vector.shape_cast %63 : vector<16x16x128xf32> to vector<256x128xf32>
    %65 = arith.truncf %64 : vector<256x128xf32> to vector<256x128xbf16>
    %66 = vector.extract_strided_slice %40 {offsets = [2, 0, 0], sizes = [16, 16, 128], strides = [1, 1, 1]} : vector<18x16x128xf32> to vector<16x16x128xf32>
    %67 = vector.shape_cast %66 : vector<16x16x128xf32> to vector<256x128xf32>
    %68 = arith.truncf %67 : vector<256x128xf32> to vector<256x128xbf16>
    %69 = vector.extract_strided_slice %44 {offsets = [2, 0, 0], sizes = [16, 16, 128], strides = [1, 1, 1]} : vector<18x16x128xf32> to vector<16x16x128xf32>
    %70 = vector.shape_cast %69 : vector<16x16x128xf32> to vector<256x128xf32>
    %71 = arith.truncf %70 : vector<256x128xf32> to vector<256x128xbf16>
    %72 = tpu.concatenate %47, %50, %53, %56, %59, %62, %65, %68, %71 in 1 : vector<256x128xbf16>, vector<256x128xbf16>, vector<256x128xbf16>, vector<256x128xbf16>, vector<256x128xbf16>, vector<256x128xbf16>, vector<256x128xbf16>, vector<256x128xbf16>, vector<256x128xbf16> -> vector<256x1152xbf16>
    %cst_27 = arith.constant dense<0.000000e+00> : vector<256x128xf32>
    %73 = tpu.matmul %72, %37, %cst_27 {dimension_numbers = #tpu.dot_dimension_numbers<[1], [0], [0], [1], [0, 0, 1, 1], [], []>} : vector<256x1152xbf16>, vector<1152x128xbf16>, vector<256x128xf32> -> vector<256x128xf32>
    %c0_28 = arith.constant 0 : index
    %c0_29 = arith.constant 0 : index
    %c0_30 = arith.constant 0 : index
    %74 = vector.load %arg7[%c0_28, %c0_29, %c0_30] : memref<1x1x128xf32, #tpu.memory_space<vmem>>, vector<1x1x128xf32>
    %75 = vector.shape_cast %74 : vector<1x1x128xf32> to vector<1x128xf32>
    %76 = vector.broadcast %75 : vector<1x128xf32> to vector<256x128xf32>
    %77 = arith.addf %73, %76 : vector<256x128xf32>
    %cst_31 = arith.constant 3.000000e+00 : f32
    %78 = vector.broadcast %cst_31 : f32 to vector<256x128xf32>
    %79 = arith.addf %77, %78 : vector<256x128xf32>
    %cst_32 = arith.constant 0.000000e+00 : f32
    %cst_33 = arith.constant 6.000000e+00 : f32
    %80 = vector.broadcast %cst_32 : f32 to vector<256x128xf32>
    %81 = arith.maximumf %80, %79 : vector<256x128xf32>
    %82 = vector.broadcast %cst_33 : f32 to vector<256x128xf32>
    %83 = arith.minimumf %82, %81 : vector<256x128xf32>
    %84 = arith.mulf %77, %83 : vector<256x128xf32>
    %cst_34 = arith.constant 0.166666672 : f32
    %85 = vector.broadcast %cst_34 : f32 to vector<256x128xf32>
    %86 = arith.mulf %84, %85 : vector<256x128xf32>
    %c0_35 = arith.constant 0 : index
    %c0_36 = arith.constant 0 : index
    %87 = vector.load %arg10[%c0_35, %c0_36] : memref<1x128xf32, #tpu.memory_space<vmem>>, vector<1x128xf32>
    %88 = vector.broadcast %87 : vector<1x128xf32> to vector<256x128xf32>
    %89 = arith.mulf %86, %88 : vector<256x128xf32>
    %c0_37 = arith.constant 0 : index
    %c0_38 = arith.constant 0 : index
    %90 = vector.load %arg11[%c0_37, %c0_38] : memref<1x128xf32, #tpu.memory_space<vmem>>, vector<1x128xf32>
    %91 = vector.broadcast %90 : vector<1x128xf32> to vector<256x128xf32>
    %92 = arith.addf %89, %91 : vector<256x128xf32>
    %cst_39 = arith.constant 2.000000e+01 : f32
    %93 = vector.broadcast %cst_39 : f32 to vector<256x128xf32>
    %94 = arith.minimumf %92, %93 : vector<256x128xf32>
    %95 = math.exp %94 : vector<256x128xf32>
    %cst_40 = arith.constant 1.000000e+00 : f32
    %96 = vector.broadcast %cst_40 : f32 to vector<256x128xf32>
    %97 = arith.addf %96, %95 : vector<256x128xf32>
    %98 = arith.mulf %97, %97 : vector<256x128xf32>
    %cst_41 = arith.constant 1.000000e+00 : f32
    %99 = vector.broadcast %cst_41 : f32 to vector<256x128xf32>
    %100 = arith.addf %98, %99 : vector<256x128xf32>
    %101 = tpu.reciprocal %100 {approx = true} : vector<256x128xf32> -> vector<256x128xf32>
    %102 = arith.mulf %100, %101 : vector<256x128xf32>
    %cst_42 = arith.constant 2.000000e+00 : f32
    %103 = vector.broadcast %cst_42 : f32 to vector<256x128xf32>
    %104 = arith.subf %103, %102 : vector<256x128xf32>
    %105 = arith.mulf %101, %104 : vector<256x128xf32>
    %cst_43 = arith.constant 2.000000e+00 : f32
    %106 = vector.broadcast %cst_43 : f32 to vector<256x128xf32>
    %107 = arith.mulf %106, %105 : vector<256x128xf32>
    %cst_44 = arith.constant 1.000000e+00 : f32
    %108 = vector.broadcast %cst_44 : f32 to vector<256x128xf32>
    %109 = arith.subf %108, %107 : vector<256x128xf32>
    %110 = arith.mulf %92, %109 : vector<256x128xf32>
    %111 = arith.truncf %17 : vector<256x128xf32> to vector<256x128xbf16>
    %c0_45 = arith.constant 0 : index
    %c0_46 = arith.constant 0 : index
    %112 = vector.load %arg8[%c0_45, %c0_46] : memref<128x128xbf16, #tpu.memory_space<vmem>>, vector<128x128xbf16>
    %cst_47 = arith.constant dense<0.000000e+00> : vector<256x128xf32>
    %113 = tpu.matmul %111, %112, %cst_47 {dimension_numbers = #tpu.dot_dimension_numbers<[1], [0], [0], [1], [0, 0, 1, 1], [], []>} : vector<256x128xbf16>, vector<128x128xbf16>, vector<256x128xf32> -> vector<256x128xf32>
    %c0_48 = arith.constant 0 : index
    %c0_49 = arith.constant 0 : index
    %114 = vector.load %arg9[%c0_48, %c0_49] : memref<1x128xf32, #tpu.memory_space<vmem>>, vector<1x128xf32>
    %115 = vector.broadcast %114 : vector<1x128xf32> to vector<256x128xf32>
    %116 = arith.addf %113, %115 : vector<256x128xf32>
    %cst_50 = arith.constant 2.000000e+01 : f32
    %117 = vector.broadcast %cst_50 : f32 to vector<256x128xf32>
    %118 = arith.minimumf %116, %117 : vector<256x128xf32>
    %119 = math.exp %118 : vector<256x128xf32>
    %cst_51 = arith.constant 1.000000e+00 : f32
    %120 = vector.broadcast %cst_51 : f32 to vector<256x128xf32>
    %121 = arith.addf %120, %119 : vector<256x128xf32>
    %122 = arith.mulf %121, %121 : vector<256x128xf32>
    %cst_52 = arith.constant 1.000000e+00 : f32
    %123 = vector.broadcast %cst_52 : f32 to vector<256x128xf32>
    %124 = arith.addf %122, %123 : vector<256x128xf32>
    %125 = tpu.reciprocal %124 {approx = true} : vector<256x128xf32> -> vector<256x128xf32>
    %126 = arith.mulf %124, %125 : vector<256x128xf32>
    %cst_53 = arith.constant 2.000000e+00 : f32
    %127 = vector.broadcast %cst_53 : f32 to vector<256x128xf32>
    %128 = arith.subf %127, %126 : vector<256x128xf32>
    %129 = arith.mulf %125, %128 : vector<256x128xf32>
    %cst_54 = arith.constant 2.000000e+00 : f32
    %130 = vector.broadcast %cst_54 : f32 to vector<256x128xf32>
    %131 = arith.mulf %130, %129 : vector<256x128xf32>
    %cst_55 = arith.constant 1.000000e+00 : f32
    %132 = vector.broadcast %cst_55 : f32 to vector<256x128xf32>
    %133 = arith.subf %132, %131 : vector<256x128xf32>
    %134 = arith.mulf %116, %133 : vector<256x128xf32>
    %135 = arith.truncf %110 : vector<256x128xf32> to vector<256x128xbf16>
    %136 = arith.truncf %134 : vector<256x128xf32> to vector<256x128xbf16>
    %137 = tpu.concatenate %135, %136 in 1 : vector<256x128xbf16>, vector<256x128xbf16> -> vector<256x256xbf16>
    %c0_56 = arith.constant 0 : index
    %c0_57 = arith.constant 0 : index
    %138 = vector.load %arg12[%c0_56, %c0_57] : memref<256x128xbf16, #tpu.memory_space<vmem>>, vector<256x128xbf16>
    %cst_58 = arith.constant dense<0.000000e+00> : vector<256x128xf32>
    %139 = tpu.matmul %137, %138, %cst_58 {dimension_numbers = #tpu.dot_dimension_numbers<[1], [0], [0], [1], [0, 0, 1, 1], [], []>} : vector<256x256xbf16>, vector<256x128xbf16>, vector<256x128xf32> -> vector<256x128xf32>
    %c0_59 = arith.constant 0 : index
    %c0_60 = arith.constant 0 : index
    %140 = vector.load %arg13[%c0_59, %c0_60] : memref<1x128xf32, #tpu.memory_space<vmem>>, vector<1x128xf32>
    %141 = vector.broadcast %140 : vector<1x128xf32> to vector<256x128xf32>
    %142 = arith.addf %139, %141 : vector<256x128xf32>
    %cst_61 = arith.constant 3.000000e+00 : f32
    %143 = vector.broadcast %cst_61 : f32 to vector<256x128xf32>
    %144 = arith.addf %142, %143 : vector<256x128xf32>
    %cst_62 = arith.constant 0.000000e+00 : f32
    %cst_63 = arith.constant 6.000000e+00 : f32
    %145 = vector.broadcast %cst_62 : f32 to vector<256x128xf32>
    %146 = arith.maximumf %145, %144 : vector<256x128xf32>
    %147 = vector.broadcast %cst_63 : f32 to vector<256x128xf32>
    %148 = arith.minimumf %147, %146 : vector<256x128xf32>
    %149 = arith.mulf %142, %148 : vector<256x128xf32>
    %cst_64 = arith.constant 0.166666672 : f32
    %150 = vector.broadcast %cst_64 : f32 to vector<256x128xf32>
    %151 = arith.mulf %149, %150 : vector<256x128xf32>
    %152 = vector.shape_cast %151 : vector<256x128xf32> to vector<16x16x128xf32>
    %c0_65 = arith.constant 0 : index
    %c0_66 = arith.constant 0 : index
    %c0_67 = arith.constant 0 : index
    %c0_68 = arith.constant 0 : index
    %153 = vector.load %arg14[%c0_65, %c0_66, %c0_67, %c0_68] : memref<1x16x16x128xf32, #tpu.memory_space<vmem>>, vector<1x16x16x128xf32>
    %154 = vector.shape_cast %153 : vector<1x16x16x128xf32> to vector<16x16x128xf32>
    %155 = vector.shape_cast %152 : vector<16x16x128xf32> to vector<1x16x16x128xf32>
    tpu.vector_store %arg14[%c0_65, %c0_66, %c0_67, %c0_68], %155 {strides = array<i32>} : memref<1x16x16x128xf32, #tpu.memory_space<vmem>>, vector<1x16x16x128xf32>,
    return
  }
  func.func @transform_0(%arg0: i32) -> (i32, i32, i32, i32) {
    %c0_i32 = arith.constant 0 : i32
    %c0_i32_0 = arith.constant 0 : i32
    %c0_i32_1 = arith.constant 0 : i32
    %c0_i32_2 = arith.constant 0 : i32
    return %arg0, %c0_i32, %c0_i32_0, %c0_i32_1 : i32, i32, i32, i32
  }
  func.func @transform_1(%arg0: i32) -> (i32, i32) {
    %c0_i32 = arith.constant 0 : i32
    %c0_i32_0 = arith.constant 0 : i32
    %c0_i32_1 = arith.constant 0 : i32
    return %c0_i32, %c0_i32_0 : i32, i32
  }
  func.func @transform_2(%arg0: i32) -> (i32, i32) {
    %c0_i32 = arith.constant 0 : i32
    %c0_i32_0 = arith.constant 0 : i32
    %c0_i32_1 = arith.constant 0 : i32
    return %c0_i32, %c0_i32_0 : i32, i32
  }
  func.func @transform_3(%arg0: i32) -> (i32, i32, i32) {
    %c0_i32 = arith.constant 0 : i32
    %c0_i32_0 = arith.constant 0 : i32
    %c0_i32_1 = arith.constant 0 : i32
    %c0_i32_2 = arith.constant 0 : i32
    return %c0_i32, %c0_i32_0, %c0_i32_1 : i32, i32, i32
  }
  func.func @transform_4(%arg0: i32) -> (i32, i32, i32) {
    %c0_i32 = arith.constant 0 : i32
    %c0_i32_0 = arith.constant 0 : i32
    %c0_i32_1 = arith.constant 0 : i32
    %c0_i32_2 = arith.constant 0 : i32
    return %c0_i32, %c0_i32_0, %c0_i32_1 : i32, i32, i32
  }
  func.func @transform_5(%arg0: i32) -> (i32, i32, i32) {
    %c0_i32 = arith.constant 0 : i32
    %c0_i32_0 = arith.constant 0 : i32
    %c0_i32_1 = arith.constant 0 : i32
    %c0_i32_2 = arith.constant 0 : i32
    return %c0_i32, %c0_i32_0, %c0_i32_1 : i32, i32, i32
  }
  func.func @transform_6(%arg0: i32) -> (i32, i32, i32) {
    %c0_i32 = arith.constant 0 : i32
    %c0_i32_0 = arith.constant 0 : i32
    %c0_i32_1 = arith.constant 0 : i32
    %c0_i32_2 = arith.constant 0 : i32
    return %c0_i32, %c0_i32_0, %c0_i32_1 : i32, i32, i32
  }
  func.func @transform_7(%arg0: i32) -> (i32, i32) {
    %c0_i32 = arith.constant 0 : i32
    %c0_i32_0 = arith.constant 0 : i32
    %c0_i32_1 = arith.constant 0 : i32
    return %c0_i32, %c0_i32_0 : i32, i32
  }
  func.func @transform_8(%arg0: i32) -> (i32, i32) {
    %c0_i32 = arith.constant 0 : i32
    %c0_i32_0 = arith.constant 0 : i32
    %c0_i32_1 = arith.constant 0 : i32
    return %c0_i32, %c0_i32_0 : i32, i32
  }
  func.func @transform_9(%arg0: i32) -> (i32, i32) {
    %c0_i32 = arith.constant 0 : i32
    %c0_i32_0 = arith.constant 0 : i32
    %c0_i32_1 = arith.constant 0 : i32
    return %c0_i32, %c0_i32_0 : i32, i32
  }
  func.func @transform_10(%arg0: i32) -> (i32, i32) {
    %c0_i32 = arith.constant 0 : i32
    %c0_i32_0 = arith.constant 0 : i32
    %c0_i32_1 = arith.constant 0 : i32
    return %c0_i32, %c0_i32_0 : i32, i32
  }
  func.func @transform_11(%arg0: i32) -> (i32, i32) {
    %c0_i32 = arith.constant 0 : i32
    %c0_i32_0 = arith.constant 0 : i32
    %c0_i32_1 = arith.constant 0 : i32
    return %c0_i32, %c0_i32_0 : i32, i32
  }
  func.func @transform_12(%arg0: i32) -> (i32, i32) {
    %c0_i32 = arith.constant 0 : i32
    %c0_i32_0 = arith.constant 0 : i32
    %c0_i32_1 = arith.constant 0 : i32
    return %c0_i32, %c0_i32_0 : i32, i32
  }
  func.func @transform_13(%arg0: i32) -> (i32, i32, i32, i32) {
    %c0_i32 = arith.constant 0 : i32
    %c0_i32_0 = arith.constant 0 : i32
    %c0_i32_1 = arith.constant 0 : i32
    %c0_i32_2 = arith.constant 0 : i32
    return %arg0, %c0_i32, %c0_i32_0, %c0_i32_1 : i32, i32, i32, i32
  }
}

</mosaic_0001>

<llo_original>
// kernel: tpu_custom_call.1
$region0: #{tpu_custom_call.1}
  #allocation0 [shape = 'u32[]', space=smem, size = 0x4, offset = 0x4, fixed_abs, tag = 'smem constant byte address 0x4 - core index']
  #allocation1 [shape = 'u32[144,128]{1,0:T(1,128)}', space=vmem, size = 0x12000, scoped, tag = 'internal scratch']
  %s0 = inlined_call_operand.hbm [shape: f32[2,16,16,64], index: 0, kind: input, shape index: {}]
  %s1 = inlined_call_operand.hbm [shape: bf16[64,128], index: 1, kind: input, shape index: {}]
  %s2 = inlined_call_operand.vmem [shape: f32[1,128], index: 2, kind: input, shape index: {}]
  %s3 = inlined_call_operand.hbm [shape: bf16[1,128,128], index: 3, kind: input, shape index: {}]
  %s4 = inlined_call_operand.vmem [shape: f32[1,1,128], index: 4, kind: input, shape index: {}]
  %s5 = inlined_call_operand.hbm [shape: bf16[1,1152,128], index: 5, kind: input, shape index: {}]
  %s6 = inlined_call_operand.vmem [shape: f32[1,1,128], index: 6, kind: input, shape index: {}]
  %s7 = inlined_call_operand.hbm [shape: bf16[128,128], index: 7, kind: input, shape index: {}]
  %s8 = inlined_call_operand.vmem [shape: f32[1,128], index: 8, kind: input, shape index: {}]
  %s9 = inlined_call_operand.vmem [shape: f32[1,128], index: 9, kind: input, shape index: {}]
  %s10 = inlined_call_operand.vmem [shape: f32[1,128], index: 10, kind: input, shape index: {}]
  %s11 = inlined_call_operand.hbm [shape: bf16[256,128], index: 11, kind: input, shape index: {}]
  %s12 = inlined_call_operand.vmem [shape: f32[1,128], index: 12, kind: input, shape index: {}]
  %s13 = inlined_call_operand.hbm [shape: f32[2,16,16,128], index: 13, kind: output, shape index: {}]
  %s14 = sld [smem:[#allocation0]]
  $region109: #{tpu_custom_call.1} parent=0
    _
  %s16 = ssub.s32 1, %s14
  %s17 = scalar_select 0, %s16, %s14
  $region1: #{tpu_custom_call.1} parent=0
    #allocation2 [shape = 'u8[262144]{0}', space=vmem, size = 0x40000, scoped, tag = 'input window, operand 0']
    #allocation3 [shape = 's32[2]{0}', space=sflag, size = 0x8, scoped, tag = 'scoped memory for tpu_custom_call.1']
    #allocation4 [shape = 's32[2]{0}', space=sflag, size = 0x8, scoped, tag = 'scoped memory for tpu_custom_call.1']
    #allocation5 [shape = 'u8[16384]{0}', space=vmem, size = 0x4000, scoped, tag = 'input window, operand 1, single buffered']
    #allocation6 [shape = 's32[1]{0}', space=sflag, size = 0x4, scoped, tag = 'scoped memory for tpu_custom_call.1']
    #allocation7 [shape = 'u8[32768]{0}', space=vmem, size = 0x8000, scoped, tag = 'input window, operand 3, single buffered']
    #allocation8 [shape = 'u8[294912]{0}', space=vmem, size = 0x48000, scoped, tag = 'input window, operand 5, single buffered']
    #allocation9 [shape = 's32[1]{0}', space=sflag, size = 0x4, scoped, tag = 'scoped memory for tpu_custom_call.1']
    #allocation10 [shape = 'u8[32768]{0}', space=vmem, size = 0x8000, scoped, tag = 'input window, operand 7, single buffered']
    #allocation11 [shape = 'u8[65536]{0}', space=vmem, size = 0x10000, scoped, tag = 'input window, operand 11, single buffered']
    #allocation12 [shape = 's32[1]{0}', space=sflag, size = 0x4, scoped, tag = 'scoped memory for tpu_custom_call.1']
    #allocation13 [shape = 'u8[262144]{0}', space=vmem, size = 0x40000, scoped, tag = 'output window, operand 0']
    %18 = vsyncpa [#allocation3], 0
    %s19 = scalar_lea.sflag [#allocation3], 1
    %20 = vsyncpa %s19, 0
    %21 = vsyncpa [#allocation6], 0
    %22 = vsyncpa [#allocation9], 0
    %23 = vsyncpa [#allocation12], 0
    %24 = vsyncpa [#allocation4], 0
    %s25 = scalar_lea.sflag [#allocation4], 1
    %26 = vsyncpa %s25, 0
    loop: start=0, step=1, limit=4
    $region2: #{tpu_custom_call.1} parent=1 // loop_pre_header
      _
    $region3: #{tpu_custom_call.1} parent=1 // loop_header
      %s28 = sphi 0, %s32
      %p29 = scmp.ge.s32.totalorder %s28, 4
      %s38 = sphi 0, %s40
      %s41 = sphi 0, %s38
      %s42 = sphi 0, %s41
      %s58 = sphi 0, %s42
      %s62 = sphi 0, %s62
      %s64 = sphi 0, %s62
      %s65 = sphi 0, %s64
      %s79 = sphi 0, %s65
      %s83 = sphi 0, %s83
      %s85 = sphi 0, %s83
      %s86 = sphi 0, %s85
      %s100 = sphi 0, %s86
      %s104 = sphi 0, %s104
      %s106 = sphi 0, %s104
      %s107 = sphi 0, %s106
      %s121 = sphi 0, %s107
      %s125 = sphi 0, %s125
      %s127 = sphi 0, %s125
      %s128 = sphi 0, %s127
      %s142 = sphi 0, %s128
      %s146 = sphi 0, %s146
      %s148 = sphi 0, %s146
      %s149 = sphi 0, %s148
      %s163 = sphi 0, %s149
      %s167 = sphi 0, %s167
      %s169 = sphi 0, %s167
      %s170 = sphi 0, %s169
      %s184 = sphi 0, %s170
      %s188 = sphi 0, %s188
      %s190 = sphi 0, %s188
      %s191 = sphi 0, %s190
      %s205 = sphi 0, %s191
      %s209 = sphi 0, %s209
      %s211 = sphi 0, %s209
      %s212 = sphi 0, %s211
      %s226 = sphi 0, %s212
      %s230 = sphi 0, %s230
      %s232 = sphi 0, %s230
      %s233 = sphi 0, %s232
      %s247 = sphi 0, %s233
      %s251 = sphi 0, %s251
      %s253 = sphi 0, %s251
      %s254 = sphi 0, %s253
      %s268 = sphi 0, %s254
      %s272 = sphi 0, %s272
      %s274 = sphi 0, %s272
      %s275 = sphi 0, %s274
      %s289 = sphi 0, %s275
      %s293 = sphi 0, %s293
      %s295 = sphi 0, %s293
      %s296 = sphi 0, %s295
      %s310 = sphi 0, %s296
      %s316 = sphi 0, %s318
      %s319 = sphi 0, %s316
      %s320 = sphi 0, %s319
      %s336 = sphi 0, %s320
    $region4: #{tpu_custom_call.1} parent=1 // loop_header_branch
      %31 = sbr.rel (%p29) target = $region8
    $region5: #{tpu_custom_call.1} parent=1 // loop_body
      %s33 = ssub.s32 %s28, 1
      %s34 = ssub.s32 %s28, 2
      %s35 = sadd.s32 %s28, 1
      %s36 = ssub.s32 %s28, %s35
      %p37 = scmp.eq.s32.totalorder %s36, 0
      %s39 = sadd.s32 %s38, 1
      %s40 = scalar_select %p37, %s38, %s39
      %p43 = pneg %p37
      %p44 = scmp.eq.s32.totalorder %s28, 1
      %p45 = por %p43, %p44
      %p46 = scmp.ne.s32.totalorder %s38, %s41
      %p47 = scmp.eq.s32.totalorder %s28, 0
      %p48 = por %p46, %p47
      %p49 = scmp.ne.s32.totalorder %s38, %s41
      %p50 = scmp.eq.s32.totalorder %s33, 1
      %p51 = por %p49, %p50
      %p52 = scmp.ne.s32.totalorder %s41, %s42
      %p53 = scmp.eq.s32.totalorder %s33, 0
      %p54 = por %p52, %p53
      %p55 = scmp.ne.s32.totalorder %s41, %s42
      %p56 = scmp.eq.s32.totalorder %s34, 1
      %p57 = por %p55, %p56
      %p59 = scmp.ne.s32.totalorder %s42, %s58
      %p60 = scmp.eq.s32.totalorder %s34, 0
      %p61 = por %p59, %p60
      %s63 = sadd.s32 %s62, 1
      %p66 = scmp.eq.s32.totalorder %s28, 1
      %p67 = scmp.ne.s32.totalorder %s62, %s64
      %p68 = scmp.eq.s32.totalorder %s28, 0
      %p69 = por %p67, %p68
      %p70 = scmp.ne.s32.totalorder %s62, %s64
      %p71 = scmp.eq.s32.totalorder %s33, 1
      %p72 = por %p70, %p71
      %p73 = scmp.ne.s32.totalorder %s64, %s65
      %p74 = scmp.eq.s32.totalorder %s33, 0
      %p75 = por %p73, %p74
      %p76 = scmp.ne.s32.totalorder %s64, %s65
      %p77 = scmp.eq.s32.totalorder %s34, 1
      %p78 = por %p76, %p77
      %p80 = scmp.ne.s32.totalorder %s65, %s79
      %p81 = scmp.eq.s32.totalorder %s34, 0
      %p82 = por %p80, %p81
      %s84 = sadd.s32 %s83, 1
      %p87 = scmp.eq.s32.totalorder %s28, 1
      %p88 = scmp.ne.s32.totalorder %s83, %s85
      %p89 = scmp.eq.s32.totalorder %s28, 0
      %p90 = por %p88, %p89
      %p91 = scmp.ne.s32.totalorder %s83, %s85
      %p92 = scmp.eq.s32.totalorder %s33, 1
      %p93 = por %p91, %p92
      %p94 = scmp.ne.s32.totalorder %s85, %s86
      %p95 = scmp.eq.s32.totalorder %s33, 0
      %p96 = por %p94, %p95
      %p97 = scmp.ne.s32.totalorder %s85, %s86
      %p98 = scmp.eq.s32.totalorder %s34, 1
      %p99 = por %p97, %p98
      %p101 = scmp.ne.s32.totalorder %s86, %s100
      %p102 = scmp.eq.s32.totalorder %s34, 0
      %p103 = por %p101, %p102
      %s105 = sadd.s32 %s104, 1
      %p108 = scmp.eq.s32.totalorder %s28, 1
      %p109 = scmp.ne.s32.totalorder %s104, %s106
      %p110 = scmp.eq.s32.totalorder %s28, 0
      %p111 = por %p109, %p110
      %p112 = scmp.ne.s32.totalorder %s104, %s106
      %p113 = scmp.eq.s32.totalorder %s33, 1
      %p114 = por %p112, %p113
      %p115 = scmp.ne.s32.totalorder %s106, %s107
      %p116 = scmp.eq.s32.totalorder %s33, 0
      %p117 = por %p115, %p116
      %p118 = scmp.ne.s32.totalorder %s106, %s107
      %p119 = scmp.eq.s32.totalorder %s34, 1
      %p120 = por %p118, %p119
      %p122 = scmp.ne.s32.totalorder %s107, %s121
      %p123 = scmp.eq.s32.totalorder %s34, 0
      %p124 = por %p122, %p123
      %s126 = sadd.s32 %s125, 1
      %p129 = scmp.eq.s32.totalorder %s28, 1
      %p130 = scmp.ne.s32.totalorder %s125, %s127
      %p131 = scmp.eq.s32.totalorder %s28, 0
      %p132 = por %p130, %p131
      %p133 = scmp.ne.s32.totalorder %s125, %s127
      %p134 = scmp.eq.s32.totalorder %s33, 1
      %p135 = por %p133, %p134
      %p136 = scmp.ne.s32.totalorder %s127, %s128
      %p137 = scmp.eq.s32.totalorder %s33, 0
      %p138 = por %p136, %p137
      %p139 = scmp.ne.s32.totalorder %s127, %s128
      %p140 = scmp.eq.s32.totalorder %s34, 1
      %p141 = por %p139, %p140
      %p143 = scmp.ne.s32.totalorder %s128, %s142
      %p144 = scmp.eq.s32.totalorder %s34, 0
      %p145 = por %p143, %p144
      %s147 = sadd.s32 %s146, 1
      %p150 = scmp.eq.s32.totalorder %s28, 1
      %p151 = scmp.ne.s32.totalorder %s146, %s148
      %p152 = scmp.eq.s32.totalorder %s28, 0
      %p153 = por %p151, %p152
      %p154 = scmp.ne.s32.totalorder %s146, %s148
      %p155 = scmp.eq.s32.totalorder %s33, 1
      %p156 = por %p154, %p155
      %p157 = scmp.ne.s32.totalorder %s148, %s149
      %p158 = scmp.eq.s32.totalorder %s33, 0
      %p159 = por %p157, %p158
      %p160 = scmp.ne.s32.totalorder %s148, %s149
      %p161 = scmp.eq.s32.totalorder %s34, 1
      %p162 = por %p160, %p161
      %p164 = scmp.ne.s32.totalorder %s149, %s163
      %p165 = scmp.eq.s32.totalorder %s34, 0
      %p166 = por %p164, %p165
      %s168 = sadd.s32 %s167, 1
      %p171 = scmp.eq.s32.totalorder %s28, 1
      %p172 = scmp.ne.s32.totalorder %s167, %s169
      %p173 = scmp.eq.s32.totalorder %s28, 0
      %p174 = por %p172, %p173
      %p175 = scmp.ne.s32.totalorder %s167, %s169
      %p176 = scmp.eq.s32.totalorder %s33, 1
      %p177 = por %p175, %p176
      %p178 = scmp.ne.s32.totalorder %s169, %s170
      %p179 = scmp.eq.s32.totalorder %s33, 0
      %p180 = por %p178, %p179
      %p181 = scmp.ne.s32.totalorder %s169, %s170
      %p182 = scmp.eq.s32.totalorder %s34, 1
      %p183 = por %p181, %p182
      %p185 = scmp.ne.s32.totalorder %s170, %s184
      %p186 = scmp.eq.s32.totalorder %s34, 0
      %p187 = por %p185, %p186
      %s189 = sadd.s32 %s188, 1
      %p192 = scmp.eq.s32.totalorder %s28, 1
      %p193 = scmp.ne.s32.totalorder %s188, %s190
      %p194 = scmp.eq.s32.totalorder %s28, 0
      %p195 = por %p193, %p194
      %p196 = scmp.ne.s32.totalorder %s188, %s190
      %p197 = scmp.eq.s32.totalorder %s33, 1
      %p198 = por %p196, %p197
      %p199 = scmp.ne.s32.totalorder %s190, %s191
      %p200 = scmp.eq.s32.totalorder %s33, 0
      %p201 = por %p199, %p200
      %p202 = scmp.ne.s32.totalorder %s190, %s191
      %p203 = scmp.eq.s32.totalorder %s34, 1
      %p204 = por %p202, %p203
      %p206 = scmp.ne.s32.totalorder %s191, %s205
      %p207 = scmp.eq.s32.totalorder %s34, 0
      %p208 = por %p206, %p207
      %s210 = sadd.s32 %s209, 1
      %p213 = scmp.eq.s32.totalorder %s28, 1
      %p214 = scmp.ne.s32.totalorder %s209, %s211
      %p215 = scmp.eq.s32.totalorder %s28, 0
      %p216 = por %p214, %p215
      %p217 = scmp.ne.s32.totalorder %s209, %s211
      %p218 = scmp.eq.s32.totalorder %s33, 1
      %p219 = por %p217, %p218
      %p220 = scmp.ne.s32.totalorder %s211, %s212
      %p221 = scmp.eq.s32.totalorder %s33, 0
      %p222 = por %p220, %p221
      %p223 = scmp.ne.s32.totalorder %s211, %s212
      %p224 = scmp.eq.s32.totalorder %s34, 1
      %p225 = por %p223, %p224
      %p227 = scmp.ne.s32.totalorder %s212, %s226
      %p228 = scmp.eq.s32.totalorder %s34, 0
      %p229 = por %p227, %p228
      %s231 = sadd.s32 %s230, 1
      %p234 = scmp.eq.s32.totalorder %s28, 1
      %p235 = scmp.ne.s32.totalorder %s230, %s232
      %p236 = scmp.eq.s32.totalorder %s28, 0
      %p237 = por %p235, %p236
      %p238 = scmp.ne.s32.totalorder %s230, %s232
      %p239 = scmp.eq.s32.totalorder %s33, 1
      %p240 = por %p238, %p239
      %p241 = scmp.ne.s32.totalorder %s232, %s233
      %p242 = scmp.eq.s32.totalorder %s33, 0
      %p243 = por %p241, %p242
      %p244 = scmp.ne.s32.totalorder %s232, %s233
      %p245 = scmp.eq.s32.totalorder %s34, 1
      %p246 = por %p244, %p245
      %p248 = scmp.ne.s32.totalorder %s233, %s247
      %p249 = scmp.eq.s32.totalorder %s34, 0
      %p250 = por %p248, %p249
      %s252 = sadd.s32 %s251, 1
      %p255 = scmp.eq.s32.totalorder %s28, 1
      %p256 = scmp.ne.s32.totalorder %s251, %s253
      %p257 = scmp.eq.s32.totalorder %s28, 0
      %p258 = por %p256, %p257
      %p259 = scmp.ne.s32.totalorder %s251, %s253
      %p260 = scmp.eq.s32.totalorder %s33, 1
      %p261 = por %p259, %p260
      %p262 = scmp.ne.s32.totalorder %s253, %s254
      %p263 = scmp.eq.s32.totalorder %s33, 0
      %p264 = por %p262, %p263
      %p265 = scmp.ne.s32.totalorder %s253, %s254
      %p266 = scmp.eq.s32.totalorder %s34, 1
      %p267 = por %p265, %p266
      %p269 = scmp.ne.s32.totalorder %s254, %s268
      %p270 = scmp.eq.s32.totalorder %s34, 0
      %p271 = por %p269, %p270
      %s273 = sadd.s32 %s272, 1
      %p276 = scmp.eq.s32.totalorder %s28, 1
      %p277 = scmp.ne.s32.totalorder %s272, %s274
      %p278 = scmp.eq.s32.totalorder %s28, 0
      %p279 = por %p277, %p278
      %p280 = scmp.ne.s32.totalorder %s272, %s274
      %p281 = scmp.eq.s32.totalorder %s33, 1
      %p282 = por %p280, %p281
      %p283 = scmp.ne.s32.totalorder %s274, %s275
      %p284 = scmp.eq.s32.totalorder %s33, 0
      %p285 = por %p283, %p284
      %p286 = scmp.ne.s32.totalorder %s274, %s275
      %p287 = scmp.eq.s32.totalorder %s34, 1
      %p288 = por %p286, %p287
      %p290 = scmp.ne.s32.totalorder %s275, %s289
      %p291 = scmp.eq.s32.totalorder %s34, 0
      %p292 = por %p290, %p291
      %s294 = sadd.s32 %s293, 1
      %p297 = scmp.eq.s32.totalorder %s28, 1
      %p298 = scmp.ne.s32.totalorder %s293, %s295
      %p299 = scmp.eq.s32.totalorder %s28, 0
      %p300 = por %p298, %p299
      %p301 = scmp.ne.s32.totalorder %s293, %s295
      %p302 = scmp.eq.s32.totalorder %s33, 1
      %p303 = por %p301, %p302
      %p304 = scmp.ne.s32.totalorder %s295, %s296
      %p305 = scmp.eq.s32.totalorder %s33, 0
      %p306 = por %p304, %p305
      %p307 = scmp.ne.s32.totalorder %s295, %s296
      %p308 = scmp.eq.s32.totalorder %s34, 1
      %p309 = por %p307, %p308
      %p311 = scmp.ne.s32.totalorder %s296, %s310
      %p312 = scmp.eq.s32.totalorder %s34, 0
      %p313 = por %p311, %p312
      %s314 = ssub.s32 %s28, %s35
      %p315 = scmp.eq.s32.totalorder %s314, 0
      %s317 = sadd.s32 %s316, 1
      %s318 = scalar_select %p315, %s316, %s317
      %p321 = pneg %p315
      %p322 = scmp.eq.s32.totalorder %s28, 1
      %p323 = por %p321, %p322
      %p324 = scmp.ne.s32.totalorder %s316, %s319
      %p325 = scmp.eq.s32.totalorder %s28, 0
      %p326 = por %p324, %p325
      %p327 = scmp.ne.s32.totalorder %s316, %s319
      %p328 = scmp.eq.s32.totalorder %s33, 1
      %p329 = por %p327, %p328
      %p330 = scmp.ne.s32.totalorder %s319, %s320
      %p331 = scmp.eq.s32.totalorder %s33, 0
      %p332 = por %p330, %p331
      %p333 = scmp.ne.s32.totalorder %s319, %s320
      %p334 = scmp.eq.s32.totalorder %s34, 1
      %p335 = por %p333, %p334
      %p337 = scmp.ne.s32.totalorder %s320, %s336
      %p338 = scmp.eq.s32.totalorder %s34, 0
      %p339 = por %p337, %p338
      %p340 = scmp.le.s32.totalorder 1, %s28
      %p341 = scmp.lt.s32.totalorder %s28, 3
      %p342 = pnand %p340, %p341
      %p343 = pneg %p342
      // Predicated region
      $region9: #{tpu_custom_call.1} parent=5 // pred_check
        _
      $region10: #{tpu_custom_call.1} parent=5 // pred_check_branch
        %345 = sbr.rel (%p342) target = $region12
      $region11: #{tpu_custom_call.1} parent=5 // pred_region
        %s346 = ssub.s32 %s28, 1
        // Predicated region
        $region13: #{tpu_custom_call.1} parent=11 // pred_check
          %p347 = pneg %p75
        $region14: #{tpu_custom_call.1} parent=11 // pred_check_branch
          %349 = sbr.rel (%p347) target = $region16
        $region15: #{tpu_custom_call.1} parent=11 // pred_region
          %s351 = ssub.s32 512, 512
          %352 = vsyncadd [#allocation6], %s351
          %s353 = sshll.u32 [#allocation5], 4
          %s354 = int_to_ptr.vmem [resolvable:$true] %s353
          %359 = dma.hbm_to_vmem [thread:$0]  %s1, 512, %s354, [#allocation6], 64, 64, 4
        $region16: #{tpu_custom_call.1} parent=11 // pred_fallthru
          _
        // Predicated region
        $region17: #{tpu_custom_call.1} parent=11 // pred_check
          %p360 = pneg %p96
        $region18: #{tpu_custom_call.1} parent=11 // pred_check_branch
          %362 = sbr.rel (%p360) target = $region20
        $region19: #{tpu_custom_call.1} parent=11 // pred_region
          _
        $region20: #{tpu_custom_call.1} parent=11 // pred_fallthru
          _
        // Predicated region
        $region21: #{tpu_custom_call.1} parent=11 // pred_check
          %p363 = pneg %p117
        $region22: #{tpu_custom_call.1} parent=11 // pred_check_branch
          %365 = sbr.rel (%p363) target = $region24
        $region23: #{tpu_custom_call.1} parent=11 // pred_region
          %s367 = ssub.s32 1024, 1024
          %368 = vsyncadd [#allocation6], %s367
          %s369 = sshll.u32 [#allocation7], 4
          %s370 = int_to_ptr.vmem [resolvable:$true] %s369
          %375 = dma.hbm_to_vmem [thread:$0]  %s3, 1024, %s370, [#allocation6], 64, 64, 4
        $region24: #{tpu_custom_call.1} parent=11 // pred_fallthru
          _
        // Predicated region
        $region25: #{tpu_custom_call.1} parent=11 // pred_check
          %p376 = pneg %p138
        $region26: #{tpu_custom_call.1} parent=11 // pred_check_branch
          %378 = sbr.rel (%p376) target = $region28
        $region27: #{tpu_custom_call.1} parent=11 // pred_region
          _
        $region28: #{tpu_custom_call.1} parent=11 // pred_fallthru
          _
        // Predicated region
        $region29: #{tpu_custom_call.1} parent=11 // pred_check
          %p379 = pneg %p159
        $region30: #{tpu_custom_call.1} parent=11 // pred_check_branch
          %381 = sbr.rel (%p379) target = $region32
        $region31: #{tpu_custom_call.1} parent=11 // pred_region
          %s383 = ssub.s32 9216, 9216
          %384 = vsyncadd [#allocation9], %s383
          %s385 = sshll.u32 [#allocation8], 4
          %s386 = int_to_ptr.vmem [resolvable:$true] %s385
          %391 = dma.hbm_to_vmem [thread:$0]  %s5, 9216, %s386, [#allocation9], 64, 64, 4
        $region32: #{tpu_custom_call.1} parent=11 // pred_fallthru
          _
        // Predicated region
        $region33: #{tpu_custom_call.1} parent=11 // pred_check
          %p392 = pneg %p180
        $region34: #{tpu_custom_call.1} parent=11 // pred_check_branch
          %394 = sbr.rel (%p392) target = $region36
        $region35: #{tpu_custom_call.1} parent=11 // pred_region
          _
        $region36: #{tpu_custom_call.1} parent=11 // pred_fallthru
          _
        // Predicated region
        $region37: #{tpu_custom_call.1} parent=11 // pred_check
          %p395 = pneg %p201
        $region38: #{tpu_custom_call.1} parent=11 // pred_check_branch
          %397 = sbr.rel (%p395) target = $region40
        $region39: #{tpu_custom_call.1} parent=11 // pred_region
          %s399 = ssub.s32 1024, 1024
          %400 = vsyncadd [#allocation9], %s399
          %s401 = sshll.u32 [#allocation10], 4
          %s402 = int_to_ptr.vmem [resolvable:$true] %s401
          %407 = dma.hbm_to_vmem [thread:$0]  %s7, 1024, %s402, [#allocation9], 64, 64, 4
        $region40: #{tpu_custom_call.1} parent=11 // pred_fallthru
          _
        // Predicated region
        $region41: #{tpu_custom_call.1} parent=11 // pred_check
          %p408 = pneg %p222
        $region42: #{tpu_custom_call.1} parent=11 // pred_check_branch
          %410 = sbr.rel (%p408) target = $region44
        $region43: #{tpu_custom_call.1} parent=11 // pred_region
          _
        $region44: #{tpu_custom_call.1} parent=11 // pred_fallthru
          _
        // Predicated region
        $region45: #{tpu_custom_call.1} parent=11 // pred_check
          %p411 = pneg %p243
        $region46: #{tpu_custom_call.1} parent=11 // pred_check_branch
          %413 = sbr.rel (%p411) target = $region48
        $region47: #{tpu_custom_call.1} parent=11 // pred_region
          _
        $region48: #{tpu_custom_call.1} parent=11 // pred_fallthru
          _
        // Predicated region
        $region49: #{tpu_custom_call.1} parent=11 // pred_check
          %p414 = pneg %p264
        $region50: #{tpu_custom_call.1} parent=11 // pred_check_branch
          %416 = sbr.rel (%p414) target = $region52
        $region51: #{tpu_custom_call.1} parent=11 // pred_region
          _
        $region52: #{tpu_custom_call.1} parent=11 // pred_fallthru
          _
        // Predicated region
        $region53: #{tpu_custom_call.1} parent=11 // pred_check
          %p417 = pneg %p285
        $region54: #{tpu_custom_call.1} parent=11 // pred_check_branch
          %419 = sbr.rel (%p417) target = $region56
        $region55: #{tpu_custom_call.1} parent=11 // pred_region
          %s421 = ssub.s32 2048, 2048
          %422 = vsyncadd [#allocation12], %s421
          %s423 = sshll.u32 [#allocation11], 4
          %s424 = int_to_ptr.vmem [resolvable:$true] %s423
          %429 = dma.hbm_to_vmem [thread:$0]  %s11, 2048, %s424, [#allocation12], 64, 64, 4
        $region56: #{tpu_custom_call.1} parent=11 // pred_fallthru
          _
        // Predicated region
        $region57: #{tpu_custom_call.1} parent=11 // pred_check
          %p430 = pneg %p306
        $region58: #{tpu_custom_call.1} parent=11 // pred_check_branch
          %432 = sbr.rel (%p430) target = $region60
        $region59: #{tpu_custom_call.1} parent=11 // pred_region
          _
        $region60: #{tpu_custom_call.1} parent=11 // pred_fallthru
          _
      $region12: #{tpu_custom_call.1} parent=5 // pred_fallthru
        _
      %p433 = scmp.lt.s32.totalorder %s28, 2
      // Predicated region
      $region61: #{tpu_custom_call.1} parent=5 // pred_check
        %p434 = pneg %p433
      $region62: #{tpu_custom_call.1} parent=5 // pred_check_branch
        %436 = sbr.rel (%p434) target = $region64
      $region63: #{tpu_custom_call.1} parent=5 // pred_region
        // Predicated region
        $region65: #{tpu_custom_call.1} parent=63 // pred_check
          %p437 = pneg %p48
        $region66: #{tpu_custom_call.1} parent=63 // pred_check_branch
          %439 = sbr.rel (%p437) target = $region68
        $region67: #{tpu_custom_call.1} parent=63 // pred_region
          %s440 = sand.u32 %s38, 1
          %s441 = scalar_lea.sflag [#allocation3], %s440
          %s442 = sand.u32 %s38, 1
          %s443 = smul.addr %s442, 256
          %s444 = scalar_lea.vmem [#allocation2], %s443
          %s446 = ssub.s32 4096, 4096
          %447 = vsyncadd %s441, %s446
          %s448 = smul.addr %s28, 32
          %s449 = smul.addr %s448, 128
          %s450 = scalar_lea.hbm %s0, %s449
          %s451 = sshll.u32 %s444, 4
          %s452 = int_to_ptr.vmem [resolvable:$true] %s451
          %457 = dma.hbm_to_vmem [thread:$0]  %s450, 4096, %s452, %s441, 128, 128, 8
        $region68: #{tpu_custom_call.1} parent=63 // pred_fallthru
          _
      $region64: #{tpu_custom_call.1} parent=5 // pred_fallthru
        _
      %p458 = scmp.le.s32.totalorder 1, %s28
      %p459 = scmp.lt.s32.totalorder %s28, 3
      %p460 = pnand %p458, %p459
      %p461 = pneg %p460
      // Predicated region
      $region69: #{tpu_custom_call.1} parent=5 // pred_check
        _
      $region70: #{tpu_custom_call.1} parent=5 // pred_check_branch
        %463 = sbr.rel (%p460) target = $region72
      $region71: #{tpu_custom_call.1} parent=5 // pred_region
        %s464 = ssub.s32 %s28, 1
        %s465 = sand.u32 %s41, 1
        %s466 = scalar_lea.sflag [#allocation3], %s465
        %s467 = sand.u32 %s41, 1
        %s468 = smul.addr %s467, 256
        %s469 = scalar_lea.vmem [#allocation2], %s468
        // Predicated region
        $region73: #{tpu_custom_call.1} parent=71 // pred_check
          %p470 = pneg %p54
        $region74: #{tpu_custom_call.1} parent=71 // pred_check_branch
          %472 = sbr.rel (%p470) target = $region76
        $region75: #{tpu_custom_call.1} parent=71 // pred_region
          %473 = dma.done %s466, 4096
        $region76: #{tpu_custom_call.1} parent=71 // pred_fallthru
          _
        // Predicated region
        $region77: #{tpu_custom_call.1} parent=71 // pred_check
          %p474 = pneg %p75
        $region78: #{tpu_custom_call.1} parent=71 // pred_check_branch
          %476 = sbr.rel (%p474) target = $region80
        $region79: #{tpu_custom_call.1} parent=71 // pred_region
          %477 = dma.done [#allocation6], 512
        $region80: #{tpu_custom_call.1} parent=71 // pred_fallthru
          _
        // Predicated region
        $region81: #{tpu_custom_call.1} parent=71 // pred_check
          %p478 = pneg %p117
        $region82: #{tpu_custom_call.1} parent=71 // pred_check_branch
          %480 = sbr.rel (%p478) target = $region84
        $region83: #{tpu_custom_call.1} parent=71 // pred_region
          %481 = dma.done [#allocation6], 1024
        $region84: #{tpu_custom_call.1} parent=71 // pred_fallthru
          _
        // Predicated region
        $region85: #{tpu_custom_call.1} parent=71 // pred_check
          %p482 = pneg %p159
        $region86: #{tpu_custom_call.1} parent=71 // pred_check_branch
          %484 = sbr.rel (%p482) target = $region88
        $region87: #{tpu_custom_call.1} parent=71 // pred_region
          %485 = dma.done [#allocation9], 9216
        $region88: #{tpu_custom_call.1} parent=71 // pred_fallthru
          _
        // Predicated region
        $region89: #{tpu_custom_call.1} parent=71 // pred_check
          %p486 = pneg %p201
        $region90: #{tpu_custom_call.1} parent=71 // pred_check_branch
          %488 = sbr.rel (%p486) target = $region92
        $region91: #{tpu_custom_call.1} parent=71 // pred_region
          %489 = dma.done [#allocation9], 1024
        $region92: #{tpu_custom_call.1} parent=71 // pred_fallthru
          _
        // Predicated region
        $region93: #{tpu_custom_call.1} parent=71 // pred_check
          %p490 = pneg %p285
        $region94: #{tpu_custom_call.1} parent=71 // pred_check_branch
          %492 = sbr.rel (%p490) target = $region96
        $region95: #{tpu_custom_call.1} parent=71 // pred_region
          %493 = dma.done [#allocation12], 2048
        $region96: #{tpu_custom_call.1} parent=71 // pred_fallthru
          _
        %s494 = sand.u32 %s41, 1
        %s495 = scalar_lea.sflag [#allocation3], %s494
        %s496 = sand.u32 %s41, 1
        %s497 = smul.addr %s496, 256
        %s498 = scalar_lea.vmem [#allocation2], %s497
        %p499 = pneg %p54
        %p500 = pneg %p51
        %p501 = pneg %p75
        %p502 = pneg %p72
        %p503 = pneg %p96
        %p504 = pneg %p93
        %p505 = pneg %p117
        %p506 = pneg %p114
        %p507 = pneg %p138
        %p508 = pneg %p135
        %p509 = pneg %p159
        %p510 = pneg %p156
        %p511 = pneg %p180
        %p512 = pneg %p177
        %p513 = pneg %p201
        %p514 = pneg %p198
        %p515 = pneg %p222
        %p516 = pneg %p219
        %p517 = pneg %p243
        %p518 = pneg %p240
        %p519 = pneg %p264
        %p520 = pneg %p261
        %p521 = pneg %p285
        %p522 = pneg %p282
        %p523 = pneg %p306
        %p524 = pneg %p303
        %p525 = pneg %p332
        %p526 = pneg %p329
        %s527 = sand.u32 %s319, 1
        %s528 = scalar_lea.sflag [#allocation4], %s527
        %s529 = sand.u32 %s319, 1
        %s530 = smul.addr %s529, 256
        %s531 = scalar_lea.vmem [#allocation13], %s530
        %v533 = vld [vmem:[%s469] sm:$0xff]
        %v534 = vld [vmem:[%s469 + $0x8] sm:$0xff]
        %v535 = vld [vmem:[%s469 + $0x10] sm:$0xff]
        %v536 = vld [vmem:[%s469 + $0x18] sm:$0xff]
        %v537 = vld [vmem:[%s469 + $0x20] sm:$0xff]
        %v538 = vld [vmem:[%s469 + $0x28] sm:$0xff]
        %v539 = vld [vmem:[%s469 + $0x30] sm:$0xff]
        %v540 = vld [vmem:[%s469 + $0x38] sm:$0xff]
        %v541 = vld [vmem:[%s469 + $0x40] sm:$0xff]
        %v542 = vld [vmem:[%s469 + $0x48] sm:$0xff]
        %v543 = vld [vmem:[%s469 + $0x50] sm:$0xff]
        %v544 = vld [vmem:[%s469 + $0x58] sm:$0xff]
        %v545 = vld [vmem:[%s469 + $0x60] sm:$0xff]
        %v546 = vld [vmem:[%s469 + $0x68] sm:$0xff]
        %v547 = vld [vmem:[%s469 + $0x70] sm:$0xff]
        %v548 = vld [vmem:[%s469 + $0x78] sm:$0xff]
        %v549 = vld [vmem:[%s469 + $0x80] sm:$0xff]
        %v550 = vld [vmem:[%s469 + $0x88] sm:$0xff]
        %v551 = vld [vmem:[%s469 + $0x90] sm:$0xff]
        %v552 = vld [vmem:[%s469 + $0x98] sm:$0xff]
        %v553 = vld [vmem:[%s469 + $0xa0] sm:$0xff]
        %v554 = vld [vmem:[%s469 + $0xa8] sm:$0xff]
        %v555 = vld [vmem:[%s469 + $0xb0] sm:$0xff]
        %v556 = vld [vmem:[%s469 + $0xb8] sm:$0xff]
        %v557 = vld [vmem:[%s469 + $0xc0] sm:$0xff]
        %v558 = vld [vmem:[%s469 + $0xc8] sm:$0xff]
        %v559 = vld [vmem:[%s469 + $0xd0] sm:$0xff]
        %v560 = vld [vmem:[%s469 + $0xd8] sm:$0xff]
        %v561 = vld [vmem:[%s469 + $0xe0] sm:$0xff]
        %v562 = vld [vmem:[%s469 + $0xe8] sm:$0xff]
        %v563 = vld [vmem:[%s469 + $0xf0] sm:$0xff]
        %v564 = vld [vmem:[%s469 + $0xf8] sm:$0xff]
        %v565 = vpack.c.bf16 %v534, %v533
        %v566 = vpack.c.bf16 %v536, %v535
        %v567 = vpack.c.bf16 %v538, %v537
        %v568 = vpack.c.bf16 %v540, %v539
        %v569 = vpack.c.bf16 %v542, %v541
        %v570 = vpack.c.bf16 %v544, %v543
        %v571 = vpack.c.bf16 %v546, %v545
        %v572 = vpack.c.bf16 %v548, %v547
        %v573 = vpack.c.bf16 %v550, %v549
        %v574 = vpack.c.bf16 %v552, %v551
        %v575 = vpack.c.bf16 %v554, %v553
        %v576 = vpack.c.bf16 %v556, %v555
        %v577 = vpack.c.bf16 %v558, %v557
        %v578 = vpack.c.bf16 %v560, %v559
        %v579 = vpack.c.bf16 %v562, %v561
        %v580 = vpack.c.bf16 %v564, %v563
        %v581 = vld [vmem:[#allocation5] sm:$0xf]
        %v582 = vld [vmem:[#allocation5 + $0x4] sm:$0xf]
        %v583 = vld [vmem:[#allocation5 + $0x8] sm:$0xf]
        %v584 = vld [vmem:[#allocation5 + $0xc] sm:$0xf]
        %v585 = vld [vmem:[#allocation5 + $0x10] sm:$0xf]
        %v586 = vld [vmem:[#allocation5 + $0x14] sm:$0xf]
        %v587 = vld [vmem:[#allocation5 + $0x18] sm:$0xf]
        %v588 = vld [vmem:[#allocation5 + $0x1c] sm:$0xf]
        %v589 = vld [vmem:[%s2] sm:$0x1]
        %v591 = vlaneseq
        %v592 = vshrl.u32 %v591, 7
        %v593 = vsub.s32 0, %v592
        %v594 = vrot.slane %v589, %v593
        %v604 = vunpack.c.l.b16 %v581
        %v605 = vunpack.c.l.b16 %v582
        %v606 = vunpack.c.l.b16 %v583
        %v607 = vunpack.c.l.b16 %v584
        %v608 = vunpack.c.l.b16 %v585
        %v609 = vunpack.c.l.b16 %v586
        %v610 = vunpack.c.l.b16 %v587
        %v611 = vunpack.c.l.b16 %v588
        %v612 = vpack.c.b16 %v605, %v604
        %v613 = vpack.c.b16 %v607, %v606
        %v614 = vpack.c.b16 %v609, %v608
        %v615 = vpack.c.b16 %v611, %v610
        %vm620 = vcmask 523264
        %v622 = vsel %vm620, %v565, 0
        %v625 = vsel %vm620, %v566, 0
        %v628 = vsel %vm620, %v567, 0
        %v631 = vsel %vm620, %v568, 0
        %v634 = vsel %vm620, %v569, 0
        %v637 = vsel %vm620, %v570, 0
        %v640 = vsel %vm620, %v571, 0
        %v643 = vsel %vm620, %v572, 0
        %v646 = vsel %vm620, %v573, 0
        %v649 = vsel %vm620, %v574, 0
        %v652 = vsel %vm620, %v575, 0
        %v655 = vsel %vm620, %v576, 0
        %v658 = vsel %vm620, %v577, 0
        %v661 = vsel %vm620, %v578, 0
        %v664 = vsel %vm620, %v579, 0
        %v667 = vsel %vm620, %v580, 0
        %669 = vmatprep.subr.bf16.mxu0 0
        %670 = vmatpush1.bf16.msra.mxu0 %v612
        %671 = vmatprep.subr.bf16.mxu0 0
        %672 = vmatpush1.bf16.msra.mxu0 %v613
        %673 = vmatprep.subr.bf16.mxu0 0
        %674 = vmatpush1.bf16.msra.mxu0 %v614
        %675 = vmatprep.subr.bf16.mxu0 0
        %676 = vmatpush1.bf16.msra.mxu0 %v615
        %677 = vmatprep.subr.bf16.mxu0 0
        %678 = vmatpush1.bf16.msra.mxu0 0
        %679 = vmatprep.subr.bf16.mxu0 0
        %680 = vmatpush1.bf16.msra.mxu0 0
        %681 = vmatprep.subr.bf16.mxu0 0
        %682 = vmatpush1.bf16.msra.mxu0 0
        %683 = vmatprep.subr.bf16.mxu0 0
        %684 = vmatpush1.bf16.msra.mxu0 0
        %685 = vmatprep.subr.bf16.mxu0 0
        %686 = vmatpush1.bf16.msra.mxu0 0
        %687 = vmatprep.subr.bf16.mxu0 0
        %688 = vmatpush1.bf16.msra.mxu0 0
        %689 = vmatprep.subr.bf16.mxu0 0
        %690 = vmatpush1.bf16.msra.mxu0 0
        %691 = vmatprep.subr.bf16.mxu0 0
        %692 = vmatpush1.bf16.msra.mxu0 0
        %693 = vmatprep.subr.bf16.mxu0 0
        %694 = vmatpush1.bf16.msra.mxu0 0
        %695 = vmatprep.subr.bf16.mxu0 0
        %696 = vmatpush1.bf16.msra.mxu0 0
        %697 = vmatprep.subr.bf16.mxu0 0
        %698 = vmatpush1.bf16.msra.mxu0 0
        %699 = vmatprep.subr.bf16.mxu0 0
        %700 = vmatpush1.bf16.msra.mxu0 0
        %701 = vmatprep.mubr.bf16.mxu0 0
        %702 = vmatmul.mubr.bf16.gmra.mrb[0].mxu0 %v622
        %v703 = vpop.f32.mrb[0].mxu0
        %v704 = vadd.f32 %v594, %v703
        %v705 = vpop.f32.mrb[0].mxu0
        %v706 = vpop.f32.mrb[0].mxu0
        %v707 = vadd.f32 %v594, %v706
        %v708 = vpop.f32.mrb[0].mxu0
        %709 = vmatprep.mubr.bf16.mxu0 0
        %710 = vmatmul.mubr.bf16.gmra.mrb[0].mxu0 %v625
        %v711 = vpop.f32.mrb[0].mxu0
        %v712 = vadd.f32 %v594, %v711
        %v713 = vpop.f32.mrb[0].mxu0
        %v714 = vpop.f32.mrb[0].mxu0
        %v715 = vadd.f32 %v594, %v714
        %v716 = vpop.f32.mrb[0].mxu0
        %717 = vmatprep.mubr.bf16.mxu0 0
        %718 = vmatmul.mubr.bf16.gmra.mrb[0].mxu0 %v628
        %v719 = vpop.f32.mrb[0].mxu0
        %v720 = vadd.f32 %v594, %v719
        %v721 = vpop.f32.mrb[0].mxu0
        %v722 = vpop.f32.mrb[0].mxu0
        %v723 = vadd.f32 %v594, %v722
        %v724 = vpop.f32.mrb[0].mxu0
        %725 = vmatprep.mubr.bf16.mxu0 0
        %726 = vmatmul.mubr.bf16.gmra.mrb[0].mxu0 %v631
        %v727 = vpop.f32.mrb[0].mxu0
        %v728 = vadd.f32 %v594, %v727
        %v729 = vpop.f32.mrb[0].mxu0
        %v730 = vpop.f32.mrb[0].mxu0
        %v731 = vadd.f32 %v594, %v730
        %v732 = vpop.f32.mrb[0].mxu0
        %733 = vmatprep.mubr.bf16.mxu0 0
        %734 = vmatmul.mubr.bf16.gmra.mrb[0].mxu0 %v634
        %v735 = vpop.f32.mrb[0].mxu0
        %v736 = vadd.f32 %v594, %v735
        %v737 = vpop.f32.mrb[0].mxu0
        %v738 = vpop.f32.mrb[0].mxu0
        %v739 = vadd.f32 %v594, %v738
        %v740 = vpop.f32.mrb[0].mxu0
        %741 = vmatprep.mubr.bf16.mxu0 0
        %742 = vmatmul.mubr.bf16.gmra.mrb[0].mxu0 %v637
        %v743 = vpop.f32.mrb[0].mxu0
        %v744 = vadd.f32 %v594, %v743
        %v745 = vpop.f32.mrb[0].mxu0
        %v746 = vpop.f32.mrb[0].mxu0
        %v747 = vadd.f32 %v594, %v746
        %v748 = vpop.f32.mrb[0].mxu0
        %749 = vmatprep.mubr.bf16.mxu0 0
        %750 = vmatmul.mubr.bf16.gmra.mrb[0].mxu0 %v640
        %v751 = vpop.f32.mrb[0].mxu0
        %v752 = vadd.f32 %v594, %v751
        %v753 = vpop.f32.mrb[0].mxu0
        %v754 = vpop.f32.mrb[0].mxu0
        %v755 = vadd.f32 %v594, %v754
        %v756 = vpop.f32.mrb[0].mxu0
        %757 = vmatprep.mubr.bf16.mxu0 0
        %758 = vmatmul.mubr.bf16.gmra.mrb[0].mxu0 %v643
        %v759 = vpop.f32.mrb[0].mxu0
        %v760 = vadd.f32 %v594, %v759
        %v761 = vpop.f32.mrb[0].mxu0
        %v762 = vpop.f32.mrb[0].mxu0
        %v763 = vadd.f32 %v594, %v762
        %v764 = vpop.f32.mrb[0].mxu0
        %765 = vmatprep.mubr.bf16.mxu0 0
        %766 = vmatmul.mubr.bf16.gmra.mrb[0].mxu0 %v646
        %v767 = vpop.f32.mrb[0].mxu0
        %v768 = vadd.f32 %v594, %v767
        %v769 = vpop.f32.mrb[0].mxu0
        %v770 = vpop.f32.mrb[0].mxu0
        %v771 = vadd.f32 %v594, %v770
        %v772 = vpop.f32.mrb[0].mxu0
        %773 = vmatprep.mubr.bf16.mxu0 0
        %774 = vmatmul.mubr.bf16.gmra.mrb[0].mxu0 %v649
        %v775 = vpop.f32.mrb[0].mxu0
        %v776 = vadd.f32 %v594, %v775
        %v777 = vpop.f32.mrb[0].mxu0
        %v778 = vpop.f32.mrb[0].mxu0
        %v779 = vadd.f32 %v594, %v778
        %v780 = vpop.f32.mrb[0].mxu0
        %781 = vmatprep.mubr.bf16.mxu0 0
        %782 = vmatmul.mubr.bf16.gmra.mrb[0].mxu0 %v652
        %v783 = vpop.f32.mrb[0].mxu0
        %v784 = vadd.f32 %v594, %v783
        %v785 = vpop.f32.mrb[0].mxu0
        %v786 = vpop.f32.mrb[0].mxu0
        %v787 = vadd.f32 %v594, %v786
        %v788 = vpop.f32.mrb[0].mxu0
        %789 = vmatprep.mubr.bf16.mxu0 0
        %790 = vmatmul.mubr.bf16.gmra.mrb[0].mxu0 %v655
        %v791 = vpop.f32.mrb[0].mxu0
        %v792 = vadd.f32 %v594, %v791
        %v793 = vpop.f32.mrb[0].mxu0
        %v794 = vpop.f32.mrb[0].mxu0
        %v795 = vadd.f32 %v594, %v794
        %v796 = vpop.f32.mrb[0].mxu0
        %797 = vmatprep.mubr.bf16.mxu0 0
        %798 = vmatmul.mubr.bf16.gmra.mrb[0].mxu0 %v658
        %v799 = vpop.f32.mrb[0].mxu0
        %v800 = vadd.f32 %v594, %v799
        %v801 = vpop.f32.mrb[0].mxu0
        %v802 = vpop.f32.mrb[0].mxu0
        %v803 = vadd.f32 %v594, %v802
        %v804 = vpop.f32.mrb[0].mxu0
        %805 = vmatprep.mubr.bf16.mxu0 0
        %806 = vmatmul.mubr.bf16.gmra.mrb[0].mxu0 %v661
        %v807 = vpop.f32.mrb[0].mxu0
        %v808 = vadd.f32 %v594, %v807
        %v809 = vpop.f32.mrb[0].mxu0
        %v810 = vpop.f32.mrb[0].mxu0
        %v811 = vadd.f32 %v594, %v810
        %v812 = vpop.f32.mrb[0].mxu0
        %813 = vmatprep.mubr.bf16.mxu0 0
        %814 = vmatmul.mubr.bf16.gmra.mrb[0].mxu0 %v664
        %v815 = vpop.f32.mrb[0].mxu0
        %v816 = vadd.f32 %v594, %v815
        %v817 = vpop.f32.mrb[0].mxu0
        %v818 = vpop.f32.mrb[0].mxu0
        %v819 = vadd.f32 %v594, %v818
        %v820 = vpop.f32.mrb[0].mxu0
        %821 = vmatprep.mubr.bf16.mxu0 0
        %822 = vmatmul.mubr.bf16.gmra.mrb[0].mxu0 %v667
        %v823 = vpop.f32.mrb[0].mxu0
        %v824 = vadd.f32 %v594, %v823
        %v825 = vpop.f32.mrb[0].mxu0
        %v826 = vpop.f32.mrb[0].mxu0
        %v827 = vadd.f32 %v594, %v826
        %v828 = vpop.f32.mrb[0].mxu0
        %829 = vdwg.mxu0
        %v830 = vadd.f32 %v704, 3.0
        %v831 = vadd.f32 %v707, 3.0
        %v832 = vadd.f32 %v712, 3.0
        %v833 = vadd.f32 %v715, 3.0
        %v834 = vadd.f32 %v720, 3.0
        %v835 = vadd.f32 %v723, 3.0
        %v836 = vadd.f32 %v728, 3.0
        %v837 = vadd.f32 %v731, 3.0
        %v838 = vadd.f32 %v736, 3.0
        %v839 = vadd.f32 %v739, 3.0
        %v840 = vadd.f32 %v744, 3.0
        %v841 = vadd.f32 %v747, 3.0
        %v842 = vadd.f32 %v752, 3.0
        %v843 = vadd.f32 %v755, 3.0
        %v844 = vadd.f32 %v760, 3.0
        %v845 = vadd.f32 %v763, 3.0
        %v846 = vadd.f32 %v768, 3.0
        %v847 = vadd.f32 %v771, 3.0
        %v848 = vadd.f32 %v776, 3.0
        %v849 = vadd.f32 %v779, 3.0
        %v850 = vadd.f32 %v784, 3.0
        %v851 = vadd.f32 %v787, 3.0
        %v852 = vadd.f32 %v792, 3.0
        %v853 = vadd.f32 %v795, 3.0
        %v854 = vadd.f32 %v800, 3.0
        %v855 = vadd.f32 %v803, 3.0
        %v856 = vadd.f32 %v808, 3.0
        %v857 = vadd.f32 %v811, 3.0
        %v858 = vadd.f32 %v816, 3.0
        %v859 = vadd.f32 %v819, 3.0
        %v860 = vadd.f32 %v824, 3.0
        %v861 = vadd.f32 %v827, 3.0
        %v862 = vmax.f32 %v830, 0.0
        %v863 = vmax.f32 %v831, 0.0
        %v864 = vmax.f32 %v832, 0.0
        %v865 = vmax.f32 %v833, 0.0
        %v866 = vmax.f32 %v834, 0.0
        %v867 = vmax.f32 %v835, 0.0
        %v868 = vmax.f32 %v836, 0.0
        %v869 = vmax.f32 %v837, 0.0
        %v870 = vmax.f32 %v838, 0.0
        %v871 = vmax.f32 %v839, 0.0
        %v872 = vmax.f32 %v840, 0.0
        %v873 = vmax.f32 %v841, 0.0
        %v874 = vmax.f32 %v842, 0.0
        %v875 = vmax.f32 %v843, 0.0
        %v876 = vmax.f32 %v844, 0.0
        %v877 = vmax.f32 %v845, 0.0
        %v878 = vmax.f32 %v846, 0.0
        %v879 = vmax.f32 %v847, 0.0
        %v880 = vmax.f32 %v848, 0.0
        %v881 = vmax.f32 %v849, 0.0
        %v882 = vmax.f32 %v850, 0.0
        %v883 = vmax.f32 %v851, 0.0
        %v884 = vmax.f32 %v852, 0.0
        %v885 = vmax.f32 %v853, 0.0
        %v886 = vmax.f32 %v854, 0.0
        %v887 = vmax.f32 %v855, 0.0
        %v888 = vmax.f32 %v856, 0.0
        %v889 = vmax.f32 %v857, 0.0
        %v890 = vmax.f32 %v858, 0.0
        %v891 = vmax.f32 %v859, 0.0
        %v892 = vmax.f32 %v860, 0.0
        %v893 = vmax.f32 %v861, 0.0
        %v894 = vmin.f32 %v862, 6.0
        %v895 = vmin.f32 %v863, 6.0
        %v896 = vmin.f32 %v864, 6.0
        %v897 = vmin.f32 %v865, 6.0
        %v898 = vmin.f32 %v866, 6.0
        %v899 = vmin.f32 %v867, 6.0
        %v900 = vmin.f32 %v868, 6.0
        %v901 = vmin.f32 %v869, 6.0
        %v902 = vmin.f32 %v870, 6.0
        %v903 = vmin.f32 %v871, 6.0
        %v904 = vmin.f32 %v872, 6.0
        %v905 = vmin.f32 %v873, 6.0
        %v906 = vmin.f32 %v874, 6.0
        %v907 = vmin.f32 %v875, 6.0
        %v908 = vmin.f32 %v876, 6.0
        %v909 = vmin.f32 %v877, 6.0
        %v910 = vmin.f32 %v878, 6.0
        %v911 = vmin.f32 %v879, 6.0
        %v912 = vmin.f32 %v880, 6.0
        %v913 = vmin.f32 %v881, 6.0
        %v914 = vmin.f32 %v882, 6.0
        %v915 = vmin.f32 %v883, 6.0
        %v916 = vmin.f32 %v884, 6.0
        %v917 = vmin.f32 %v885, 6.0
        %v918 = vmin.f32 %v886, 6.0
        %v919 = vmin.f32 %v887, 6.0
        %v920 = vmin.f32 %v888, 6.0
        %v921 = vmin.f32 %v889, 6.0
        %v922 = vmin.f32 %v890, 6.0
        %v923 = vmin.f32 %v891, 6.0
        %v924 = vmin.f32 %v892, 6.0
        %v925 = vmin.f32 %v893, 6.0
        %v926 = vmul.f32 %v704, %v894
        %v927 = vmul.f32 %v707, %v895
        %v928 = vmul.f32 %v712, %v896
        %v929 = vmul.f32 %v715, %v897
        %v930 = vmul.f32 %v720, %v898
        %v931 = vmul.f32 %v723, %v899
        %v932 = vmul.f32 %v728, %v900
        %v933 = vmul.f32 %v731, %v901
        %v934 = vmul.f32 %v736, %v902
        %v935 = vmul.f32 %v739, %v903
        %v936 = vmul.f32 %v744, %v904
        %v937 = vmul.f32 %v747, %v905
        %v938 = vmul.f32 %v752, %v906
        %v939 = vmul.f32 %v755, %v907
        %v940 = vmul.f32 %v760, %v908
        %v941 = vmul.f32 %v763, %v909
        %v942 = vmul.f32 %v768, %v910
        %v943 = vmul.f32 %v771, %v911
        %v944 = vmul.f32 %v776, %v912
        %v945 = vmul.f32 %v779, %v913
        %v946 = vmul.f32 %v784, %v914
        %v947 = vmul.f32 %v787, %v915
        %v948 = vmul.f32 %v792, %v916
        %v949 = vmul.f32 %v795, %v917
        %v950 = vmul.f32 %v800, %v918
        %v951 = vmul.f32 %v803, %v919
        %v952 = vmul.f32 %v808, %v920
        %v953 = vmul.f32 %v811, %v921
        %v954 = vmul.f32 %v816, %v922
        %v955 = vmul.f32 %v819, %v923
        %v956 = vmul.f32 %v824, %v924
        %v957 = vmul.f32 %v827, %v925
        %v958 = vmul.f32 %v926, 0.16666667
        %v959 = vmul.f32 %v927, 0.16666667
        %v960 = vmul.f32 %v928, 0.16666667
        %v961 = vmul.f32 %v929, 0.16666667
        %v962 = vmul.f32 %v930, 0.16666667
        %v963 = vmul.f32 %v931, 0.16666667
        %v964 = vmul.f32 %v932, 0.16666667
        %v965 = vmul.f32 %v933, 0.16666667
        %v966 = vmul.f32 %v934, 0.16666667
        %v967 = vmul.f32 %v935, 0.16666667
        %v968 = vmul.f32 %v936, 0.16666667
        %v969 = vmul.f32 %v937, 0.16666667
        %v970 = vmul.f32 %v938, 0.16666667
        %v971 = vmul.f32 %v939, 0.16666667
        %v972 = vmul.f32 %v940, 0.16666667
        %v973 = vmul.f32 %v941, 0.16666667
        %v974 = vmul.f32 %v942, 0.16666667
        %v975 = vmul.f32 %v943, 0.16666667
        %v976 = vmul.f32 %v944, 0.16666667
        %v977 = vmul.f32 %v945, 0.16666667
        %v978 = vmul.f32 %v946, 0.16666667
        %v979 = vmul.f32 %v947, 0.16666667
        %v980 = vmul.f32 %v948, 0.16666667
        %v981 = vmul.f32 %v949, 0.16666667
        %v982 = vmul.f32 %v950, 0.16666667
        %v983 = vmul.f32 %v951, 0.16666667
        %v984 = vmul.f32 %v952, 0.16666667
        %v985 = vmul.f32 %v953, 0.16666667
        %v986 = vmul.f32 %v954, 0.16666667
        %v987 = vmul.f32 %v955, 0.16666667
        %v988 = vmul.f32 %v956, 0.16666667
        %v989 = vmul.f32 %v957, 0.16666667
        %v990 = vpack.c.bf16 %v959, %v958
        %v991 = vpack.c.bf16 %v961, %v960
        %v992 = vpack.c.bf16 %v963, %v962
        %v993 = vpack.c.bf16 %v965, %v964
        %v994 = vpack.c.bf16 %v967, %v966
        %v995 = vpack.c.bf16 %v969, %v968
        %v996 = vpack.c.bf16 %v971, %v970
        %v997 = vpack.c.bf16 %v973, %v972
        %v998 = vpack.c.bf16 %v975, %v974
        %v999 = vpack.c.bf16 %v977, %v976
        %v1000 = vpack.c.bf16 %v979, %v978
        %v1001 = vpack.c.bf16 %v981, %v980
        %v1002 = vpack.c.bf16 %v983, %v982
        %v1003 = vpack.c.bf16 %v985, %v984
        %v1004 = vpack.c.bf16 %v987, %v986
        %v1005 = vpack.c.bf16 %v989, %v988
        %v1006 = vld [vmem:[#allocation7] sm:$0xf]
        %v1007 = vld [vmem:[#allocation7 + $0x4] sm:$0xf]
        %v1008 = vld [vmem:[#allocation7 + $0x8] sm:$0xf]
        %v1009 = vld [vmem:[#allocation7 + $0xc] sm:$0xf]
        %v1010 = vld [vmem:[#allocation7 + $0x10] sm:$0xf]
        %v1011 = vld [vmem:[#allocation7 + $0x14] sm:$0xf]
        %v1012 = vld [vmem:[#allocation7 + $0x18] sm:$0xf]
        %v1013 = vld [vmem:[#allocation7 + $0x1c] sm:$0xf]
        %v1014 = vld [vmem:[#allocation7 + $0x20] sm:$0xf]
        %v1015 = vld [vmem:[#allocation7 + $0x24] sm:$0xf]
        %v1016 = vld [vmem:[#allocation7 + $0x28] sm:$0xf]
        %v1017 = vld [vmem:[#allocation7 + $0x2c] sm:$0xf]
        %v1018 = vld [vmem:[#allocation7 + $0x30] sm:$0xf]
        %v1019 = vld [vmem:[#allocation7 + $0x34] sm:$0xf]
        %v1020 = vld [vmem:[#allocation7 + $0x38] sm:$0xf]
        %v1021 = vld [vmem:[#allocation7 + $0x3c] sm:$0xf]
        %v1022 = vld [vmem:[%s4] sm:$0x1]
        %v1024 = vlaneseq
        %v1025 = vshrl.u32 %v1024, 7
        %v1026 = vsub.s32 0, %v1025
        %v1027 = vrot.slane %v1022, %v1026
        %v1045 = vunpack.c.l.b16 %v1006
        %v1046 = vunpack.c.l.b16 %v1007
        %v1047 = vunpack.c.l.b16 %v1008
        %v1048 = vunpack.c.l.b16 %v1009
        %v1049 = vunpack.c.l.b16 %v1010
        %v1050 = vunpack.c.l.b16 %v1011
        %v1051 = vunpack.c.l.b16 %v1012
        %v1052 = vunpack.c.l.b16 %v1013
        %v1053 = vunpack.c.l.b16 %v1014
        %v1054 = vunpack.c.l.b16 %v1015
        %v1055 = vunpack.c.l.b16 %v1016
        %v1056 = vunpack.c.l.b16 %v1017
        %v1057 = vunpack.c.l.b16 %v1018
        %v1058 = vunpack.c.l.b16 %v1019
        %v1059 = vunpack.c.l.b16 %v1020
        %v1060 = vunpack.c.l.b16 %v1021
        %v1061 = vpack.c.b16 %v1046, %v1045
        %v1062 = vpack.c.b16 %v1048, %v1047
        %v1063 = vpack.c.b16 %v1050, %v1049
        %v1064 = vpack.c.b16 %v1052, %v1051
        %v1065 = vpack.c.b16 %v1054, %v1053
        %v1066 = vpack.c.b16 %v1056, %v1055
        %v1067 = vpack.c.b16 %v1058, %v1057
        %v1068 = vpack.c.b16 %v1060, %v1059
        %1077 = vmatprep.subr.bf16.mxu0 0
        %1078 = vmatpush1.bf16.msra.mxu0 %v1061
        %1079 = vmatprep.subr.bf16.mxu0 0
        %1080 = vmatpush1.bf16.msra.mxu0 %v1062
        %1081 = vmatprep.subr.bf16.mxu0 0
        %1082 = vmatpush1.bf16.msra.mxu0 %v1063
        %1083 = vmatprep.subr.bf16.mxu0 0
        %1084 = vmatpush1.bf16.msra.mxu0 %v1064
        %1085 = vmatprep.subr.bf16.mxu0 0
        %1086 = vmatpush1.bf16.msra.mxu0 %v1065
        %1087 = vmatprep.subr.bf16.mxu0 0
        %1088 = vmatpush1.bf16.msra.mxu0 %v1066
        %1089 = vmatprep.subr.bf16.mxu0 0
        %1090 = vmatpush1.bf16.msra.mxu0 %v1067
        %1091 = vmatprep.subr.bf16.mxu0 0
        %1092 = vmatpush1.bf16.msra.mxu0 %v1068
        %1093 = vmatprep.subr.bf16.mxu0 0
        %1094 = vmatpush1.bf16.msra.mxu0 0
        %1095 = vmatprep.subr.bf16.mxu0 0
        %1096 = vmatpush1.bf16.msra.mxu0 0
        %1097 = vmatprep.subr.bf16.mxu0 0
        %1098 = vmatpush1.bf16.msra.mxu0 0
        %1099 = vmatprep.subr.bf16.mxu0 0
        %1100 = vmatpush1.bf16.msra.mxu0 0
        %1101 = vmatprep.subr.bf16.mxu0 0
        %1102 = vmatpush1.bf16.msra.mxu0 0
        %1103 = vmatprep.subr.bf16.mxu0 0
        %1104 = vmatpush1.bf16.msra.mxu0 0
        %1105 = vmatprep.subr.bf16.mxu0 0
        %1106 = vmatpush1.bf16.msra.mxu0 0
        %1107 = vmatprep.subr.bf16.mxu0 0
        %1108 = vmatpush1.bf16.msra.mxu0 0
        %1109 = vmatprep.mubr.bf16.mxu0 0
        %1110 = vmatmul.mubr.bf16.gmra.mrb[0].mxu0 %v990
        %v1111 = vpop.f32.mrb[0].mxu0
        %v1112 = vadd.f32 %v1027, %v1111
        %v1113 = vpop.f32.mrb[0].mxu0
        %v1114 = vpop.f32.mrb[0].mxu0
        %v1115 = vadd.f32 %v1027, %v1114
        %v1116 = vpop.f32.mrb[0].mxu0
        %1117 = vmatprep.mubr.bf16.mxu0 0
        %1118 = vmatmul.mubr.bf16.gmra.mrb[0].mxu0 %v991
        %v1119 = vpop.f32.mrb[0].mxu0
        %v1120 = vadd.f32 %v1027, %v1119
        %v1121 = vpop.f32.mrb[0].mxu0
        %v1122 = vpop.f32.mrb[0].mxu0
        %v1123 = vadd.f32 %v1027, %v1122
        %v1124 = vpop.f32.mrb[0].mxu0
        %1125 = vmatprep.mubr.bf16.mxu0 0
        %1126 = vmatmul.mubr.bf16.gmra.mrb[0].mxu0 %v992
        %v1127 = vpop.f32.mrb[0].mxu0
        %v1128 = vadd.f32 %v1027, %v1127
        %v1129 = vpop.f32.mrb[0].mxu0
        %v1130 = vpop.f32.mrb[0].mxu0
        %v1131 = vadd.f32 %v1027, %v1130
        %v1132 = vpop.f32.mrb[0].mxu0
        %1133 = vmatprep.mubr.bf16.mxu0 0
        %1134 = vmatmul.mubr.bf16.gmra.mrb[0].mxu0 %v993
        %v1135 = vpop.f32.mrb[0].mxu0
        %v1136 = vadd.f32 %v1027, %v1135
        %v1137 = vpop.f32.mrb[0].mxu0
        %v1138 = vpop.f32.mrb[0].mxu0
        %v1139 = vadd.f32 %v1027, %v1138
        %v1140 = vpop.f32.mrb[0].mxu0
        %1141 = vmatprep.mubr.bf16.mxu0 0
        %1142 = vmatmul.mubr.bf16.gmra.mrb[0].mxu0 %v994
        %v1143 = vpop.f32.mrb[0].mxu0
        %v1144 = vadd.f32 %v1027, %v1143
        %v1145 = vpop.f32.mrb[0].mxu0
        %v1146 = vpop.f32.mrb[0].mxu0
        %v1147 = vadd.f32 %v1027, %v1146
        %v1148 = vpop.f32.mrb[0].mxu0
        %1149 = vmatprep.mubr.bf16.mxu0 0
        %1150 = vmatmul.mubr.bf16.gmra.mrb[0].mxu0 %v995
        %v1151 = vpop.f32.mrb[0].mxu0
        %v1152 = vadd.f32 %v1027, %v1151
        %v1153 = vpop.f32.mrb[0].mxu0
        %v1154 = vpop.f32.mrb[0].mxu0
        %v1155 = vadd.f32 %v1027, %v1154
        %v1156 = vpop.f32.mrb[0].mxu0
        %1157 = vmatprep.mubr.bf16.mxu0 0
        %1158 = vmatmul.mubr.bf16.gmra.mrb[0].mxu0 %v996
        %v1159 = vpop.f32.mrb[0].mxu0
        %v1160 = vadd.f32 %v1027, %v1159
        %v1161 = vpop.f32.mrb[0].mxu0
        %v1162 = vpop.f32.mrb[0].mxu0
        %v1163 = vadd.f32 %v1027, %v1162
        %v1164 = vpop.f32.mrb[0].mxu0
        %1165 = vmatprep.mubr.bf16.mxu0 0
        %1166 = vmatmul.mubr.bf16.gmra.mrb[0].mxu0 %v997
        %v1167 = vpop.f32.mrb[0].mxu0
        %v1168 = vadd.f32 %v1027, %v1167
        %v1169 = vpop.f32.mrb[0].mxu0
        %v1170 = vpop.f32.mrb[0].mxu0
        %v1171 = vadd.f32 %v1027, %v1170
        %v1172 = vpop.f32.mrb[0].mxu0
        %1173 = vmatprep.mubr.bf16.mxu0 0
        %1174 = vmatmul.mubr.bf16.gmra.mrb[0].mxu0 %v998
        %v1175 = vpop.f32.mrb[0].mxu0
        %v1176 = vadd.f32 %v1027, %v1175
        %v1177 = vpop.f32.mrb[0].mxu0
        %v1178 = vpop.f32.mrb[0].mxu0
        %v1179 = vadd.f32 %v1027, %v1178
        %v1180 = vpop.f32.mrb[0].mxu0
        %1181 = vmatprep.mubr.bf16.mxu0 0
        %1182 = vmatmul.mubr.bf16.gmra.mrb[0].mxu0 %v999
        %v1183 = vpop.f32.mrb[0].mxu0
        %v1184 = vadd.f32 %v1027, %v1183
        %v1185 = vpop.f32.mrb[0].mxu0
        %v1186 = vpop.f32.mrb[0].mxu0
        %v1187 = vadd.f32 %v1027, %v1186
        %v1188 = vpop.f32.mrb[0].mxu0
        %1189 = vmatprep.mubr.bf16.mxu0 0
        %1190 = vmatmul.mubr.bf16.gmra.mrb[0].mxu0 %v1000
        %v1191 = vpop.f32.mrb[0].mxu0
        %v1192 = vadd.f32 %v1027, %v1191
        %v1193 = vpop.f32.mrb[0].mxu0
        %v1194 = vpop.f32.mrb[0].mxu0
        %v1195 = vadd.f32 %v1027, %v1194
        %v1196 = vpop.f32.mrb[0].mxu0
        %1197 = vmatprep.mubr.bf16.mxu0 0
        %1198 = vmatmul.mubr.bf16.gmra.mrb[0].mxu0 %v1001
        %v1199 = vpop.f32.mrb[0].mxu0
        %v1200 = vadd.f32 %v1027, %v1199
        %v1201 = vpop.f32.mrb[0].mxu0
        %v1202 = vpop.f32.mrb[0].mxu0
        %v1203 = vadd.f32 %v1027, %v1202
        %v1204 = vpop.f32.mrb[0].mxu0
        %1205 = vmatprep.mubr.bf16.mxu0 0
        %1206 = vmatmul.mubr.bf16.gmra.mrb[0].mxu0 %v1002
        %v1207 = vpop.f32.mrb[0].mxu0
        %v1208 = vadd.f32 %v1027, %v1207
        %v1209 = vpop.f32.mrb[0].mxu0
        %v1210 = vpop.f32.mrb[0].mxu0
        %v1211 = vadd.f32 %v1027, %v1210
        %v1212 = vpop.f32.mrb[0].mxu0
        %1213 = vmatprep.mubr.bf16.mxu0 0
        %1214 = vmatmul.mubr.bf16.gmra.mrb[0].mxu0 %v1003
        %v1215 = vpop.f32.mrb[0].mxu0
        %v1216 = vadd.f32 %v1027, %v1215
        %v1217 = vpop.f32.mrb[0].mxu0
        %v1218 = vpop.f32.mrb[0].mxu0
        %v1219 = vadd.f32 %v1027, %v1218
        %v1220 = vpop.f32.mrb[0].mxu0
        %1221 = vmatprep.mubr.bf16.mxu0 0
        %1222 = vmatmul.mubr.bf16.gmra.mrb[0].mxu0 %v1004
        %v1223 = vpop.f32.mrb[0].mxu0
        %v1224 = vadd.f32 %v1027, %v1223
        %v1225 = vpop.f32.mrb[0].mxu0
        %v1226 = vpop.f32.mrb[0].mxu0
        %v1227 = vadd.f32 %v1027, %v1226
        %v1228 = vpop.f32.mrb[0].mxu0
        %1229 = vmatprep.mubr.bf16.mxu0 0
        %1230 = vmatmul.mubr.bf16.gmra.mrb[0].mxu0 %v1005
        %v1231 = vpop.f32.mrb[0].mxu0
        %v1232 = vadd.f32 %v1027, %v1231
        %v1233 = vpop.f32.mrb[0].mxu0
        %v1234 = vpop.f32.mrb[0].mxu0
        %v1235 = vadd.f32 %v1027, %v1234
        %v1236 = vpop.f32.mrb[0].mxu0
        %1237 = vdwg.mxu0
        %v1238 = vadd.f32 %v1112, 3.0
        %v1239 = vadd.f32 %v1115, 3.0
        %v1240 = vadd.f32 %v1120, 3.0
        %v1241 = vadd.f32 %v1123, 3.0
        %v1242 = vadd.f32 %v1128, 3.0
        %v1243 = vadd.f32 %v1131, 3.0
        %v1244 = vadd.f32 %v1136, 3.0
        %v1245 = vadd.f32 %v1139, 3.0
        %v1246 = vadd.f32 %v1144, 3.0
        %v1247 = vadd.f32 %v1147, 3.0
        %v1248 = vadd.f32 %v1152, 3.0
        %v1249 = vadd.f32 %v1155, 3.0
        %v1250 = vadd.f32 %v1160, 3.0
        %v1251 = vadd.f32 %v1163, 3.0
        %v1252 = vadd.f32 %v1168, 3.0
        %v1253 = vadd.f32 %v1171, 3.0
        %v1254 = vadd.f32 %v1176, 3.0
        %v1255 = vadd.f32 %v1179, 3.0
        %v1256 = vadd.f32 %v1184, 3.0
        %v1257 = vadd.f32 %v1187, 3.0
        %v1258 = vadd.f32 %v1192, 3.0
        %v1259 = vadd.f32 %v1195, 3.0
        %v1260 = vadd.f32 %v1200, 3.0
        %v1261 = vadd.f32 %v1203, 3.0
        %v1262 = vadd.f32 %v1208, 3.0
        %v1263 = vadd.f32 %v1211, 3.0
        %v1264 = vadd.f32 %v1216, 3.0
        %v1265 = vadd.f32 %v1219, 3.0
        %v1266 = vadd.f32 %v1224, 3.0
        %v1267 = vadd.f32 %v1227, 3.0
        %v1268 = vadd.f32 %v1232, 3.0
        %v1269 = vadd.f32 %v1235, 3.0
        %v1270 = vmax.f32 %v1238, 0.0
        %v1271 = vmax.f32 %v1239, 0.0
        %v1272 = vmax.f32 %v1240, 0.0
        %v1273 = vmax.f32 %v1241, 0.0
        %v1274 = vmax.f32 %v1242, 0.0
        %v1275 = vmax.f32 %v1243, 0.0
        %v1276 = vmax.f32 %v1244, 0.0
        %v1277 = vmax.f32 %v1245, 0.0
        %v1278 = vmax.f32 %v1246, 0.0
        %v1279 = vmax.f32 %v1247, 0.0
        %v1280 = vmax.f32 %v1248, 0.0
        %v1281 = vmax.f32 %v1249, 0.0
        %v1282 = vmax.f32 %v1250, 0.0
        %v1283 = vmax.f32 %v1251, 0.0
        %v1284 = vmax.f32 %v1252, 0.0
        %v1285 = vmax.f32 %v1253, 0.0
        %v1286 = vmax.f32 %v1254, 0.0
        %v1287 = vmax.f32 %v1255, 0.0
        %v1288 = vmax.f32 %v1256, 0.0
        %v1289 = vmax.f32 %v1257, 0.0
        %v1290 = vmax.f32 %v1258, 0.0
        %v1291 = vmax.f32 %v1259, 0.0
        %v1292 = vmax.f32 %v1260, 0.0
        %v1293 = vmax.f32 %v1261, 0.0
        %v1294 = vmax.f32 %v1262, 0.0
        %v1295 = vmax.f32 %v1263, 0.0
        %v1296 = vmax.f32 %v1264, 0.0
        %v1297 = vmax.f32 %v1265, 0.0
        %v1298 = vmax.f32 %v1266, 0.0
        %v1299 = vmax.f32 %v1267, 0.0
        %v1300 = vmax.f32 %v1268, 0.0
        %v1301 = vmax.f32 %v1269, 0.0
        %v1302 = vmin.f32 %v1270, 6.0
        %v1303 = vmin.f32 %v1271, 6.0
        %v1304 = vmin.f32 %v1272, 6.0
        %v1305 = vmin.f32 %v1273, 6.0
        %v1306 = vmin.f32 %v1274, 6.0
        %v1307 = vmin.f32 %v1275, 6.0
        %v1308 = vmin.f32 %v1276, 6.0
        %v1309 = vmin.f32 %v1277, 6.0
        %v1310 = vmin.f32 %v1278, 6.0
        %v1311 = vmin.f32 %v1279, 6.0
        %v1312 = vmin.f32 %v1280, 6.0
        %v1313 = vmin.f32 %v1281, 6.0
        %v1314 = vmin.f32 %v1282, 6.0
        %v1315 = vmin.f32 %v1283, 6.0
        %v1316 = vmin.f32 %v1284, 6.0
        %v1317 = vmin.f32 %v1285, 6.0
        %v1318 = vmin.f32 %v1286, 6.0
        %v1319 = vmin.f32 %v1287, 6.0
        %v1320 = vmin.f32 %v1288, 6.0
        %v1321 = vmin.f32 %v1289, 6.0
        %v1322 = vmin.f32 %v1290, 6.0
        %v1323 = vmin.f32 %v1291, 6.0
        %v1324 = vmin.f32 %v1292, 6.0
        %v1325 = vmin.f32 %v1293, 6.0
        %v1326 = vmin.f32 %v1294, 6.0
        %v1327 = vmin.f32 %v1295, 6.0
        %v1328 = vmin.f32 %v1296, 6.0
        %v1329 = vmin.f32 %v1297, 6.0
        %v1330 = vmin.f32 %v1298, 6.0
        %v1331 = vmin.f32 %v1299, 6.0
        %v1332 = vmin.f32 %v1300, 6.0
        %v1333 = vmin.f32 %v1301, 6.0
        %v1334 = vmul.f32 %v1112, %v1302
        %v1335 = vmul.f32 %v1115, %v1303
        %v1336 = vmul.f32 %v1120, %v1304
        %v1337 = vmul.f32 %v1123, %v1305
        %v1338 = vmul.f32 %v1128, %v1306
        %v1339 = vmul.f32 %v1131, %v1307
        %v1340 = vmul.f32 %v1136, %v1308
        %v1341 = vmul.f32 %v1139, %v1309
        %v1342 = vmul.f32 %v1144, %v1310
        %v1343 = vmul.f32 %v1147, %v1311
        %v1344 = vmul.f32 %v1152, %v1312
        %v1345 = vmul.f32 %v1155, %v1313
        %v1346 = vmul.f32 %v1160, %v1314
        %v1347 = vmul.f32 %v1163, %v1315
        %v1348 = vmul.f32 %v1168, %v1316
        %v1349 = vmul.f32 %v1171, %v1317
        %v1350 = vmul.f32 %v1176, %v1318
        %v1351 = vmul.f32 %v1179, %v1319
        %v1352 = vmul.f32 %v1184, %v1320
        %v1353 = vmul.f32 %v1187, %v1321
        %v1354 = vmul.f32 %v1192, %v1322
        %v1355 = vmul.f32 %v1195, %v1323
        %v1356 = vmul.f32 %v1200, %v1324
        %v1357 = vmul.f32 %v1203, %v1325
        %v1358 = vmul.f32 %v1208, %v1326
        %v1359 = vmul.f32 %v1211, %v1327
        %v1360 = vmul.f32 %v1216, %v1328
        %v1361 = vmul.f32 %v1219, %v1329
        %v1362 = vmul.f32 %v1224, %v1330
        %v1363 = vmul.f32 %v1227, %v1331
        %v1364 = vmul.f32 %v1232, %v1332
        %v1365 = vmul.f32 %v1235, %v1333
        %v1366 = vmul.f32 %v1334, 0.16666667
        %v1367 = vmul.f32 %v1335, 0.16666667
        %v1368 = vmul.f32 %v1336, 0.16666667
        %v1369 = vmul.f32 %v1337, 0.16666667
        %v1370 = vmul.f32 %v1338, 0.16666667
        %v1371 = vmul.f32 %v1339, 0.16666667
        %v1372 = vmul.f32 %v1340, 0.16666667
        %v1373 = vmul.f32 %v1341, 0.16666667
        %v1374 = vmul.f32 %v1342, 0.16666667
        %v1375 = vmul.f32 %v1343, 0.16666667
        %v1376 = vmul.f32 %v1344, 0.16666667
        %v1377 = vmul.f32 %v1345, 0.16666667
        %v1378 = vmul.f32 %v1346, 0.16666667
        %v1379 = vmul.f32 %v1347, 0.16666667
        %v1380 = vmul.f32 %v1348, 0.16666667
        %v1381 = vmul.f32 %v1349, 0.16666667
        %v1382 = vmul.f32 %v1350, 0.16666667
        %v1383 = vmul.f32 %v1351, 0.16666667
        %v1384 = vmul.f32 %v1352, 0.16666667
        %v1385 = vmul.f32 %v1353, 0.16666667
        %v1386 = vmul.f32 %v1354, 0.16666667
        %v1387 = vmul.f32 %v1355, 0.16666667
        %v1388 = vmul.f32 %v1356, 0.16666667
        %v1389 = vmul.f32 %v1357, 0.16666667
        %v1390 = vmul.f32 %v1358, 0.16666667
        %v1391 = vmul.f32 %v1359, 0.16666667
        %v1392 = vmul.f32 %v1360, 0.16666667
        %v1393 = vmul.f32 %v1361, 0.16666667
        %v1394 = vmul.f32 %v1362, 0.16666667
        %v1395 = vmul.f32 %v1363, 0.16666667
        %v1396 = vmul.f32 %v1364, 0.16666667
        %v1397 = vmul.f32 %v1365, 0.16666667
        %v1398 = vld [vmem:[#allocation8] sm:$0xf]
        %v1399 = vld [vmem:[#allocation8 + $0x4] sm:$0xf]
        %v1400 = vld [vmem:[#allocation8 + $0x8] sm:$0xf]
        %v1401 = vld [vmem:[#allocation8 + $0xc] sm:$0xf]
        %v1402 = vld [vmem:[#allocation8 + $0x10] sm:$0xf]
        %v1403 = vld [vmem:[#allocation8 + $0x14] sm:$0xf]
        %v1404 = vld [vmem:[#allocation8 + $0x18] sm:$0xf]
        %v1405 = vld [vmem:[#allocation8 + $0x1c] sm:$0xf]
        %v1406 = vld [vmem:[#allocation8 + $0x20] sm:$0xf]
        %v1407 = vld [vmem:[#allocation8 + $0x24] sm:$0xf]
        %v1408 = vld [vmem:[#allocation8 + $0x28] sm:$0xf]
        %v1409 = vld [vmem:[#allocation8 + $0x2c] sm:$0xf]
        %v1410 = vld [vmem:[#allocation8 + $0x30] sm:$0xf]
        %v1411 = vld [vmem:[#allocation8 + $0x34] sm:$0xf]
        %v1412 = vld [vmem:[#allocation8 + $0x38] sm:$0xf]
        %v1413 = vld [vmem:[#allocation8 + $0x3c] sm:$0xf]
        %v1414 = vld [vmem:[#allocation8 + $0x40] sm:$0xf]
        %v1415 = vld [vmem:[#allocation8 + $0x44] sm:$0xf]
        %v1416 = vld [vmem:[#allocation8 + $0x48] sm:$0xf]
        %v1417 = vld [vmem:[#allocation8 + $0x4c] sm:$0xf]
        %v1418 = vld [vmem:[#allocation8 + $0x50] sm:$0xf]
        %v1419 = vld [vmem:[#allocation8 + $0x54] sm:$0xf]
        %v1420 = vld [vmem:[#allocation8 + $0x58] sm:$0xf]
        %v1421 = vld [vmem:[#allocation8 + $0x5c] sm:$0xf]
        %v1422 = vld [vmem:[#allocation8 + $0x60] sm:$0xf]
        %v1423 = vld [vmem:[#allocation8 + $0x64] sm:$0xf]
        %v1424 = vld [vmem:[#allocation8 + $0x68] sm:$0xf]
        %v1425 = vld [vmem:[#allocation8 + $0x6c] sm:$0xf]
        %v1426 = vld [vmem:[#allocation8 + $0x70] sm:$0xf]
        %v1427 = vld [vmem:[#allocation8 + $0x74] sm:$0xf]
        %v1428 = vld [vmem:[#allocation8 + $0x78] sm:$0xf]
        %v1429 = vld [vmem:[#allocation8 + $0x7c] sm:$0xf]
        %v1430 = vld [vmem:[#allocation8 + $0x80] sm:$0xf]
        %v1431 = vld [vmem:[#allocation8 + $0x84] sm:$0xf]
        %v1432 = vld [vmem:[#allocation8 + $0x88] sm:$0xf]
        %v1433 = vld [vmem:[#allocation8 + $0x8c] sm:$0xf]
        %v1434 = vld [vmem:[#allocation8 + $0x90] sm:$0xf]
        %v1435 = vld [vmem:[#allocation8 + $0x94] sm:$0xf]
        %v1436 = vld [vmem:[#allocation8 + $0x98] sm:$0xf]
        %v1437 = vld [vmem:[#allocation8 + $0x9c] sm:$0xf]
        %v1438 = vld [vmem:[#allocation8 + $0xa0] sm:$0xf]
        %v1439 = vld [vmem:[#allocation8 + $0xa4] sm:$0xf]
        %v1440 = vld [vmem:[#allocation8 + $0xa8] sm:$0xf]
        %v1441 = vld [vmem:[#allocation8 + $0xac] sm:$0xf]
        %v1442 = vld [vmem:[#allocation8 + $0xb0] sm:$0xf]
        %v1443 = vld [vmem:[#allocation8 + $0xb4] sm:$0xf]
        %v1444 = vld [vmem:[#allocation8 + $0xb8] sm:$0xf]
        %v1445 = vld [vmem:[#allocation8 + $0xbc] sm:$0xf]
        %v1446 = vld [vmem:[#allocation8 + $0xc0] sm:$0xf]
        %v1447 = vld [vmem:[#allocation8 + $0xc4] sm:$0xf]
        %v1448 = vld [vmem:[#allocation8 + $0xc8] sm:$0xf]
        %v1449 = vld [vmem:[#allocation8 + $0xcc] sm:$0xf]
        %v1450 = vld [vmem:[#allocation8 + $0xd0] sm:$0xf]
        %v1451 = vld [vmem:[#allocation8 + $0xd4] sm:$0xf]
        %v1452 = vld [vmem:[#allocation8 + $0xd8] sm:$0xf]
        %v1453 = vld [vmem:[#allocation8 + $0xdc] sm:$0xf]
        %v1454 = vld [vmem:[#allocation8 + $0xe0] sm:$0xf]
        %v1455 = vld [vmem:[#allocation8 + $0xe4] sm:$0xf]
        %v1456 = vld [vmem:[#allocation8 + $0xe8] sm:$0xf]
        %v1457 = vld [vmem:[#allocation8 + $0xec] sm:$0xf]
        %v1458 = vld [vmem:[#allocation8 + $0xf0] sm:$0xf]
        %v1459 = vld [vmem:[#allocation8 + $0xf4] sm:$0xf]
        %v1460 = vld [vmem:[#allocation8 + $0xf8] sm:$0xf]
        %v1461 = vld [vmem:[#allocation8 + $0xfc] sm:$0xf]
        %v1462 = vld [vmem:[#allocation8 + $0x100] sm:$0xf]
        %v1463 = vld [vmem:[#allocation8 + $0x104] sm:$0xf]
        %v1464 = vld [vmem:[#allocation8 + $0x108] sm:$0xf]
        %v1465 = vld [vmem:[#allocation8 + $0x10c] sm:$0xf]
        %v1466 = vld [vmem:[#allocation8 + $0x110] sm:$0xf]
        %v1467 = vld [vmem:[#allocation8 + $0x114] sm:$0xf]
        %v1468 = vld [vmem:[#allocation8 + $0x118] sm:$0xf]
        %v1469 = vld [vmem:[#allocation8 + $0x11c] sm:$0xf]
        %v1470 = vld [vmem:[#allocation8 + $0x120] sm:$0xf]
        %v1471 = vld [vmem:[#allocation8 + $0x124] sm:$0xf]
        %v1472 = vld [vmem:[#allocation8 + $0x128] sm:$0xf]
        %v1473 = vld [vmem:[#allocation8 + $0x12c] sm:$0xf]
        %v1474 = vld [vmem:[#allocation8 + $0x130] sm:$0xf]
        %v1475 = vld [vmem:[#allocation8 + $0x134] sm:$0xf]
        %v1476 = vld [vmem:[#allocation8 + $0x138] sm:$0xf]
        %v1477 = vld [vmem:[#allocation8 + $0x13c] sm:$0xf]
        %v1478 = vld [vmem:[#allocation8 + $0x140] sm:$0xf]
        %v1479 = vld [vmem:[#allocation8 + $0x144] sm:$0xf]
        %v1480 = vld [vmem:[#allocation8 + $0x148] sm:$0xf]
        %v1481 = vld [vmem:[#allocation8 + $0x14c] sm:$0xf]
        %v1482 = vld [vmem:[#allocation8 + $0x150] sm:$0xf]
        %v1483 = vld [vmem:[#allocation8 + $0x154] sm:$0xf]
        %v1484 = vld [vmem:[#allocation8 + $0x158] sm:$0xf]
        %v1485 = vld [vmem:[#allocation8 + $0x15c] sm:$0xf]
        %v1486 = vld [vmem:[#allocation8 + $0x160] sm:$0xf]
        %v1487 = vld [vmem:[#allocation8 + $0x164] sm:$0xf]
        %v1488 = vld [vmem:[#allocation8 + $0x168] sm:$0xf]
        %v1489 = vld [vmem:[#allocation8 + $0x16c] sm:$0xf]
        %v1490 = vld [vmem:[#allocation8 + $0x170] sm:$0xf]
        %v1491 = vld [vmem:[#allocation8 + $0x174] sm:$0xf]
        %v1492 = vld [vmem:[#allocation8 + $0x178] sm:$0xf]
        %v1493 = vld [vmem:[#allocation8 + $0x17c] sm:$0xf]
        %v1494 = vld [vmem:[#allocation8 + $0x180] sm:$0xf]
        %v1495 = vld [vmem:[#allocation8 + $0x184] sm:$0xf]
        %v1496 = vld [vmem:[#allocation8 + $0x188] sm:$0xf]
        %v1497 = vld [vmem:[#allocation8 + $0x18c] sm:$0xf]
        %v1498 = vld [vmem:[#allocation8 + $0x190] sm:$0xf]
        %v1499 = vld [vmem:[#allocation8 + $0x194] sm:$0xf]
        %v1500 = vld [vmem:[#allocation8 + $0x198] sm:$0xf]
        %v1501 = vld [vmem:[#allocation8 + $0x19c] sm:$0xf]
        %v1502 = vld [vmem:[#allocation8 + $0x1a0] sm:$0xf]
        %v1503 = vld [vmem:[#allocation8 + $0x1a4] sm:$0xf]
        %v1504 = vld [vmem:[#allocation8 + $0x1a8] sm:$0xf]
        %v1505 = vld [vmem:[#allocation8 + $0x1ac] sm:$0xf]
        %v1506 = vld [vmem:[#allocation8 + $0x1b0] sm:$0xf]
        %v1507 = vld [vmem:[#allocation8 + $0x1b4] sm:$0xf]
        %v1508 = vld [vmem:[#allocation8 + $0x1b8] sm:$0xf]
        %v1509 = vld [vmem:[#allocation8 + $0x1bc] sm:$0xf]
        %v1510 = vld [vmem:[#allocation8 + $0x1c0] sm:$0xf]
        %v1511 = vld [vmem:[#allocation8 + $0x1c4] sm:$0xf]
        %v1512 = vld [vmem:[#allocation8 + $0x1c8] sm:$0xf]
        %v1513 = vld [vmem:[#allocation8 + $0x1cc] sm:$0xf]
        %v1514 = vld [vmem:[#allocation8 + $0x1d0] sm:$0xf]
        %v1515 = vld [vmem:[#allocation8 + $0x1d4] sm:$0xf]
        %v1516 = vld [vmem:[#allocation8 + $0x1d8] sm:$0xf]
        %v1517 = vld [vmem:[#allocation8 + $0x1dc] sm:$0xf]
        %v1518 = vld [vmem:[#allocation8 + $0x1e0] sm:$0xf]
        %v1519 = vld [vmem:[#allocation8 + $0x1e4] sm:$0xf]
        %v1520 = vld [vmem:[#allocation8 + $0x1e8] sm:$0xf]
        %v1521 = vld [vmem:[#allocation8 + $0x1ec] sm:$0xf]
        %v1522 = vld [vmem:[#allocation8 + $0x1f0] sm:$0xf]
        %v1523 = vld [vmem:[#allocation8 + $0x1f4] sm:$0xf]
        %v1524 = vld [vmem:[#allocation8 + $0x1f8] sm:$0xf]
        %v1525 = vld [vmem:[#allocation8 + $0x1fc] sm:$0xf]
        %v1526 = vld [vmem:[#allocation8 + $0x200] sm:$0xf]
        %v1527 = vld [vmem:[#allocation8 + $0x204] sm:$0xf]
        %v1528 = vld [vmem:[#allocation8 + $0x208] sm:$0xf]
        %v1529 = vld [vmem:[#allocation8 + $0x20c] sm:$0xf]
        %v1530 = vld [vmem:[#allocation8 + $0x210] sm:$0xf]
        %v1531 = vld [vmem:[#allocation8 + $0x214] sm:$0xf]
        %v1532 = vld [vmem:[#allocation8 + $0x218] sm:$0xf]
        %v1533 = vld [vmem:[#allocation8 + $0x21c] sm:$0xf]
        %v1534 = vld [vmem:[#allocation8 + $0x220] sm:$0xf]
        %v1535 = vld [vmem:[#allocation8 + $0x224] sm:$0xf]
        %v1536 = vld [vmem:[#allocation8 + $0x228] sm:$0xf]
        %v1537 = vld [vmem:[#allocation8 + $0x22c] sm:$0xf]
        %v1538 = vld [vmem:[#allocation8 + $0x230] sm:$0xf]
        %v1539 = vld [vmem:[#allocation8 + $0x234] sm:$0xf]
        %v1540 = vld [vmem:[#allocation8 + $0x238] sm:$0xf]
        %v1541 = vld [vmem:[#allocation8 + $0x23c] sm:$0xf]
        %vm1575 = vcmask 1040384
        %v1576 = vrot.slane 0.0, 7
        %v1577 = vsel %vm1575, %v1576, %v1576
        %v1578 = vrot.slane %v1366, 7
        %v1579 = vrot.slane %v1367, 7
        %v1580 = vsel %vm1575, %v1578, %v1579
        %v1581 = vrot.slane %v1368, 7
        %v1582 = vrot.slane %v1369, 7
        %v1583 = vsel %vm1575, %v1581, %v1582
        %v1584 = vrot.slane %v1370, 7
        %v1585 = vrot.slane %v1371, 7
        %v1586 = vsel %vm1575, %v1584, %v1585
        %v1587 = vrot.slane %v1372, 7
        %v1588 = vrot.slane %v1373, 7
        %v1589 = vsel %vm1575, %v1587, %v1588
        %v1590 = vrot.slane %v1374, 7
        %v1591 = vrot.slane %v1375, 7
        %v1592 = vsel %vm1575, %v1590, %v1591
        %v1593 = vrot.slane %v1376, 7
        %v1594 = vrot.slane %v1377, 7
        %v1595 = vsel %vm1575, %v1593, %v1594
        %v1596 = vrot.slane %v1378, 7
        %v1597 = vrot.slane %v1379, 7
        %v1598 = vsel %vm1575, %v1596, %v1597
        %v1599 = vrot.slane %v1380, 7
        %v1600 = vrot.slane %v1381, 7
        %v1601 = vsel %vm1575, %v1599, %v1600
        %v1602 = vrot.slane %v1382, 7
        %v1603 = vrot.slane %v1383, 7
        %v1604 = vsel %vm1575, %v1602, %v1603
        %v1605 = vrot.slane %v1384, 7
        %v1606 = vrot.slane %v1385, 7
        %v1607 = vsel %vm1575, %v1605, %v1606
        %v1608 = vrot.slane %v1386, 7
        %v1609 = vrot.slane %v1387, 7
        %v1610 = vsel %vm1575, %v1608, %v1609
        %v1611 = vrot.slane %v1388, 7
        %v1612 = vrot.slane %v1389, 7
        %v1613 = vsel %vm1575, %v1611, %v1612
        %v1614 = vrot.slane %v1390, 7
        %v1615 = vrot.slane %v1391, 7
        %v1616 = vsel %vm1575, %v1614, %v1615
        %v1617 = vrot.slane %v1392, 7
        %v1618 = vrot.slane %v1393, 7
        %v1619 = vsel %vm1575, %v1617, %v1618
        %v1620 = vrot.slane %v1394, 7
        %v1621 = vrot.slane %v1395, 7
        %v1622 = vsel %vm1575, %v1620, %v1621
        %v1623 = vrot.slane %v1396, 7
        %v1624 = vrot.slane %v1397, 7
        %v1625 = vsel %vm1575, %v1623, %v1624
        %v1660 = vsel %vm1575, 0.0, %v1576
        %v1661 = vsel %vm1575, 0.0, %v1578
        %v1662 = vsel %vm1575, 0.0, %v1581
        %v1663 = vsel %vm1575, 0.0, %v1584
        %v1664 = vsel %vm1575, 0.0, %v1587
        %v1665 = vsel %vm1575, 0.0, %v1590
        %v1666 = vsel %vm1575, 0.0, %v1593
        %v1667 = vsel %vm1575, 0.0, %v1596
        %v1668 = vsel %vm1575, 0.0, %v1599
        %v1669 = vsel %vm1575, 0.0, %v1602
        %v1670 = vsel %vm1575, 0.0, %v1605
        %v1671 = vsel %vm1575, 0.0, %v1608
        %v1672 = vsel %vm1575, 0.0, %v1611
        %v1673 = vsel %vm1575, 0.0, %v1614
        %v1674 = vsel %vm1575, 0.0, %v1617
        %v1675 = vsel %vm1575, 0.0, %v1620
        %v1676 = vsel %vm1575, 0.0, %v1623
        %vm1677 = vcmask 1046528
        %v1678 = vrot.slane 0.0, 1
        %v1679 = vsel %vm1677, %v1678, %v1678
        %v1680 = vrot.slane %v1366, 1
        %v1681 = vrot.slane %v1367, 1
        %v1682 = vsel %vm1677, %v1680, %v1681
        %v1683 = vrot.slane %v1368, 1
        %v1684 = vrot.slane %v1369, 1
        %v1685 = vsel %vm1677, %v1683, %v1684
        %v1686 = vrot.slane %v1370, 1
        %v1687 = vrot.slane %v1371, 1
        %v1688 = vsel %vm1677, %v1686, %v1687
        %v1689 = vrot.slane %v1372, 1
        %v1690 = vrot.slane %v1373, 1
        %v1691 = vsel %vm1677, %v1689, %v1690
        %v1692 = vrot.slane %v1374, 1
        %v1693 = vrot.slane %v1375, 1
        %v1694 = vsel %vm1677, %v1692, %v1693
        %v1695 = vrot.slane %v1376, 1
        %v1696 = vrot.slane %v1377, 1
        %v1697 = vsel %vm1677, %v1695, %v1696
        %v1698 = vrot.slane %v1378, 1
        %v1699 = vrot.slane %v1379, 1
        %v1700 = vsel %vm1677, %v1698, %v1699
        %v1701 = vrot.slane %v1380, 1
        %v1702 = vrot.slane %v1381, 1
        %v1703 = vsel %vm1677, %v1701, %v1702
        %v1704 = vrot.slane %v1382, 1
        %v1705 = vrot.slane %v1383, 1
        %v1706 = vsel %vm1677, %v1704, %v1705
        %v1707 = vrot.slane %v1384, 1
        %v1708 = vrot.slane %v1385, 1
        %v1709 = vsel %vm1677, %v1707, %v1708
        %v1710 = vrot.slane %v1386, 1
        %v1711 = vrot.slane %v1387, 1
        %v1712 = vsel %vm1677, %v1710, %v1711
        %v1713 = vrot.slane %v1388, 1
        %v1714 = vrot.slane %v1389, 1
        %v1715 = vsel %vm1677, %v1713, %v1714
        %v1716 = vrot.slane %v1390, 1
        %v1717 = vrot.slane %v1391, 1
        %v1718 = vsel %vm1677, %v1716, %v1717
        %v1719 = vrot.slane %v1392, 1
        %v1720 = vrot.slane %v1393, 1
        %v1721 = vsel %vm1677, %v1719, %v1720
        %v1722 = vrot.slane %v1394, 1
        %v1723 = vrot.slane %v1395, 1
        %v1724 = vsel %vm1677, %v1722, %v1723
        %v1725 = vrot.slane %v1396, 1
        %v1726 = vrot.slane %v1397, 1
        %v1727 = vsel %vm1677, %v1725, %v1726
        %v1762 = vsel %vm1677, %v1678, 0.0
        %v1763 = vsel %vm1677, %v1681, 0.0
        %v1764 = vsel %vm1677, %v1684, 0.0
        %v1765 = vsel %vm1677, %v1687, 0.0
        %v1766 = vsel %vm1677, %v1690, 0.0
        %v1767 = vsel %vm1677, %v1693, 0.0
        %v1768 = vsel %vm1677, %v1696, 0.0
        %v1769 = vsel %vm1677, %v1699, 0.0
        %v1770 = vsel %vm1677, %v1702, 0.0
        %v1771 = vsel %vm1677, %v1705, 0.0
        %v1772 = vsel %vm1677, %v1708, 0.0
        %v1773 = vsel %vm1677, %v1711, 0.0
        %v1774 = vsel %vm1677, %v1714, 0.0
        %v1775 = vsel %vm1677, %v1717, 0.0
        %v1776 = vsel %vm1677, %v1720, 0.0
        %v1777 = vsel %vm1677, %v1723, 0.0
        %v1778 = vsel %vm1677, %v1726, 0.0
        %v1779 = vpack.c.bf16 %v1577, %v1660
        %v1780 = vpack.c.bf16 %v1580, %v1661
        %v1781 = vpack.c.bf16 %v1583, %v1662
        %v1782 = vpack.c.bf16 %v1586, %v1663
        %v1783 = vpack.c.bf16 %v1589, %v1664
        %v1784 = vpack.c.bf16 %v1592, %v1665
        %v1785 = vpack.c.bf16 %v1595, %v1666
        %v1786 = vpack.c.bf16 %v1598, %v1667
        %v1787 = vpack.c.bf16 %v1601, %v1668
        %v1788 = vpack.c.bf16 %v1604, %v1669
        %v1789 = vpack.c.bf16 %v1607, %v1670
        %v1790 = vpack.c.bf16 %v1610, %v1671
        %v1791 = vpack.c.bf16 %v1613, %v1672
        %v1792 = vpack.c.bf16 %v1616, %v1673
        %v1793 = vpack.c.bf16 %v1619, %v1674
        %v1794 = vpack.c.bf16 %v1622, %v1675
        %v1795 = vpack.c.bf16 0.0, 0.0
        %v1796 = vpack.c.bf16 %v1367, %v1366
        %v1797 = vpack.c.bf16 %v1369, %v1368
        %v1798 = vpack.c.bf16 %v1371, %v1370
        %v1799 = vpack.c.bf16 %v1373, %v1372
        %v1800 = vpack.c.bf16 %v1375, %v1374
        %v1801 = vpack.c.bf16 %v1377, %v1376
        %v1802 = vpack.c.bf16 %v1379, %v1378
        %v1803 = vpack.c.bf16 %v1381, %v1380
        %v1804 = vpack.c.bf16 %v1383, %v1382
        %v1805 = vpack.c.bf16 %v1385, %v1384
        %v1806 = vpack.c.bf16 %v1387, %v1386
        %v1807 = vpack.c.bf16 %v1389, %v1388
        %v1808 = vpack.c.bf16 %v1391, %v1390
        %v1809 = vpack.c.bf16 %v1393, %v1392
        %v1810 = vpack.c.bf16 %v1395, %v1394
        %v1811 = vpack.c.bf16 %v1762, %v1679
        %v1812 = vpack.c.bf16 %v1763, %v1682
        %v1813 = vpack.c.bf16 %v1764, %v1685
        %v1814 = vpack.c.bf16 %v1765, %v1688
        %v1815 = vpack.c.bf16 %v1766, %v1691
        %v1816 = vpack.c.bf16 %v1767, %v1694
        %v1817 = vpack.c.bf16 %v1768, %v1697
        %v1818 = vpack.c.bf16 %v1769, %v1700
        %v1819 = vpack.c.bf16 %v1770, %v1703
        %v1820 = vpack.c.bf16 %v1771, %v1706
        %v1821 = vpack.c.bf16 %v1772, %v1709
        %v1822 = vpack.c.bf16 %v1773, %v1712
        %v1823 = vpack.c.bf16 %v1774, %v1715
        %v1824 = vpack.c.bf16 %v1775, %v1718
        %v1825 = vpack.c.bf16 %v1776, %v1721
        %v1826 = vpack.c.bf16 %v1777, %v1724
        %v1827 = vpack.c.bf16 %v1625, %v1676
        %v1828 = vpack.c.bf16 %v1397, %v1396
        %v1829 = vpack.c.bf16 %v1778, %v1727
        %v1830 = vld [vmem:[%s6] sm:$0x1]
        %v1832 = vlaneseq
        %v1833 = vshrl.u32 %v1832, 7
        %v1834 = vsub.s32 0, %v1833
        %v1835 = vrot.slane %v1830, %v1834
        %v1981 = vunpack.c.l.b16 %v1398
        %v1982 = vunpack.c.l.b16 %v1399
        %v1983 = vunpack.c.l.b16 %v1400
        %v1984 = vunpack.c.l.b16 %v1401
        %v1985 = vunpack.c.l.b16 %v1402
        %v1986 = vunpack.c.l.b16 %v1403
        %v1987 = vunpack.c.l.b16 %v1404
        %v1988 = vunpack.c.l.b16 %v1405
        %v1989 = vunpack.c.l.b16 %v1406
        %v1990 = vunpack.c.l.b16 %v1407
        %v1991 = vunpack.c.l.b16 %v1408
        %v1992 = vunpack.c.l.b16 %v1409
        %v1993 = vunpack.c.l.b16 %v1410
        %v1994 = vunpack.c.l.b16 %v1411
        %v1995 = vunpack.c.l.b16 %v1412
        %v1996 = vunpack.c.l.b16 %v1413
        %v1997 = vunpack.c.l.b16 %v1414
        %v1998 = vunpack.c.l.b16 %v1415
        %v1999 = vunpack.c.l.b16 %v1416
        %v2000 = vunpack.c.l.b16 %v1417
        %v2001 = vunpack.c.l.b16 %v1418
        %v2002 = vunpack.c.l.b16 %v1419
        %v2003 = vunpack.c.l.b16 %v1420
        %v2004 = vunpack.c.l.b16 %v1421
        %v2005 = vunpack.c.l.b16 %v1422
        %v2006 = vunpack.c.l.b16 %v1423
        %v2007 = vunpack.c.l.b16 %v1424
        %v2008 = vunpack.c.l.b16 %v1425
        %v2009 = vunpack.c.l.b16 %v1426
        %v2010 = vunpack.c.l.b16 %v1427
        %v2011 = vunpack.c.l.b16 %v1428
        %v2012 = vunpack.c.l.b16 %v1429
        %v2013 = vunpack.c.l.b16 %v1430
        %v2014 = vunpack.c.l.b16 %v1431
        %v2015 = vunpack.c.l.b16 %v1432
        %v2016 = vunpack.c.l.b16 %v1433
        %v2017 = vunpack.c.l.b16 %v1434
        %v2018 = vunpack.c.l.b16 %v1435
        %v2019 = vunpack.c.l.b16 %v1436
        %v2020 = vunpack.c.l.b16 %v1437
        %v2021 = vunpack.c.l.b16 %v1438
        %v2022 = vunpack.c.l.b16 %v1439
        %v2023 = vunpack.c.l.b16 %v1440
        %v2024 = vunpack.c.l.b16 %v1441
        %v2025 = vunpack.c.l.b16 %v1442
        %v2026 = vunpack.c.l.b16 %v1443
        %v2027 = vunpack.c.l.b16 %v1444
        %v2028 = vunpack.c.l.b16 %v1445
        %v2029 = vunpack.c.l.b16 %v1446
        %v2030 = vunpack.c.l.b16 %v1447
        %v2031 = vunpack.c.l.b16 %v1448
        %v2032 = vunpack.c.l.b16 %v1449
        %v2033 = vunpack.c.l.b16 %v1450
        %v2034 = vunpack.c.l.b16 %v1451
        %v2035 = vunpack.c.l.b16 %v1452
        %v2036 = vunpack.c.l.b16 %v1453
        %v2037 = vunpack.c.l.b16 %v1454
        %v2038 = vunpack.c.l.b16 %v1455
        %v2039 = vunpack.c.l.b16 %v1456
        %v2040 = vunpack.c.l.b16 %v1457
        %v2041 = vunpack.c.l.b16 %v1458
        %v2042 = vunpack.c.l.b16 %v1459
        %v2043 = vunpack.c.l.b16 %v1460
        %v2044 = vunpack.c.l.b16 %v1461
        %v2045 = vunpack.c.l.b16 %v1462
        %v2046 = vunpack.c.l.b16 %v1463
        %v2047 = vunpack.c.l.b16 %v1464
        %v2048 = vunpack.c.l.b16 %v1465
        %v2049 = vunpack.c.l.b16 %v1466
        %v2050 = vunpack.c.l.b16 %v1467
        %v2051 = vunpack.c.l.b16 %v1468
        %v2052 = vunpack.c.l.b16 %v1469
        %v2053 = vunpack.c.l.b16 %v1470
        %v2054 = vunpack.c.l.b16 %v1471
        %v2055 = vunpack.c.l.b16 %v1472
        %v2056 = vunpack.c.l.b16 %v1473
        %v2057 = vunpack.c.l.b16 %v1474
        %v2058 = vunpack.c.l.b16 %v1475
        %v2059 = vunpack.c.l.b16 %v1476
        %v2060 = vunpack.c.l.b16 %v1477
        %v2061 = vunpack.c.l.b16 %v1478
        %v2062 = vunpack.c.l.b16 %v1479
        %v2063 = vunpack.c.l.b16 %v1480
        %v2064 = vunpack.c.l.b16 %v1481
        %v2065 = vunpack.c.l.b16 %v1482
        %v2066 = vunpack.c.l.b16 %v1483
        %v2067 = vunpack.c.l.b16 %v1484
        %v2068 = vunpack.c.l.b16 %v1485
        %v2069 = vunpack.c.l.b16 %v1486
        %v2070 = vunpack.c.l.b16 %v1487
        %v2071 = vunpack.c.l.b16 %v1488
        %v2072 = vunpack.c.l.b16 %v1489
        %v2073 = vunpack.c.l.b16 %v1490
        %v2074 = vunpack.c.l.b16 %v1491
        %v2075 = vunpack.c.l.b16 %v1492
        %v2076 = vunpack.c.l.b16 %v1493
        %v2077 = vunpack.c.l.b16 %v1494
        %v2078 = vunpack.c.l.b16 %v1495
        %v2079 = vunpack.c.l.b16 %v1496
        %v2080 = vunpack.c.l.b16 %v1497
        %v2081 = vunpack.c.l.b16 %v1498
        %v2082 = vunpack.c.l.b16 %v1499
        %v2083 = vunpack.c.l.b16 %v1500
        %v2084 = vunpack.c.l.b16 %v1501
        %v2085 = vunpack.c.l.b16 %v1502
        %v2086 = vunpack.c.l.b16 %v1503
        %v2087 = vunpack.c.l.b16 %v1504
        %v2088 = vunpack.c.l.b16 %v1505
        %v2089 = vunpack.c.l.b16 %v1506
        %v2090 = vunpack.c.l.b16 %v1507
        %v2091 = vunpack.c.l.b16 %v1508
        %v2092 = vunpack.c.l.b16 %v1509
        %v2093 = vunpack.c.l.b16 %v1510
        %v2094 = vunpack.c.l.b16 %v1511
        %v2095 = vunpack.c.l.b16 %v1512
        %v2096 = vunpack.c.l.b16 %v1513
        %v2097 = vunpack.c.l.b16 %v1514
        %v2098 = vunpack.c.l.b16 %v1515
        %v2099 = vunpack.c.l.b16 %v1516
        %v2100 = vunpack.c.l.b16 %v1517
        %v2101 = vunpack.c.l.b16 %v1518
        %v2102 = vunpack.c.l.b16 %v1519
        %v2103 = vunpack.c.l.b16 %v1520
        %v2104 = vunpack.c.l.b16 %v1521
        %v2105 = vunpack.c.l.b16 %v1522
        %v2106 = vunpack.c.l.b16 %v1523
        %v2107 = vunpack.c.l.b16 %v1524
        %v2108 = vunpack.c.l.b16 %v1525
        %v2109 = vunpack.c.l.b16 %v1526
        %v2110 = vunpack.c.l.b16 %v1527
        %v2111 = vunpack.c.l.b16 %v1528
        %v2112 = vunpack.c.l.b16 %v1529
        %v2113 = vunpack.c.l.b16 %v1530
        %v2114 = vunpack.c.l.b16 %v1531
        %v2115 = vunpack.c.l.b16 %v1532
        %v2116 = vunpack.c.l.b16 %v1533
        %v2117 = vunpack.c.l.b16 %v1534
        %v2118 = vunpack.c.l.b16 %v1535
        %v2119 = vunpack.c.l.b16 %v1536
        %v2120 = vunpack.c.l.b16 %v1537
        %v2121 = vunpack.c.l.b16 %v1538
        %v2122 = vunpack.c.l.b16 %v1539
        %v2123 = vunpack.c.l.b16 %v1540
        %v2124 = vunpack.c.l.b16 %v1541
        %v2125 = vpack.c.b16 %v1982, %v1981
        %v2126 = vpack.c.b16 %v1984, %v1983
        %v2127 = vpack.c.b16 %v1986, %v1985
        %v2128 = vpack.c.b16 %v1988, %v1987
        %v2129 = vpack.c.b16 %v1990, %v1989
        %v2130 = vpack.c.b16 %v1992, %v1991
        %v2131 = vpack.c.b16 %v1994, %v1993
        %v2132 = vpack.c.b16 %v1996, %v1995
        %v2133 = vpack.c.b16 %v1998, %v1997
        %v2134 = vpack.c.b16 %v2000, %v1999
        %v2135 = vpack.c.b16 %v2002, %v2001
        %v2136 = vpack.c.b16 %v2004, %v2003
        %v2137 = vpack.c.b16 %v2006, %v2005
        %v2138 = vpack.c.b16 %v2008, %v2007
        %v2139 = vpack.c.b16 %v2010, %v2009
        %v2140 = vpack.c.b16 %v2012, %v2011
        %v2141 = vpack.c.b16 %v2014, %v2013
        %v2142 = vpack.c.b16 %v2016, %v2015
        %v2143 = vpack.c.b16 %v2018, %v2017
        %v2144 = vpack.c.b16 %v2020, %v2019
        %v2145 = vpack.c.b16 %v2022, %v2021
        %v2146 = vpack.c.b16 %v2024, %v2023
        %v2147 = vpack.c.b16 %v2026, %v2025
        %v2148 = vpack.c.b16 %v2028, %v2027
        %v2149 = vpack.c.b16 %v2030, %v2029
        %v2150 = vpack.c.b16 %v2032, %v2031
        %v2151 = vpack.c.b16 %v2034, %v2033
        %v2152 = vpack.c.b16 %v2036, %v2035
        %v2153 = vpack.c.b16 %v2038, %v2037
        %v2154 = vpack.c.b16 %v2040, %v2039
        %v2155 = vpack.c.b16 %v2042, %v2041
        %v2156 = vpack.c.b16 %v2044, %v2043
        %v2157 = vpack.c.b16 %v2046, %v2045
        %v2158 = vpack.c.b16 %v2048, %v2047
        %v2159 = vpack.c.b16 %v2050, %v2049
        %v2160 = vpack.c.b16 %v2052, %v2051
        %v2161 = vpack.c.b16 %v2054, %v2053
        %v2162 = vpack.c.b16 %v2056, %v2055
        %v2163 = vpack.c.b16 %v2058, %v2057
        %v2164 = vpack.c.b16 %v2060, %v2059
        %v2165 = vpack.c.b16 %v2062, %v2061
        %v2166 = vpack.c.b16 %v2064, %v2063
        %v2167 = vpack.c.b16 %v2066, %v2065
        %v2168 = vpack.c.b16 %v2068, %v2067
        %v2169 = vpack.c.b16 %v2070, %v2069
        %v2170 = vpack.c.b16 %v2072, %v2071
        %v2171 = vpack.c.b16 %v2074, %v2073
        %v2172 = vpack.c.b16 %v2076, %v2075
        %v2173 = vpack.c.b16 %v2078, %v2077
        %v2174 = vpack.c.b16 %v2080, %v2079
        %v2175 = vpack.c.b16 %v2082, %v2081
        %v2176 = vpack.c.b16 %v2084, %v2083
        %v2177 = vpack.c.b16 %v2086, %v2085
        %v2178 = vpack.c.b16 %v2088, %v2087
        %v2179 = vpack.c.b16 %v2090, %v2089
        %v2180 = vpack.c.b16 %v2092, %v2091
        %v2181 = vpack.c.b16 %v2094, %v2093
        %v2182 = vpack.c.b16 %v2096, %v2095
        %v2183 = vpack.c.b16 %v2098, %v2097
        %v2184 = vpack.c.b16 %v2100, %v2099
        %v2185 = vpack.c.b16 %v2102, %v2101
        %v2186 = vpack.c.b16 %v2104, %v2103
        %v2187 = vpack.c.b16 %v2106, %v2105
        %v2188 = vpack.c.b16 %v2108, %v2107
        %v2189 = vpack.c.b16 %v2110, %v2109
        %v2190 = vpack.c.b16 %v2112, %v2111
        %v2191 = vpack.c.b16 %v2114, %v2113
        %v2192 = vpack.c.b16 %v2116, %v2115
        %v2193 = vpack.c.b16 %v2118, %v2117
        %v2194 = vpack.c.b16 %v2120, %v2119
        %v2195 = vpack.c.b16 %v2122, %v2121
        %v2196 = vpack.c.b16 %v2124, %v2123
        %2269 = vmatprep.subr.bf16.mxu0 0
        %2270 = vmatpush1.bf16.msra.mxu0 %v2125
        %2271 = vmatprep.subr.bf16.mxu0 0
        %2272 = vmatpush1.bf16.msra.mxu0 %v2126
        %2273 = vmatprep.subr.bf16.mxu0 0
        %2274 = vmatpush1.bf16.msra.mxu0 %v2127
        %2275 = vmatprep.subr.bf16.mxu0 0
        %2276 = vmatpush1.bf16.msra.mxu0 %v2128
        %2277 = vmatprep.subr.bf16.mxu0 0
        %2278 = vmatpush1.bf16.msra.mxu0 %v2129
        %2279 = vmatprep.subr.bf16.mxu0 0
        %2280 = vmatpush1.bf16.msra.mxu0 %v2130
        %2281 = vmatprep.subr.bf16.mxu0 0
        %2282 = vmatpush1.bf16.msra.mxu0 %v2131
        %2283 = vmatprep.subr.bf16.mxu0 0
        %2284 = vmatpush1.bf16.msra.mxu0 %v2132
        %2285 = vmatprep.subr.bf16.mxu0 0
        %2286 = vmatpush1.bf16.msra.mxu0 %v2133
        %2287 = vmatprep.subr.bf16.mxu0 0
        %2288 = vmatpush1.bf16.msra.mxu0 %v2134
        %2289 = vmatprep.subr.bf16.mxu0 0
        %2290 = vmatpush1.bf16.msra.mxu0 %v2135
        %2291 = vmatprep.subr.bf16.mxu0 0
        %2292 = vmatpush1.bf16.msra.mxu0 %v2136
        %2293 = vmatprep.subr.bf16.mxu0 0
        %2294 = vmatpush1.bf16.msra.mxu0 %v2137
        %2295 = vmatprep.subr.bf16.mxu0 0
        %2296 = vmatpush1.bf16.msra.mxu0 %v2138
        %2297 = vmatprep.subr.bf16.mxu0 0
        %2298 = vmatpush1.bf16.msra.mxu0 %v2139
        %2299 = vmatprep.subr.bf16.mxu0 0
        %2300 = vmatpush1.bf16.msra.mxu0 %v2140
        %2301 = vmatprep.mubr.bf16.mxu0 %v1795
        %2302 = vmatmul.mubr.bf16.gmra.mrb[0].mxu0 %v1779
        %v2303 = vpop.f32.mrb[0].mxu0
        %v2304 = vadd.f32 %v1835, %v2303
        %v2305 = vpop.f32.mrb[0].mxu0
        %v2306 = vpop.f32.mrb[0].mxu0
        %v2307 = vadd.f32 %v1835, %v2306
        %v2308 = vpop.f32.mrb[0].mxu0
        %2309 = vmatprep.mubr.bf16.mxu0 %v1796
        %2310 = vmatmul.mubr.bf16.gmra.mrb[0].mxu0 %v1780
        %v2311 = vpop.f32.mrb[0].mxu0
        %v2312 = vadd.f32 %v1835, %v2311
        %v2313 = vpop.f32.mrb[0].mxu0
        %v2314 = vpop.f32.mrb[0].mxu0
        %v2315 = vadd.f32 %v1835, %v2314
        %v2316 = vpop.f32.mrb[0].mxu0
        %2317 = vmatprep.mubr.bf16.mxu0 %v1797
        %2318 = vmatmul.mubr.bf16.gmra.mrb[0].mxu0 %v1781
        %v2319 = vpop.f32.mrb[0].mxu0
        %v2320 = vadd.f32 %v1835, %v2319
        %v2321 = vpop.f32.mrb[0].mxu0
        %v2322 = vpop.f32.mrb[0].mxu0
        %v2323 = vadd.f32 %v1835, %v2322
        %v2324 = vpop.f32.mrb[0].mxu0
        %2325 = vmatprep.mubr.bf16.mxu0 %v1798
        %2326 = vmatmul.mubr.bf16.gmra.mrb[0].mxu0 %v1782
        %v2327 = vpop.f32.mrb[0].mxu0
        %v2328 = vadd.f32 %v1835, %v2327
        %v2329 = vpop.f32.mrb[0].mxu0
        %v2330 = vpop.f32.mrb[0].mxu0
        %v2331 = vadd.f32 %v1835, %v2330
        %v2332 = vpop.f32.mrb[0].mxu0
        %2333 = vmatprep.mubr.bf16.mxu0 %v1799
        %2334 = vmatmul.mubr.bf16.gmra.mrb[0].mxu0 %v1783
        %v2335 = vpop.f32.mrb[0].mxu0
        %v2336 = vadd.f32 %v1835, %v2335
        %v2337 = vpop.f32.mrb[0].mxu0
        %v2338 = vpop.f32.mrb[0].mxu0
        %v2339 = vadd.f32 %v1835, %v2338
        %v2340 = vpop.f32.mrb[0].mxu0
        %2341 = vmatprep.mubr.bf16.mxu0 %v1800
        %2342 = vmatmul.mubr.bf16.gmra.mrb[0].mxu0 %v1784
        %v2343 = vpop.f32.mrb[0].mxu0
        %v2344 = vadd.f32 %v1835, %v2343
        %v2345 = vpop.f32.mrb[0].mxu0
        %v2346 = vpop.f32.mrb[0].mxu0
        %v2347 = vadd.f32 %v1835, %v2346
        %v2348 = vpop.f32.mrb[0].mxu0
        %2349 = vmatprep.mubr.bf16.mxu0 %v1801
        %2350 = vmatmul.mubr.bf16.gmra.mrb[0].mxu0 %v1785
        %v2351 = vpop.f32.mrb[0].mxu0
        %v2352 = vadd.f32 %v1835, %v2351
        %v2353 = vpop.f32.mrb[0].mxu0
        %v2354 = vpop.f32.mrb[0].mxu0
        %v2355 = vadd.f32 %v1835, %v2354
        %v2356 = vpop.f32.mrb[0].mxu0
        %2357 = vmatprep.mubr.bf16.mxu0 %v1802
        %2358 = vmatmul.mubr.bf16.gmra.mrb[0].mxu0 %v1786
        %v2359 = vpop.f32.mrb[0].mxu0
        %v2360 = vadd.f32 %v1835, %v2359
        %v2361 = vpop.f32.mrb[0].mxu0
        %v2362 = vpop.f32.mrb[0].mxu0
        %v2363 = vadd.f32 %v1835, %v2362
        %v2364 = vpop.f32.mrb[0].mxu0
        %2365 = vmatprep.mubr.bf16.mxu0 %v1803
        %2366 = vmatmul.mubr.bf16.gmra.mrb[0].mxu0 %v1787
        %v2367 = vpop.f32.mrb[0].mxu0
        %v2368 = vadd.f32 %v1835, %v2367
        %v2369 = vpop.f32.mrb[0].mxu0
        %v2370 = vpop.f32.mrb[0].mxu0
        %v2371 = vadd.f32 %v1835, %v2370
        %v2372 = vpop.f32.mrb[0].mxu0
        %2373 = vmatprep.mubr.bf16.mxu0 %v1804
        %2374 = vmatmul.mubr.bf16.gmra.mrb[0].mxu0 %v1788
        %v2375 = vpop.f32.mrb[0].mxu0
        %v2376 = vadd.f32 %v1835, %v2375
        %v2377 = vpop.f32.mrb[0].mxu0
        %v2378 = vpop.f32.mrb[0].mxu0
        %v2379 = vadd.f32 %v1835, %v2378
        %v2380 = vpop.f32.mrb[0].mxu0
        %2381 = vmatprep.mubr.bf16.mxu0 %v1805
        %2382 = vmatmul.mubr.bf16.gmra.mrb[0].mxu0 %v1789
        %v2383 = vpop.f32.mrb[0].mxu0
        %v2384 = vadd.f32 %v1835, %v2383
        %v2385 = vpop.f32.mrb[0].mxu0
        %v2386 = vpop.f32.mrb[0].mxu0
        %v2387 = vadd.f32 %v1835, %v2386
        %v2388 = vpop.f32.mrb[0].mxu0
        %2389 = vmatprep.mubr.bf16.mxu0 %v1806
        %2390 = vmatmul.mubr.bf16.gmra.mrb[0].mxu0 %v1790
        %v2391 = vpop.f32.mrb[0].mxu0
        %v2392 = vadd.f32 %v1835, %v2391
        %v2393 = vpop.f32.mrb[0].mxu0
        %v2394 = vpop.f32.mrb[0].mxu0
        %v2395 = vadd.f32 %v1835, %v2394
        %v2396 = vpop.f32.mrb[0].mxu0
        %2397 = vmatprep.mubr.bf16.mxu0 %v1807
        %2398 = vmatmul.mubr.bf16.gmra.mrb[0].mxu0 %v1791
        %v2399 = vpop.f32.mrb[0].mxu0
        %v2400 = vadd.f32 %v1835, %v2399
        %v2401 = vpop.f32.mrb[0].mxu0
        %v2402 = vpop.f32.mrb[0].mxu0
        %v2403 = vadd.f32 %v1835, %v2402
        %v2404 = vpop.f32.mrb[0].mxu0
        %2405 = vmatprep.mubr.bf16.mxu0 %v1808
        %2406 = vmatmul.mubr.bf16.gmra.mrb[0].mxu0 %v1792
        %v2407 = vpop.f32.mrb[0].mxu0
        %v2408 = vadd.f32 %v1835, %v2407
        %v2409 = vpop.f32.mrb[0].mxu0
        %v2410 = vpop.f32.mrb[0].mxu0
        %v2411 = vadd.f32 %v1835, %v2410
        %v2412 = vpop.f32.mrb[0].mxu0
        %2413 = vmatprep.mubr.bf16.mxu0 %v1809
        %2414 = vmatmul.mubr.bf16.gmra.mrb[0].mxu0 %v1793
        %v2415 = vpop.f32.mrb[0].mxu0
        %v2416 = vadd.f32 %v1835, %v2415
        %v2417 = vpop.f32.mrb[0].mxu0
        %v2418 = vpop.f32.mrb[0].mxu0
        %v2419 = vadd.f32 %v1835, %v2418
        %v2420 = vpop.f32.mrb[0].mxu0
        %2421 = vmatprep.mubr.bf16.mxu0 %v1810
        %2422 = vmatmul.mubr.bf16.gmra.mrb[0].mxu0 %v1794
        %v2423 = vpop.f32.mrb[0].mxu0
        %v2424 = vadd.f32 %v1835, %v2423
        %v2425 = vpop.f32.mrb[0].mxu0
        %v2426 = vpop.f32.mrb[0].mxu0
        %v2427 = vadd.f32 %v1835, %v2426
        %v2428 = vpop.f32.mrb[0].mxu0
        %2429 = vdwg.mxu0
        %2430 = vmatprep.subr.bf16.mxu0 0
        %2431 = vmatpush1.bf16.msra.mxu0 %v2141
        %2432 = vmatprep.subr.bf16.mxu0 0
        %2433 = vmatpush1.bf16.msra.mxu0 %v2142
        %2434 = vmatprep.subr.bf16.mxu0 0
        %2435 = vmatpush1.bf16.msra.mxu0 %v2143
        %2436 = vmatprep.subr.bf16.mxu0 0
        %2437 = vmatpush1.bf16.msra.mxu0 %v2144
        %2438 = vmatprep.subr.bf16.mxu0 0
        %2439 = vmatpush1.bf16.msra.mxu0 %v2145
        %2440 = vmatprep.subr.bf16.mxu0 0
        %2441 = vmatpush1.bf16.msra.mxu0 %v2146
        %2442 = vmatprep.subr.bf16.mxu0 0
        %2443 = vmatpush1.bf16.msra.mxu0 %v2147
        %2444 = vmatprep.subr.bf16.mxu0 0
        %2445 = vmatpush1.bf16.msra.mxu0 %v2148
        %2446 = vmatprep.subr.bf16.mxu0 0
        %2447 = vmatpush1.bf16.msra.mxu0 %v2149
        %2448 = vmatprep.subr.bf16.mxu0 0
        %2449 = vmatpush1.bf16.msra.mxu0 %v2150
        %2450 = vmatprep.subr.bf16.mxu0 0
        %2451 = vmatpush1.bf16.msra.mxu0 %v2151
        %2452 = vmatprep.subr.bf16.mxu0 0
        %2453 = vmatpush1.bf16.msra.mxu0 %v2152
        %2454 = vmatprep.subr.bf16.mxu0 0
        %2455 = vmatpush1.bf16.msra.mxu0 %v2153
        %2456 = vmatprep.subr.bf16.mxu0 0
        %2457 = vmatpush1.bf16.msra.mxu0 %v2154
        %2458 = vmatprep.subr.bf16.mxu0 0
        %2459 = vmatpush1.bf16.msra.mxu0 %v2155
        %2460 = vmatprep.subr.bf16.mxu0 0
        %2461 = vmatpush1.bf16.msra.mxu0 %v2156
        %2462 = vmatprep.mubr.bf16.mxu0 %v1780
        %2463 = vmatmul.mubr.bf16.gmra.mrb[0].mxu0 %v1811
        %v2464 = vpop.f32.mrb[0].mxu0
        %v2465 = vadd.f32 %v2304, %v2464
        %v2466 = vpop.f32.mrb[0].mxu0
        %v2467 = vpop.f32.mrb[0].mxu0
        %v2468 = vadd.f32 %v2307, %v2467
        %v2469 = vpop.f32.mrb[0].mxu0
        %2470 = vmatprep.mubr.bf16.mxu0 %v1781
        %2471 = vmatmul.mubr.bf16.gmra.mrb[0].mxu0 %v1812
        %v2472 = vpop.f32.mrb[0].mxu0
        %v2473 = vadd.f32 %v2312, %v2472
        %v2474 = vpop.f32.mrb[0].mxu0
        %v2475 = vpop.f32.mrb[0].mxu0
        %v2476 = vadd.f32 %v2315, %v2475
        %v2477 = vpop.f32.mrb[0].mxu0
        %2478 = vmatprep.mubr.bf16.mxu0 %v1782
        %2479 = vmatmul.mubr.bf16.gmra.mrb[0].mxu0 %v1813
        %v2480 = vpop.f32.mrb[0].mxu0
        %v2481 = vadd.f32 %v2320, %v2480
        %v2482 = vpop.f32.mrb[0].mxu0
        %v2483 = vpop.f32.mrb[0].mxu0
        %v2484 = vadd.f32 %v2323, %v2483
        %v2485 = vpop.f32.mrb[0].mxu0
        %2486 = vmatprep.mubr.bf16.mxu0 %v1783
        %2487 = vmatmul.mubr.bf16.gmra.mrb[0].mxu0 %v1814
        %v2488 = vpop.f32.mrb[0].mxu0
        %v2489 = vadd.f32 %v2328, %v2488
        %v2490 = vpop.f32.mrb[0].mxu0
        %v2491 = vpop.f32.mrb[0].mxu0
        %v2492 = vadd.f32 %v2331, %v2491
        %v2493 = vpop.f32.mrb[0].mxu0
        %2494 = vmatprep.mubr.bf16.mxu0 %v1784
        %2495 = vmatmul.mubr.bf16.gmra.mrb[0].mxu0 %v1815
        %v2496 = vpop.f32.mrb[0].mxu0
        %v2497 = vadd.f32 %v2336, %v2496
        %v2498 = vpop.f32.mrb[0].mxu0
        %v2499 = vpop.f32.mrb[0].mxu0
        %v2500 = vadd.f32 %v2339, %v2499
        %v2501 = vpop.f32.mrb[0].mxu0
        %2502 = vmatprep.mubr.bf16.mxu0 %v1785
        %2503 = vmatmul.mubr.bf16.gmra.mrb[0].mxu0 %v1816
        %v2504 = vpop.f32.mrb[0].mxu0
        %v2505 = vadd.f32 %v2344, %v2504
        %v2506 = vpop.f32.mrb[0].mxu0
        %v2507 = vpop.f32.mrb[0].mxu0
        %v2508 = vadd.f32 %v2347, %v2507
        %v2509 = vpop.f32.mrb[0].mxu0
        %2510 = vmatprep.mubr.bf16.mxu0 %v1786
        %2511 = vmatmul.mubr.bf16.gmra.mrb[0].mxu0 %v1817
        %v2512 = vpop.f32.mrb[0].mxu0
        %v2513 = vadd.f32 %v2352, %v2512
        %v2514 = vpop.f32.mrb[0].mxu0
        %v2515 = vpop.f32.mrb[0].mxu0
        %v2516 = vadd.f32 %v2355, %v2515
        %v2517 = vpop.f32.mrb[0].mxu0
        %2518 = vmatprep.mubr.bf16.mxu0 %v1787
        %2519 = vmatmul.mubr.bf16.gmra.mrb[0].mxu0 %v1818
        %v2520 = vpop.f32.mrb[0].mxu0
        %v2521 = vadd.f32 %v2360, %v2520
        %v2522 = vpop.f32.mrb[0].mxu0
        %v2523 = vpop.f32.mrb[0].mxu0
        %v2524 = vadd.f32 %v2363, %v2523
        %v2525 = vpop.f32.mrb[0].mxu0
        %2526 = vmatprep.mubr.bf16.mxu0 %v1788
        %2527 = vmatmul.mubr.bf16.gmra.mrb[0].mxu0 %v1819
        %v2528 = vpop.f32.mrb[0].mxu0
        %v2529 = vadd.f32 %v2368, %v2528
        %v2530 = vpop.f32.mrb[0].mxu0
        %v2531 = vpop.f32.mrb[0].mxu0
        %v2532 = vadd.f32 %v2371, %v2531
        %v2533 = vpop.f32.mrb[0].mxu0
        %2534 = vmatprep.mubr.bf16.mxu0 %v1789
        %2535 = vmatmul.mubr.bf16.gmra.mrb[0].mxu0 %v1820
        %v2536 = vpop.f32.mrb[0].mxu0
        %v2537 = vadd.f32 %v2376, %v2536
        %v2538 = vpop.f32.mrb[0].mxu0
        %v2539 = vpop.f32.mrb[0].mxu0
        %v2540 = vadd.f32 %v2379, %v2539
        %v2541 = vpop.f32.mrb[0].mxu0
        %2542 = vmatprep.mubr.bf16.mxu0 %v1790
        %2543 = vmatmul.mubr.bf16.gmra.mrb[0].mxu0 %v1821
        %v2544 = vpop.f32.mrb[0].mxu0
        %v2545 = vadd.f32 %v2384, %v2544
        %v2546 = vpop.f32.mrb[0].mxu0
        %v2547 = vpop.f32.mrb[0].mxu0
        %v2548 = vadd.f32 %v2387, %v2547
        %v2549 = vpop.f32.mrb[0].mxu0
        %2550 = vmatprep.mubr.bf16.mxu0 %v1791
        %2551 = vmatmul.mubr.bf16.gmra.mrb[0].mxu0 %v1822
        %v2552 = vpop.f32.mrb[0].mxu0
        %v2553 = vadd.f32 %v2392, %v2552
        %v2554 = vpop.f32.mrb[0].mxu0
        %v2555 = vpop.f32.mrb[0].mxu0
        %v2556 = vadd.f32 %v2395, %v2555
        %v2557 = vpop.f32.mrb[0].mxu0
        %2558 = vmatprep.mubr.bf16.mxu0 %v1792
        %2559 = vmatmul.mubr.bf16.gmra.mrb[0].mxu0 %v1823
        %v2560 = vpop.f32.mrb[0].mxu0
        %v2561 = vadd.f32 %v2400, %v2560
        %v2562 = vpop.f32.mrb[0].mxu0
        %v2563 = vpop.f32.mrb[0].mxu0
        %v2564 = vadd.f32 %v2403, %v2563
        %v2565 = vpop.f32.mrb[0].mxu0
        %2566 = vmatprep.mubr.bf16.mxu0 %v1793
        %2567 = vmatmul.mubr.bf16.gmra.mrb[0].mxu0 %v1824
        %v2568 = vpop.f32.mrb[0].mxu0
        %v2569 = vadd.f32 %v2408, %v2568
        %v2570 = vpop.f32.mrb[0].mxu0
        %v2571 = vpop.f32.mrb[0].mxu0
        %v2572 = vadd.f32 %v2411, %v2571
        %v2573 = vpop.f32.mrb[0].mxu0
        %2574 = vmatprep.mubr.bf16.mxu0 %v1794
        %2575 = vmatmul.mubr.bf16.gmra.mrb[0].mxu0 %v1825
        %v2576 = vpop.f32.mrb[0].mxu0
        %v2577 = vadd.f32 %v2416, %v2576
        %v2578 = vpop.f32.mrb[0].mxu0
        %v2579 = vpop.f32.mrb[0].mxu0
        %v2580 = vadd.f32 %v2419, %v2579
        %v2581 = vpop.f32.mrb[0].mxu0
        %2582 = vmatprep.mubr.bf16.mxu0 %v1827
        %2583 = vmatmul.mubr.bf16.gmra.mrb[0].mxu0 %v1826
        %v2584 = vpop.f32.mrb[0].mxu0
        %v2585 = vadd.f32 %v2424, %v2584
        %v2586 = vpop.f32.mrb[0].mxu0
        %v2587 = vpop.f32.mrb[0].mxu0
        %v2588 = vadd.f32 %v2427, %v2587
        %v2589 = vpop.f32.mrb[0].mxu0
        %2590 = vdwg.mxu0
        %2591 = vmatprep.subr.bf16.mxu0 0
        %2592 = vmatpush1.bf16.msra.mxu0 %v2157
        %2593 = vmatprep.subr.bf16.mxu0 0
        %2594 = vmatpush1.bf16.msra.mxu0 %v2158
        %2595 = vmatprep.subr.bf16.mxu0 0
        %2596 = vmatpush1.bf16.msra.mxu0 %v2159
        %2597 = vmatprep.subr.bf16.mxu0 0
        %2598 = vmatpush1.bf16.msra.mxu0 %v2160
        %2599 = vmatprep.subr.bf16.mxu0 0
        %2600 = vmatpush1.bf16.msra.mxu0 %v2161
        %2601 = vmatprep.subr.bf16.mxu0 0
        %2602 = vmatpush1.bf16.msra.mxu0 %v2162
        %2603 = vmatprep.subr.bf16.mxu0 0
        %2604 = vmatpush1.bf16.msra.mxu0 %v2163
        %2605 = vmatprep.subr.bf16.mxu0 0
        %2606 = vmatpush1.bf16.msra.mxu0 %v2164
        %2607 = vmatprep.subr.bf16.mxu0 0
        %2608 = vmatpush1.bf16.msra.mxu0 %v2165
        %2609 = vmatprep.subr.bf16.mxu0 0
        %2610 = vmatpush1.bf16.msra.mxu0 %v2166
        %2611 = vmatprep.subr.bf16.mxu0 0
        %2612 = vmatpush1.bf16.msra.mxu0 %v2167
        %2613 = vmatprep.subr.bf16.mxu0 0
        %2614 = vmatpush1.bf16.msra.mxu0 %v2168
        %2615 = vmatprep.subr.bf16.mxu0 0
        %2616 = vmatpush1.bf16.msra.mxu0 %v2169
        %2617 = vmatprep.subr.bf16.mxu0 0
        %2618 = vmatpush1.bf16.msra.mxu0 %v2170
        %2619 = vmatprep.subr.bf16.mxu0 0
        %2620 = vmatpush1.bf16.msra.mxu0 %v2171
        %2621 = vmatprep.subr.bf16.mxu0 0
        %2622 = vmatpush1.bf16.msra.mxu0 %v2172
        %2623 = vmatprep.mubr.bf16.mxu0 %v1812
        %2624 = vmatmul.mubr.bf16.gmra.mrb[0].mxu0 %v1796
        %v2625 = vpop.f32.mrb[0].mxu0
        %v2626 = vadd.f32 %v2465, %v2625
        %v2627 = vpop.f32.mrb[0].mxu0
        %v2628 = vpop.f32.mrb[0].mxu0
        %v2629 = vadd.f32 %v2468, %v2628
        %v2630 = vpop.f32.mrb[0].mxu0
        %2631 = vmatprep.mubr.bf16.mxu0 %v1813
        %2632 = vmatmul.mubr.bf16.gmra.mrb[0].mxu0 %v1797
        %v2633 = vpop.f32.mrb[0].mxu0
        %v2634 = vadd.f32 %v2473, %v2633
        %v2635 = vpop.f32.mrb[0].mxu0
        %v2636 = vpop.f32.mrb[0].mxu0
        %v2637 = vadd.f32 %v2476, %v2636
        %v2638 = vpop.f32.mrb[0].mxu0
        %2639 = vmatprep.mubr.bf16.mxu0 %v1814
        %2640 = vmatmul.mubr.bf16.gmra.mrb[0].mxu0 %v1798
        %v2641 = vpop.f32.mrb[0].mxu0
        %v2642 = vadd.f32 %v2481, %v2641
        %v2643 = vpop.f32.mrb[0].mxu0
        %v2644 = vpop.f32.mrb[0].mxu0
        %v2645 = vadd.f32 %v2484, %v2644
        %v2646 = vpop.f32.mrb[0].mxu0
        %2647 = vmatprep.mubr.bf16.mxu0 %v1815
        %2648 = vmatmul.mubr.bf16.gmra.mrb[0].mxu0 %v1799
        %v2649 = vpop.f32.mrb[0].mxu0
        %v2650 = vadd.f32 %v2489, %v2649
        %v2651 = vpop.f32.mrb[0].mxu0
        %v2652 = vpop.f32.mrb[0].mxu0
        %v2653 = vadd.f32 %v2492, %v2652
        %v2654 = vpop.f32.mrb[0].mxu0
        %2655 = vmatprep.mubr.bf16.mxu0 %v1816
        %2656 = vmatmul.mubr.bf16.gmra.mrb[0].mxu0 %v1800
        %v2657 = vpop.f32.mrb[0].mxu0
        %v2658 = vadd.f32 %v2497, %v2657
        %v2659 = vpop.f32.mrb[0].mxu0
        %v2660 = vpop.f32.mrb[0].mxu0
        %v2661 = vadd.f32 %v2500, %v2660
        %v2662 = vpop.f32.mrb[0].mxu0
        %2663 = vmatprep.mubr.bf16.mxu0 %v1817
        %2664 = vmatmul.mubr.bf16.gmra.mrb[0].mxu0 %v1801
        %v2665 = vpop.f32.mrb[0].mxu0
        %v2666 = vadd.f32 %v2505, %v2665
        %v2667 = vpop.f32.mrb[0].mxu0
        %v2668 = vpop.f32.mrb[0].mxu0
        %v2669 = vadd.f32 %v2508, %v2668
        %v2670 = vpop.f32.mrb[0].mxu0
        %2671 = vmatprep.mubr.bf16.mxu0 %v1818
        %2672 = vmatmul.mubr.bf16.gmra.mrb[0].mxu0 %v1802
        %v2673 = vpop.f32.mrb[0].mxu0
        %v2674 = vadd.f32 %v2513, %v2673
        %v2675 = vpop.f32.mrb[0].mxu0
        %v2676 = vpop.f32.mrb[0].mxu0
        %v2677 = vadd.f32 %v2516, %v2676
        %v2678 = vpop.f32.mrb[0].mxu0
        %2679 = vmatprep.mubr.bf16.mxu0 %v1819
        %2680 = vmatmul.mubr.bf16.gmra.mrb[0].mxu0 %v1803
        %v2681 = vpop.f32.mrb[0].mxu0
        %v2682 = vadd.f32 %v2521, %v2681
        %v2683 = vpop.f32.mrb[0].mxu0
        %v2684 = vpop.f32.mrb[0].mxu0
        %v2685 = vadd.f32 %v2524, %v2684
        %v2686 = vpop.f32.mrb[0].mxu0
        %2687 = vmatprep.mubr.bf16.mxu0 %v1820
        %2688 = vmatmul.mubr.bf16.gmra.mrb[0].mxu0 %v1804
        %v2689 = vpop.f32.mrb[0].mxu0
        %v2690 = vadd.f32 %v2529, %v2689
        %v2691 = vpop.f32.mrb[0].mxu0
        %v2692 = vpop.f32.mrb[0].mxu0
        %v2693 = vadd.f32 %v2532, %v2692
        %v2694 = vpop.f32.mrb[0].mxu0
        %2695 = vmatprep.mubr.bf16.mxu0 %v1821
        %2696 = vmatmul.mubr.bf16.gmra.mrb[0].mxu0 %v1805
        %v2697 = vpop.f32.mrb[0].mxu0
        %v2698 = vadd.f32 %v2537, %v2697
        %v2699 = vpop.f32.mrb[0].mxu0
        %v2700 = vpop.f32.mrb[0].mxu0
        %v2701 = vadd.f32 %v2540, %v2700
        %v2702 = vpop.f32.mrb[0].mxu0
        %2703 = vmatprep.mubr.bf16.mxu0 %v1822
        %2704 = vmatmul.mubr.bf16.gmra.mrb[0].mxu0 %v1806
        %v2705 = vpop.f32.mrb[0].mxu0
        %v2706 = vadd.f32 %v2545, %v2705
        %v2707 = vpop.f32.mrb[0].mxu0
        %v2708 = vpop.f32.mrb[0].mxu0
        %v2709 = vadd.f32 %v2548, %v2708
        %v2710 = vpop.f32.mrb[0].mxu0
        %2711 = vmatprep.mubr.bf16.mxu0 %v1823
        %2712 = vmatmul.mubr.bf16.gmra.mrb[0].mxu0 %v1807
        %v2713 = vpop.f32.mrb[0].mxu0
        %v2714 = vadd.f32 %v2553, %v2713
        %v2715 = vpop.f32.mrb[0].mxu0
        %v2716 = vpop.f32.mrb[0].mxu0
        %v2717 = vadd.f32 %v2556, %v2716
        %v2718 = vpop.f32.mrb[0].mxu0
        %2719 = vmatprep.mubr.bf16.mxu0 %v1824
        %2720 = vmatmul.mubr.bf16.gmra.mrb[0].mxu0 %v1808
        %v2721 = vpop.f32.mrb[0].mxu0
        %v2722 = vadd.f32 %v2561, %v2721
        %v2723 = vpop.f32.mrb[0].mxu0
        %v2724 = vpop.f32.mrb[0].mxu0
        %v2725 = vadd.f32 %v2564, %v2724
        %v2726 = vpop.f32.mrb[0].mxu0
        %2727 = vmatprep.mubr.bf16.mxu0 %v1825
        %2728 = vmatmul.mubr.bf16.gmra.mrb[0].mxu0 %v1809
        %v2729 = vpop.f32.mrb[0].mxu0
        %v2730 = vadd.f32 %v2569, %v2729
        %v2731 = vpop.f32.mrb[0].mxu0
        %v2732 = vpop.f32.mrb[0].mxu0
        %v2733 = vadd.f32 %v2572, %v2732
        %v2734 = vpop.f32.mrb[0].mxu0
        %2735 = vmatprep.mubr.bf16.mxu0 %v1826
        %2736 = vmatmul.mubr.bf16.gmra.mrb[0].mxu0 %v1810
        %v2737 = vpop.f32.mrb[0].mxu0
        %v2738 = vadd.f32 %v2577, %v2737
        %v2739 = vpop.f32.mrb[0].mxu0
        %v2740 = vpop.f32.mrb[0].mxu0
        %v2741 = vadd.f32 %v2580, %v2740
        %v2742 = vpop.f32.mrb[0].mxu0
        %2743 = vmatprep.mubr.bf16.mxu0 %v1829
        %2744 = vmatmul.mubr.bf16.gmra.mrb[0].mxu0 %v1828
        %v2745 = vpop.f32.mrb[0].mxu0
        %v2746 = vadd.f32 %v2585, %v2745
        %v2747 = vpop.f32.mrb[0].mxu0
        %v2748 = vpop.f32.mrb[0].mxu0
        %v2749 = vadd.f32 %v2588, %v2748
        %v2750 = vpop.f32.mrb[0].mxu0
        %2751 = vdwg.mxu0
        %2752 = vmatprep.subr.bf16.mxu0 0
        %2753 = vmatpush1.bf16.msra.mxu0 %v2173
        %2754 = vmatprep.subr.bf16.mxu0 0
        %2755 = vmatpush1.bf16.msra.mxu0 %v2174
        %2756 = vmatprep.subr.bf16.mxu0 0
        %2757 = vmatpush1.bf16.msra.mxu0 %v2175
        %2758 = vmatprep.subr.bf16.mxu0 0
        %2759 = vmatpush1.bf16.msra.mxu0 %v2176
        %2760 = vmatprep.subr.bf16.mxu0 0
        %2761 = vmatpush1.bf16.msra.mxu0 %v2177
        %2762 = vmatprep.subr.bf16.mxu0 0
        %2763 = vmatpush1.bf16.msra.mxu0 %v2178
        %2764 = vmatprep.subr.bf16.mxu0 0
        %2765 = vmatpush1.bf16.msra.mxu0 %v2179
        %2766 = vmatprep.subr.bf16.mxu0 0
        %2767 = vmatpush1.bf16.msra.mxu0 %v2180
        %2768 = vmatprep.subr.bf16.mxu0 0
        %2769 = vmatpush1.bf16.msra.mxu0 %v2181
        %2770 = vmatprep.subr.bf16.mxu0 0
        %2771 = vmatpush1.bf16.msra.mxu0 %v2182
        %2772 = vmatprep.subr.bf16.mxu0 0
        %2773 = vmatpush1.bf16.msra.mxu0 %v2183
        %2774 = vmatprep.subr.bf16.mxu0 0
        %2775 = vmatpush1.bf16.msra.mxu0 %v2184
        %2776 = vmatprep.subr.bf16.mxu0 0
        %2777 = vmatpush1.bf16.msra.mxu0 %v2185
        %2778 = vmatprep.subr.bf16.mxu0 0
        %2779 = vmatpush1.bf16.msra.mxu0 %v2186
        %2780 = vmatprep.subr.bf16.mxu0 0
        %2781 = vmatpush1.bf16.msra.mxu0 %v2187
        %2782 = vmatprep.subr.bf16.mxu0 0
        %2783 = vmatpush1.bf16.msra.mxu0 %v2188
        %2784 = vmatprep.mubr.bf16.mxu0 %v1797
        %2785 = vmatmul.mubr.bf16.gmra.mrb[0].mxu0 %v1781
        %v2786 = vpop.f32.mrb[0].mxu0
        %v2787 = vadd.f32 %v2626, %v2786
        %v2788 = vpop.f32.mrb[0].mxu0
        %v2789 = vpop.f32.mrb[0].mxu0
        %v2790 = vadd.f32 %v2629, %v2789
        %v2791 = vpop.f32.mrb[0].mxu0
        %2792 = vmatprep.mubr.bf16.mxu0 %v1798
        %2793 = vmatmul.mubr.bf16.gmra.mrb[0].mxu0 %v1782
        %v2794 = vpop.f32.mrb[0].mxu0
        %v2795 = vadd.f32 %v2634, %v2794
        %v2796 = vpop.f32.mrb[0].mxu0
        %v2797 = vpop.f32.mrb[0].mxu0
        %v2798 = vadd.f32 %v2637, %v2797
        %v2799 = vpop.f32.mrb[0].mxu0
        %2800 = vmatprep.mubr.bf16.mxu0 %v1799
        %2801 = vmatmul.mubr.bf16.gmra.mrb[0].mxu0 %v1783
        %v2802 = vpop.f32.mrb[0].mxu0
        %v2803 = vadd.f32 %v2642, %v2802
        %v2804 = vpop.f32.mrb[0].mxu0
        %v2805 = vpop.f32.mrb[0].mxu0
        %v2806 = vadd.f32 %v2645, %v2805
        %v2807 = vpop.f32.mrb[0].mxu0
        %2808 = vmatprep.mubr.bf16.mxu0 %v1800
        %2809 = vmatmul.mubr.bf16.gmra.mrb[0].mxu0 %v1784
        %v2810 = vpop.f32.mrb[0].mxu0
        %v2811 = vadd.f32 %v2650, %v2810
        %v2812 = vpop.f32.mrb[0].mxu0
        %v2813 = vpop.f32.mrb[0].mxu0
        %v2814 = vadd.f32 %v2653, %v2813
        %v2815 = vpop.f32.mrb[0].mxu0
        %2816 = vmatprep.mubr.bf16.mxu0 %v1801
        %2817 = vmatmul.mubr.bf16.gmra.mrb[0].mxu0 %v1785
        %v2818 = vpop.f32.mrb[0].mxu0
        %v2819 = vadd.f32 %v2658, %v2818
        %v2820 = vpop.f32.mrb[0].mxu0
        %v2821 = vpop.f32.mrb[0].mxu0
        %v2822 = vadd.f32 %v2661, %v2821
        %v2823 = vpop.f32.mrb[0].mxu0
        %2824 = vmatprep.mubr.bf16.mxu0 %v1802
        %2825 = vmatmul.mubr.bf16.gmra.mrb[0].mxu0 %v1786
        %v2826 = vpop.f32.mrb[0].mxu0
        %v2827 = vadd.f32 %v2666, %v2826
        %v2828 = vpop.f32.mrb[0].mxu0
        %v2829 = vpop.f32.mrb[0].mxu0
        %v2830 = vadd.f32 %v2669, %v2829
        %v2831 = vpop.f32.mrb[0].mxu0
        %2832 = vmatprep.mubr.bf16.mxu0 %v1803
        %2833 = vmatmul.mubr.bf16.gmra.mrb[0].mxu0 %v1787
        %v2834 = vpop.f32.mrb[0].mxu0
        %v2835 = vadd.f32 %v2674, %v2834
        %v2836 = vpop.f32.mrb[0].mxu0
        %v2837 = vpop.f32.mrb[0].mxu0
        %v2838 = vadd.f32 %v2677, %v2837
        %v2839 = vpop.f32.mrb[0].mxu0
        %2840 = vmatprep.mubr.bf16.mxu0 %v1804
        %2841 = vmatmul.mubr.bf16.gmra.mrb[0].mxu0 %v1788
        %v2842 = vpop.f32.mrb[0].mxu0
        %v2843 = vadd.f32 %v2682, %v2842
        %v2844 = vpop.f32.mrb[0].mxu0
        %v2845 = vpop.f32.mrb[0].mxu0
        %v2846 = vadd.f32 %v2685, %v2845
        %v2847 = vpop.f32.mrb[0].mxu0
        %2848 = vmatprep.mubr.bf16.mxu0 %v1805
        %2849 = vmatmul.mubr.bf16.gmra.mrb[0].mxu0 %v1789
        %v2850 = vpop.f32.mrb[0].mxu0
        %v2851 = vadd.f32 %v2690, %v2850
        %v2852 = vpop.f32.mrb[0].mxu0
        %v2853 = vpop.f32.mrb[0].mxu0
        %v2854 = vadd.f32 %v2693, %v2853
        %v2855 = vpop.f32.mrb[0].mxu0
        %2856 = vmatprep.mubr.bf16.mxu0 %v1806
        %2857 = vmatmul.mubr.bf16.gmra.mrb[0].mxu0 %v1790
        %v2858 = vpop.f32.mrb[0].mxu0
        %v2859 = vadd.f32 %v2698, %v2858
        %v2860 = vpop.f32.mrb[0].mxu0
        %v2861 = vpop.f32.mrb[0].mxu0
        %v2862 = vadd.f32 %v2701, %v2861
        %v2863 = vpop.f32.mrb[0].mxu0
        %2864 = vmatprep.mubr.bf16.mxu0 %v1807
        %2865 = vmatmul.mubr.bf16.gmra.mrb[0].mxu0 %v1791
        %v2866 = vpop.f32.mrb[0].mxu0
        %v2867 = vadd.f32 %v2706, %v2866
        %v2868 = vpop.f32.mrb[0].mxu0
        %v2869 = vpop.f32.mrb[0].mxu0
        %v2870 = vadd.f32 %v2709, %v2869
        %v2871 = vpop.f32.mrb[0].mxu0
        %2872 = vmatprep.mubr.bf16.mxu0 %v1808
        %2873 = vmatmul.mubr.bf16.gmra.mrb[0].mxu0 %v1792
        %v2874 = vpop.f32.mrb[0].mxu0
        %v2875 = vadd.f32 %v2714, %v2874
        %v2876 = vpop.f32.mrb[0].mxu0
        %v2877 = vpop.f32.mrb[0].mxu0
        %v2878 = vadd.f32 %v2717, %v2877
        %v2879 = vpop.f32.mrb[0].mxu0
        %2880 = vmatprep.mubr.bf16.mxu0 %v1809
        %2881 = vmatmul.mubr.bf16.gmra.mrb[0].mxu0 %v1793
        %v2882 = vpop.f32.mrb[0].mxu0
        %v2883 = vadd.f32 %v2722, %v2882
        %v2884 = vpop.f32.mrb[0].mxu0
        %v2885 = vpop.f32.mrb[0].mxu0
        %v2886 = vadd.f32 %v2725, %v2885
        %v2887 = vpop.f32.mrb[0].mxu0
        %2888 = vmatprep.mubr.bf16.mxu0 %v1810
        %2889 = vmatmul.mubr.bf16.gmra.mrb[0].mxu0 %v1794
        %v2890 = vpop.f32.mrb[0].mxu0
        %v2891 = vadd.f32 %v2730, %v2890
        %v2892 = vpop.f32.mrb[0].mxu0
        %v2893 = vpop.f32.mrb[0].mxu0
        %v2894 = vadd.f32 %v2733, %v2893
        %v2895 = vpop.f32.mrb[0].mxu0
        %2896 = vmatprep.mubr.bf16.mxu0 %v1828
        %2897 = vmatmul.mubr.bf16.gmra.mrb[0].mxu0 %v1827
        %v2898 = vpop.f32.mrb[0].mxu0
        %v2899 = vadd.f32 %v2738, %v2898
        %v2900 = vpop.f32.mrb[0].mxu0
        %v2901 = vpop.f32.mrb[0].mxu0
        %v2902 = vadd.f32 %v2741, %v2901
        %v2903 = vpop.f32.mrb[0].mxu0
        %2904 = vmatprep.mubr.bf16.mxu0 %v1795
        %2905 = vmatmul.mubr.bf16.gmra.mrb[0].mxu0 %v1779
        %v2906 = vpop.f32.mrb[0].mxu0
        %v2907 = vadd.f32 %v2746, %v2906
        %v2908 = vpop.f32.mrb[0].mxu0
        %v2909 = vpop.f32.mrb[0].mxu0
        %v2910 = vadd.f32 %v2749, %v2909
        %v2911 = vpop.f32.mrb[0].mxu0
        %2912 = vdwg.mxu0
        %2913 = vmatprep.subr.bf16.mxu0 0
        %2914 = vmatpush1.bf16.msra.mxu0 %v2189
        %2915 = vmatprep.subr.bf16.mxu0 0
        %2916 = vmatpush1.bf16.msra.mxu0 %v2190
        %2917 = vmatprep.subr.bf16.mxu0 0
        %2918 = vmatpush1.bf16.msra.mxu0 %v2191
        %2919 = vmatprep.subr.bf16.mxu0 0
        %2920 = vmatpush1.bf16.msra.mxu0 %v2192
        %2921 = vmatprep.subr.bf16.mxu0 0
        %2922 = vmatpush1.bf16.msra.mxu0 %v2193
        %2923 = vmatprep.subr.bf16.mxu0 0
        %2924 = vmatpush1.bf16.msra.mxu0 %v2194
        %2925 = vmatprep.subr.bf16.mxu0 0
        %2926 = vmatpush1.bf16.msra.mxu0 %v2195
        %2927 = vmatprep.subr.bf16.mxu0 0
        %2928 = vmatpush1.bf16.msra.mxu0 %v2196
        %2929 = vmatprep.subr.bf16.mxu0 0
        %2930 = vmatpush1.bf16.msra.mxu0 0
        %2931 = vmatprep.subr.bf16.mxu0 0
        %2932 = vmatpush1.bf16.msra.mxu0 0
        %2933 = vmatprep.subr.bf16.mxu0 0
        %2934 = vmatpush1.bf16.msra.mxu0 0
        %2935 = vmatprep.subr.bf16.mxu0 0
        %2936 = vmatpush1.bf16.msra.mxu0 0
        %2937 = vmatprep.subr.bf16.mxu0 0
        %2938 = vmatpush1.bf16.msra.mxu0 0
        %2939 = vmatprep.subr.bf16.mxu0 0
        %2940 = vmatpush1.bf16.msra.mxu0 0
        %2941 = vmatprep.subr.bf16.mxu0 0
        %2942 = vmatpush1.bf16.msra.mxu0 0
        %2943 = vmatprep.subr.bf16.mxu0 0
        %2944 = vmatpush1.bf16.msra.mxu0 0
        %2945 = vmatprep.mubr.bf16.mxu0 0
        %2946 = vmatmul.mubr.bf16.gmra.mrb[0].mxu0 %v1813
        %v2947 = vpop.f32.mrb[0].mxu0
        %v2948 = vadd.f32 %v2787, %v2947
        %v2949 = vpop.f32.mrb[0].mxu0
        %v2950 = vpop.f32.mrb[0].mxu0
        %v2951 = vadd.f32 %v2790, %v2950
        %v2952 = vpop.f32.mrb[0].mxu0
        %2953 = vmatprep.mubr.bf16.mxu0 0
        %2954 = vmatmul.mubr.bf16.gmra.mrb[0].mxu0 %v1814
        %v2955 = vpop.f32.mrb[0].mxu0
        %v2956 = vadd.f32 %v2795, %v2955
        %v2957 = vpop.f32.mrb[0].mxu0
        %v2958 = vpop.f32.mrb[0].mxu0
        %v2959 = vadd.f32 %v2798, %v2958
        %v2960 = vpop.f32.mrb[0].mxu0
        %2961 = vmatprep.mubr.bf16.mxu0 0
        %2962 = vmatmul.mubr.bf16.gmra.mrb[0].mxu0 %v1815
        %v2963 = vpop.f32.mrb[0].mxu0
        %v2964 = vadd.f32 %v2803, %v2963
        %v2965 = vpop.f32.mrb[0].mxu0
        %v2966 = vpop.f32.mrb[0].mxu0
        %v2967 = vadd.f32 %v2806, %v2966
        %v2968 = vpop.f32.mrb[0].mxu0
        %2969 = vmatprep.mubr.bf16.mxu0 0
        %2970 = vmatmul.mubr.bf16.gmra.mrb[0].mxu0 %v1816
        %v2971 = vpop.f32.mrb[0].mxu0
        %v2972 = vadd.f32 %v2811, %v2971
        %v2973 = vpop.f32.mrb[0].mxu0
        %v2974 = vpop.f32.mrb[0].mxu0
        %v2975 = vadd.f32 %v2814, %v2974
        %v2976 = vpop.f32.mrb[0].mxu0
        %2977 = vmatprep.mubr.bf16.mxu0 0
        %2978 = vmatmul.mubr.bf16.gmra.mrb[0].mxu0 %v1817
        %v2979 = vpop.f32.mrb[0].mxu0
        %v2980 = vadd.f32 %v2819, %v2979
        %v2981 = vpop.f32.mrb[0].mxu0
        %v2982 = vpop.f32.mrb[0].mxu0
        %v2983 = vadd.f32 %v2822, %v2982
        %v2984 = vpop.f32.mrb[0].mxu0
        %2985 = vmatprep.mubr.bf16.mxu0 0
        %2986 = vmatmul.mubr.bf16.gmra.mrb[0].mxu0 %v1818
        %v2987 = vpop.f32.mrb[0].mxu0
        %v2988 = vadd.f32 %v2827, %v2987
        %v2989 = vpop.f32.mrb[0].mxu0
        %v2990 = vpop.f32.mrb[0].mxu0
        %v2991 = vadd.f32 %v2830, %v2990
        %v2992 = vpop.f32.mrb[0].mxu0
        %2993 = vmatprep.mubr.bf16.mxu0 0
        %2994 = vmatmul.mubr.bf16.gmra.mrb[0].mxu0 %v1819
        %v2995 = vpop.f32.mrb[0].mxu0
        %v2996 = vadd.f32 %v2835, %v2995
        %v2997 = vpop.f32.mrb[0].mxu0
        %v2998 = vpop.f32.mrb[0].mxu0
        %v2999 = vadd.f32 %v2838, %v2998
        %v3000 = vpop.f32.mrb[0].mxu0
        %3001 = vmatprep.mubr.bf16.mxu0 0
        %3002 = vmatmul.mubr.bf16.gmra.mrb[0].mxu0 %v1820
        %v3003 = vpop.f32.mrb[0].mxu0
        %v3004 = vadd.f32 %v2843, %v3003
        %v3005 = vpop.f32.mrb[0].mxu0
        %v3006 = vpop.f32.mrb[0].mxu0
        %v3007 = vadd.f32 %v2846, %v3006
        %v3008 = vpop.f32.mrb[0].mxu0
        %3009 = vmatprep.mubr.bf16.mxu0 0
        %3010 = vmatmul.mubr.bf16.gmra.mrb[0].mxu0 %v1821
        %v3011 = vpop.f32.mrb[0].mxu0
        %v3012 = vadd.f32 %v2851, %v3011
        %v3013 = vpop.f32.mrb[0].mxu0
        %v3014 = vpop.f32.mrb[0].mxu0
        %v3015 = vadd.f32 %v2854, %v3014
        %v3016 = vpop.f32.mrb[0].mxu0
        %3017 = vmatprep.mubr.bf16.mxu0 0
        %3018 = vmatmul.mubr.bf16.gmra.mrb[0].mxu0 %v1822
        %v3019 = vpop.f32.mrb[0].mxu0
        %v3020 = vadd.f32 %v2859, %v3019
        %v3021 = vpop.f32.mrb[0].mxu0
        %v3022 = vpop.f32.mrb[0].mxu0
        %v3023 = vadd.f32 %v2862, %v3022
        %v3024 = vpop.f32.mrb[0].mxu0
        %3025 = vmatprep.mubr.bf16.mxu0 0
        %3026 = vmatmul.mubr.bf16.gmra.mrb[0].mxu0 %v1823
        %v3027 = vpop.f32.mrb[0].mxu0
        %v3028 = vadd.f32 %v2867, %v3027
        %v3029 = vpop.f32.mrb[0].mxu0
        %v3030 = vpop.f32.mrb[0].mxu0
        %v3031 = vadd.f32 %v2870, %v3030
        %v3032 = vpop.f32.mrb[0].mxu0
        %3033 = vmatprep.mubr.bf16.mxu0 0
        %3034 = vmatmul.mubr.bf16.gmra.mrb[0].mxu0 %v1824
        %v3035 = vpop.f32.mrb[0].mxu0
        %v3036 = vadd.f32 %v2875, %v3035
        %v3037 = vpop.f32.mrb[0].mxu0
        %v3038 = vpop.f32.mrb[0].mxu0
        %v3039 = vadd.f32 %v2878, %v3038
        %v3040 = vpop.f32.mrb[0].mxu0
        %3041 = vmatprep.mubr.bf16.mxu0 0
        %3042 = vmatmul.mubr.bf16.gmra.mrb[0].mxu0 %v1825
        %v3043 = vpop.f32.mrb[0].mxu0
        %v3044 = vadd.f32 %v2883, %v3043
        %v3045 = vpop.f32.mrb[0].mxu0
        %v3046 = vpop.f32.mrb[0].mxu0
        %v3047 = vadd.f32 %v2886, %v3046
        %v3048 = vpop.f32.mrb[0].mxu0
        %3049 = vmatprep.mubr.bf16.mxu0 0
        %3050 = vmatmul.mubr.bf16.gmra.mrb[0].mxu0 %v1826
        %v3051 = vpop.f32.mrb[0].mxu0
        %v3052 = vadd.f32 %v2891, %v3051
        %v3053 = vpop.f32.mrb[0].mxu0
        %v3054 = vpop.f32.mrb[0].mxu0
        %v3055 = vadd.f32 %v2894, %v3054
        %v3056 = vpop.f32.mrb[0].mxu0
        %3057 = vmatprep.mubr.bf16.mxu0 0
        %3058 = vmatmul.mubr.bf16.gmra.mrb[0].mxu0 %v1829
        %v3059 = vpop.f32.mrb[0].mxu0
        %v3060 = vadd.f32 %v2899, %v3059
        %v3061 = vpop.f32.mrb[0].mxu0
        %v3062 = vpop.f32.mrb[0].mxu0
        %v3063 = vadd.f32 %v2902, %v3062
        %v3064 = vpop.f32.mrb[0].mxu0
        %3065 = vmatprep.mubr.bf16.mxu0 0
        %3066 = vmatmul.mubr.bf16.gmra.mrb[0].mxu0 %v1811
        %v3067 = vpop.f32.mrb[0].mxu0
        %v3068 = vadd.f32 %v2907, %v3067
        %v3069 = vpop.f32.mrb[0].mxu0
        %v3070 = vpop.f32.mrb[0].mxu0
        %v3071 = vadd.f32 %v2910, %v3070
        %v3072 = vpop.f32.mrb[0].mxu0
        %3073 = vdwg.mxu0
        %v3074 = vadd.f32 %v2948, 3.0
        %v3075 = vadd.f32 %v2951, 3.0
        %v3076 = vadd.f32 %v2956, 3.0
        %v3077 = vadd.f32 %v2959, 3.0
        %v3078 = vadd.f32 %v2964, 3.0
        %v3079 = vadd.f32 %v2967, 3.0
        %v3080 = vadd.f32 %v2972, 3.0
        %v3081 = vadd.f32 %v2975, 3.0
        %v3082 = vadd.f32 %v2980, 3.0
        %v3083 = vadd.f32 %v2983, 3.0
        %v3084 = vadd.f32 %v2988, 3.0
        %v3085 = vadd.f32 %v2991, 3.0
        %v3086 = vadd.f32 %v2996, 3.0
        %v3087 = vadd.f32 %v2999, 3.0
        %v3088 = vadd.f32 %v3004, 3.0
        %v3089 = vadd.f32 %v3007, 3.0
        %v3090 = vadd.f32 %v3012, 3.0
        %v3091 = vadd.f32 %v3015, 3.0
        %v3092 = vadd.f32 %v3020, 3.0
        %v3093 = vadd.f32 %v3023, 3.0
        %v3094 = vadd.f32 %v3028, 3.0
        %v3095 = vadd.f32 %v3031, 3.0
        %v3096 = vadd.f32 %v3036, 3.0
        %v3097 = vadd.f32 %v3039, 3.0
        %v3098 = vadd.f32 %v3044, 3.0
        %v3099 = vadd.f32 %v3047, 3.0
        %v3100 = vadd.f32 %v3052, 3.0
        %v3101 = vadd.f32 %v3055, 3.0
        %v3102 = vadd.f32 %v3060, 3.0
        %v3103 = vadd.f32 %v3063, 3.0
        %v3104 = vadd.f32 %v3068, 3.0
        %v3105 = vadd.f32 %v3071, 3.0
        %v3106 = vmax.f32 %v3074, 0.0
        %v3107 = vmax.f32 %v3075, 0.0
        %v3108 = vmax.f32 %v3076, 0.0
        %v3109 = vmax.f32 %v3077, 0.0
        %v3110 = vmax.f32 %v3078, 0.0
        %v3111 = vmax.f32 %v3079, 0.0
        %v3112 = vmax.f32 %v3080, 0.0
        %v3113 = vmax.f32 %v3081, 0.0
        %v3114 = vmax.f32 %v3082, 0.0
        %v3115 = vmax.f32 %v3083, 0.0
        %v3116 = vmax.f32 %v3084, 0.0
        %v3117 = vmax.f32 %v3085, 0.0
        %v3118 = vmax.f32 %v3086, 0.0
        %v3119 = vmax.f32 %v3087, 0.0
        %v3120 = vmax.f32 %v3088, 0.0
        %v3121 = vmax.f32 %v3089, 0.0
        %v3122 = vmax.f32 %v3090, 0.0
        %v3123 = vmax.f32 %v3091, 0.0
        %v3124 = vmax.f32 %v3092, 0.0
        %v3125 = vmax.f32 %v3093, 0.0
        %v3126 = vmax.f32 %v3094, 0.0
        %v3127 = vmax.f32 %v3095, 0.0
        %v3128 = vmax.f32 %v3096, 0.0
        %v3129 = vmax.f32 %v3097, 0.0
        %v3130 = vmax.f32 %v3098, 0.0
        %v3131 = vmax.f32 %v3099, 0.0
        %v3132 = vmax.f32 %v3100, 0.0
        %v3133 = vmax.f32 %v3101, 0.0
        %v3134 = vmax.f32 %v3102, 0.0
        %v3135 = vmax.f32 %v3103, 0.0
        %v3136 = vmax.f32 %v3104, 0.0
        %v3137 = vmax.f32 %v3105, 0.0
        %v3138 = vmin.f32 %v3106, 6.0
        %v3139 = vmin.f32 %v3107, 6.0
        %v3140 = vmin.f32 %v3108, 6.0
        %v3141 = vmin.f32 %v3109, 6.0
        %v3142 = vmin.f32 %v3110, 6.0
        %v3143 = vmin.f32 %v3111, 6.0
        %v3144 = vmin.f32 %v3112, 6.0
        %v3145 = vmin.f32 %v3113, 6.0
        %v3146 = vmin.f32 %v3114, 6.0
        %v3147 = vmin.f32 %v3115, 6.0
        %v3148 = vmin.f32 %v3116, 6.0
        %v3149 = vmin.f32 %v3117, 6.0
        %v3150 = vmin.f32 %v3118, 6.0
        %v3151 = vmin.f32 %v3119, 6.0
        %v3152 = vmin.f32 %v3120, 6.0
        %v3153 = vmin.f32 %v3121, 6.0
        %v3154 = vmin.f32 %v3122, 6.0
        %v3155 = vmin.f32 %v3123, 6.0
        %v3156 = vmin.f32 %v3124, 6.0
        %v3157 = vmin.f32 %v3125, 6.0
        %v3158 = vmin.f32 %v3126, 6.0
        %v3159 = vmin.f32 %v3127, 6.0
        %v3160 = vmin.f32 %v3128, 6.0
        %v3161 = vmin.f32 %v3129, 6.0
        %v3162 = vmin.f32 %v3130, 6.0
        %v3163 = vmin.f32 %v3131, 6.0
        %v3164 = vmin.f32 %v3132, 6.0
        %v3165 = vmin.f32 %v3133, 6.0
        %v3166 = vmin.f32 %v3134, 6.0
        %v3167 = vmin.f32 %v3135, 6.0
        %v3168 = vmin.f32 %v3136, 6.0
        %v3169 = vmin.f32 %v3137, 6.0
        %v3170 = vmul.f32 %v2948, %v3138
        %v3171 = vmul.f32 %v2951, %v3139
        %v3172 = vmul.f32 %v2956, %v3140
        %v3173 = vmul.f32 %v2959, %v3141
        %v3174 = vmul.f32 %v2964, %v3142
        %v3175 = vmul.f32 %v2967, %v3143
        %v3176 = vmul.f32 %v2972, %v3144
        %v3177 = vmul.f32 %v2975, %v3145
        %v3178 = vmul.f32 %v2980, %v3146
        %v3179 = vmul.f32 %v2983, %v3147
        %v3180 = vmul.f32 %v2988, %v3148
        %v3181 = vmul.f32 %v2991, %v3149
        %v3182 = vmul.f32 %v2996, %v3150
        %v3183 = vmul.f32 %v2999, %v3151
        %v3184 = vmul.f32 %v3004, %v3152
        %v3185 = vmul.f32 %v3007, %v3153
        %v3186 = vmul.f32 %v3012, %v3154
        %v3187 = vmul.f32 %v3015, %v3155
        %v3188 = vmul.f32 %v3020, %v3156
        %v3189 = vmul.f32 %v3023, %v3157
        %v3190 = vmul.f32 %v3028, %v3158
        %v3191 = vmul.f32 %v3031, %v3159
        %v3192 = vmul.f32 %v3036, %v3160
        %v3193 = vmul.f32 %v3039, %v3161
        %v3194 = vmul.f32 %v3044, %v3162
        %v3195 = vmul.f32 %v3047, %v3163
        %v3196 = vmul.f32 %v3052, %v3164
        %v3197 = vmul.f32 %v3055, %v3165
        %v3198 = vmul.f32 %v3060, %v3166
        %v3199 = vmul.f32 %v3063, %v3167
        %v3200 = vmul.f32 %v3068, %v3168
        %v3201 = vmul.f32 %v3071, %v3169
        %v3202 = vmul.f32 %v3170, 0.16666667
        %v3203 = vmul.f32 %v3171, 0.16666667
        %v3204 = vmul.f32 %v3172, 0.16666667
        %v3205 = vmul.f32 %v3173, 0.16666667
        %v3206 = vmul.f32 %v3174, 0.16666667
        %v3207 = vmul.f32 %v3175, 0.16666667
        %v3208 = vmul.f32 %v3176, 0.16666667
        %v3209 = vmul.f32 %v3177, 0.16666667
        %v3210 = vmul.f32 %v3178, 0.16666667
        %v3211 = vmul.f32 %v3179, 0.16666667
        %v3212 = vmul.f32 %v3180, 0.16666667
        %v3213 = vmul.f32 %v3181, 0.16666667
        %v3214 = vmul.f32 %v3182, 0.16666667
        %v3215 = vmul.f32 %v3183, 0.16666667
        %v3216 = vmul.f32 %v3184, 0.16666667
        %v3217 = vmul.f32 %v3185, 0.16666667
        %v3218 = vmul.f32 %v3186, 0.16666667
        %v3219 = vmul.f32 %v3187, 0.16666667
        %v3220 = vmul.f32 %v3188, 0.16666667
        %v3221 = vmul.f32 %v3189, 0.16666667
        %v3222 = vmul.f32 %v3190, 0.16666667
        %v3223 = vmul.f32 %v3191, 0.16666667
        %v3224 = vmul.f32 %v3192, 0.16666667
        %v3225 = vmul.f32 %v3193, 0.16666667
        %v3226 = vmul.f32 %v3194, 0.16666667
        %v3227 = vmul.f32 %v3195, 0.16666667
        %v3228 = vmul.f32 %v3196, 0.16666667
        %v3229 = vmul.f32 %v3197, 0.16666667
        %v3230 = vmul.f32 %v3198, 0.16666667
        %v3231 = vmul.f32 %v3199, 0.16666667
        %v3232 = vmul.f32 %v3200, 0.16666667
        %v3233 = vmul.f32 %v3201, 0.16666667
        %v3234 = vld [vmem:[%s9] sm:$0x1]
        %v3236 = vlaneseq
        %v3237 = vshrl.u32 %v3236, 7
        %v3238 = vsub.s32 0, %v3237
        %v3239 = vrot.slane %v3234, %v3238
        %v3241 = vmul.f32 %v3202, %v3239
        %v3242 = vmul.f32 %v3203, %v3239
        %v3243 = vmul.f32 %v3204, %v3239
        %v3244 = vmul.f32 %v3205, %v3239
        %v3245 = vmul.f32 %v3206, %v3239
        %v3246 = vmul.f32 %v3207, %v3239
        %v3247 = vmul.f32 %v3208, %v3239
        %v3248 = vmul.f32 %v3209, %v3239
        %v3249 = vmul.f32 %v3210, %v3239
        %v3250 = vmul.f32 %v3211, %v3239
        %v3251 = vmul.f32 %v3212, %v3239
        %v3252 = vmul.f32 %v3213, %v3239
        %v3253 = vmul.f32 %v3214, %v3239
        %v3254 = vmul.f32 %v3215, %v3239
        %v3255 = vmul.f32 %v3216, %v3239
        %v3256 = vmul.f32 %v3217, %v3239
        %v3257 = vmul.f32 %v3218, %v3239
        %v3258 = vmul.f32 %v3219, %v3239
        %v3259 = vmul.f32 %v3220, %v3239
        %v3260 = vmul.f32 %v3221, %v3239
        %v3261 = vmul.f32 %v3222, %v3239
        %v3262 = vmul.f32 %v3223, %v3239
        %v3263 = vmul.f32 %v3224, %v3239
        %v3264 = vmul.f32 %v3225, %v3239
        %v3265 = vmul.f32 %v3226, %v3239
        %v3266 = vmul.f32 %v3227, %v3239
        %v3267 = vmul.f32 %v3228, %v3239
        %v3268 = vmul.f32 %v3229, %v3239
        %v3269 = vmul.f32 %v3230, %v3239
        %v3270 = vmul.f32 %v3231, %v3239
        %v3271 = vmul.f32 %v3232, %v3239
        %v3272 = vmul.f32 %v3233, %v3239
        %v3273 = vld [vmem:[%s10] sm:$0x1]
        %v3275 = vlaneseq
        %v3276 = vshrl.u32 %v3275, 7
        %v3277 = vsub.s32 0, %v3276
        %v3278 = vrot.slane %v3273, %v3277
        %v3280 = vadd.f32 %v3241, %v3278
        %v3281 = vadd.f32 %v3242, %v3278
        %v3282 = vadd.f32 %v3243, %v3278
        %v3283 = vadd.f32 %v3244, %v3278
        %v3284 = vadd.f32 %v3245, %v3278
        %v3285 = vadd.f32 %v3246, %v3278
        %v3286 = vadd.f32 %v3247, %v3278
        %v3287 = vadd.f32 %v3248, %v3278
        %v3288 = vadd.f32 %v3249, %v3278
        %v3289 = vadd.f32 %v3250, %v3278
        %v3290 = vadd.f32 %v3251, %v3278
        %v3291 = vadd.f32 %v3252, %v3278
        %v3292 = vadd.f32 %v3253, %v3278
        %v3293 = vadd.f32 %v3254, %v3278
        %v3294 = vadd.f32 %v3255, %v3278
        %v3295 = vadd.f32 %v3256, %v3278
        %v3296 = vadd.f32 %v3257, %v3278
        %v3297 = vadd.f32 %v3258, %v3278
        %v3298 = vadd.f32 %v3259, %v3278
        %v3299 = vadd.f32 %v3260, %v3278
        %v3300 = vadd.f32 %v3261, %v3278
        %v3301 = vadd.f32 %v3262, %v3278
        %v3302 = vadd.f32 %v3263, %v3278
        %v3303 = vadd.f32 %v3264, %v3278
        %v3304 = vadd.f32 %v3265, %v3278
        %v3305 = vadd.f32 %v3266, %v3278
        %v3306 = vadd.f32 %v3267, %v3278
        %v3307 = vadd.f32 %v3268, %v3278
        %v3308 = vadd.f32 %v3269, %v3278
        %v3309 = vadd.f32 %v3270, %v3278
        %v3310 = vadd.f32 %v3271, %v3278
        %v3311 = vadd.f32 %v3272, %v3278
        %v3312 = vmin.f32 %v3280, 20.0
        %v3313 = vmin.f32 %v3281, 20.0
        %v3314 = vmin.f32 %v3282, 20.0
        %v3315 = vmin.f32 %v3283, 20.0
        %v3316 = vmin.f32 %v3284, 20.0
        %v3317 = vmin.f32 %v3285, 20.0
        %v3318 = vmin.f32 %v3286, 20.0
        %v3319 = vmin.f32 %v3287, 20.0
        %v3320 = vmin.f32 %v3288, 20.0
        %v3321 = vmin.f32 %v3289, 20.0
        %v3322 = vmin.f32 %v3290, 20.0
        %v3323 = vmin.f32 %v3291, 20.0
        %v3324 = vmin.f32 %v3292, 20.0
        %v3325 = vmin.f32 %v3293, 20.0
        %v3326 = vmin.f32 %v3294, 20.0
        %v3327 = vmin.f32 %v3295, 20.0
        %v3328 = vmin.f32 %v3296, 20.0
        %v3329 = vmin.f32 %v3297, 20.0
        %v3330 = vmin.f32 %v3298, 20.0
        %v3331 = vmin.f32 %v3299, 20.0
        %v3332 = vmin.f32 %v3300, 20.0
        %v3333 = vmin.f32 %v3301, 20.0
        %v3334 = vmin.f32 %v3302, 20.0
        %v3335 = vmin.f32 %v3303, 20.0
        %v3336 = vmin.f32 %v3304, 20.0
        %v3337 = vmin.f32 %v3305, 20.0
        %v3338 = vmin.f32 %v3306, 20.0
        %v3339 = vmin.f32 %v3307, 20.0
        %v3340 = vmin.f32 %v3308, 20.0
        %v3341 = vmin.f32 %v3309, 20.0
        %v3342 = vmin.f32 %v3310, 20.0
        %v3343 = vmin.f32 %v3311, 20.0
        %v3344 = vmul.f32 %v3312, 1.442695
        %v3345 = vpow.pop %v3344
        %v3346 = vmul.f32 %v3313, 1.442695
        %v3347 = vpow.pop %v3346
        %v3348 = vmul.f32 %v3314, 1.442695
        %v3349 = vpow.pop %v3348
        %v3350 = vmul.f32 %v3315, 1.442695
        %v3351 = vpow.pop %v3350
        %v3352 = vmul.f32 %v3316, 1.442695
        %v3353 = vpow.pop %v3352
        %v3354 = vmul.f32 %v3317, 1.442695
        %v3355 = vpow.pop %v3354
        %v3356 = vmul.f32 %v3318, 1.442695
        %v3357 = vpow.pop %v3356
        %v3358 = vmul.f32 %v3319, 1.442695
        %v3359 = vpow.pop %v3358
        %v3360 = vmul.f32 %v3320, 1.442695
        %v3361 = vpow.pop %v3360
        %v3362 = vmul.f32 %v3321, 1.442695
        %v3363 = vpow.pop %v3362
        %v3364 = vmul.f32 %v3322, 1.442695
        %v3365 = vpow.pop %v3364
        %v3366 = vmul.f32 %v3323, 1.442695
        %v3367 = vpow.pop %v3366
        %v3368 = vmul.f32 %v3324, 1.442695
        %v3369 = vpow.pop %v3368
        %v3370 = vmul.f32 %v3325, 1.442695
        %v3371 = vpow.pop %v3370
        %v3372 = vmul.f32 %v3326, 1.442695
        %v3373 = vpow.pop %v3372
        %v3374 = vmul.f32 %v3327, 1.442695
        %v3375 = vpow.pop %v3374
        %v3376 = vmul.f32 %v3328, 1.442695
        %v3377 = vpow.pop %v3376
        %v3378 = vmul.f32 %v3329, 1.442695
        %v3379 = vpow.pop %v3378
        %v3380 = vmul.f32 %v3330, 1.442695
        %v3381 = vpow.pop %v3380
        %v3382 = vmul.f32 %v3331, 1.442695
        %v3383 = vpow.pop %v3382
        %v3384 = vmul.f32 %v3332, 1.442695
        %v3385 = vpow.pop %v3384
        %v3386 = vmul.f32 %v3333, 1.442695
        %v3387 = vpow.pop %v3386
        %v3388 = vmul.f32 %v3334, 1.442695
        %v3389 = vpow.pop %v3388
        %v3390 = vmul.f32 %v3335, 1.442695
        %v3391 = vpow.pop %v3390
        %v3392 = vmul.f32 %v3336, 1.442695
        %v3393 = vpow.pop %v3392
        %v3394 = vmul.f32 %v3337, 1.442695
        %v3395 = vpow.pop %v3394
        %v3396 = vmul.f32 %v3338, 1.442695
        %v3397 = vpow.pop %v3396
        %v3398 = vmul.f32 %v3339, 1.442695
        %v3399 = vpow.pop %v3398
        %v3400 = vmul.f32 %v3340, 1.442695
        %v3401 = vpow.pop %v3400
        %v3402 = vmul.f32 %v3341, 1.442695
        %v3403 = vpow.pop %v3402
        %v3404 = vmul.f32 %v3342, 1.442695
        %v3405 = vpow.pop %v3404
        %v3406 = vmul.f32 %v3343, 1.442695
        %v3407 = vpow.pop %v3406
        %v3408 = vadd.f32 %v3345, 1.0
        %v3409 = vadd.f32 %v3347, 1.0
        %v3410 = vadd.f32 %v3349, 1.0
        %v3411 = vadd.f32 %v3351, 1.0
        %v3412 = vadd.f32 %v3353, 1.0
        %v3413 = vadd.f32 %v3355, 1.0
        %v3414 = vadd.f32 %v3357, 1.0
        %v3415 = vadd.f32 %v3359, 1.0
        %v3416 = vadd.f32 %v3361, 1.0
        %v3417 = vadd.f32 %v3363, 1.0
        %v3418 = vadd.f32 %v3365, 1.0
        %v3419 = vadd.f32 %v3367, 1.0
        %v3420 = vadd.f32 %v3369, 1.0
        %v3421 = vadd.f32 %v3371, 1.0
        %v3422 = vadd.f32 %v3373, 1.0
        %v3423 = vadd.f32 %v3375, 1.0
        %v3424 = vadd.f32 %v3377, 1.0
        %v3425 = vadd.f32 %v3379, 1.0
        %v3426 = vadd.f32 %v3381, 1.0
        %v3427 = vadd.f32 %v3383, 1.0
        %v3428 = vadd.f32 %v3385, 1.0
        %v3429 = vadd.f32 %v3387, 1.0
        %v3430 = vadd.f32 %v3389, 1.0
        %v3431 = vadd.f32 %v3391, 1.0
        %v3432 = vadd.f32 %v3393, 1.0
        %v3433 = vadd.f32 %v3395, 1.0
        %v3434 = vadd.f32 %v3397, 1.0
        %v3435 = vadd.f32 %v3399, 1.0
        %v3436 = vadd.f32 %v3401, 1.0
        %v3437 = vadd.f32 %v3403, 1.0
        %v3438 = vadd.f32 %v3405, 1.0
        %v3439 = vadd.f32 %v3407, 1.0
        %v3440 = vmul.f32 %v3408, %v3408
        %v3441 = vmul.f32 %v3409, %v3409
        %v3442 = vmul.f32 %v3410, %v3410
        %v3443 = vmul.f32 %v3411, %v3411
        %v3444 = vmul.f32 %v3412, %v3412
        %v3445 = vmul.f32 %v3413, %v3413
        %v3446 = vmul.f32 %v3414, %v3414
        %v3447 = vmul.f32 %v3415, %v3415
        %v3448 = vmul.f32 %v3416, %v3416
        %v3449 = vmul.f32 %v3417, %v3417
        %v3450 = vmul.f32 %v3418, %v3418
        %v3451 = vmul.f32 %v3419, %v3419
        %v3452 = vmul.f32 %v3420, %v3420
        %v3453 = vmul.f32 %v3421, %v3421
        %v3454 = vmul.f32 %v3422, %v3422
        %v3455 = vmul.f32 %v3423, %v3423
        %v3456 = vmul.f32 %v3424, %v3424
        %v3457 = vmul.f32 %v3425, %v3425
        %v3458 = vmul.f32 %v3426, %v3426
        %v3459 = vmul.f32 %v3427, %v3427
        %v3460 = vmul.f32 %v3428, %v3428
        %v3461 = vmul.f32 %v3429, %v3429
        %v3462 = vmul.f32 %v3430, %v3430
        %v3463 = vmul.f32 %v3431, %v3431
        %v3464 = vmul.f32 %v3432, %v3432
        %v3465 = vmul.f32 %v3433, %v3433
        %v3466 = vmul.f32 %v3434, %v3434
        %v3467 = vmul.f32 %v3435, %v3435
        %v3468 = vmul.f32 %v3436, %v3436
        %v3469 = vmul.f32 %v3437, %v3437
        %v3470 = vmul.f32 %v3438, %v3438
        %v3471 = vmul.f32 %v3439, %v3439
        %v3472 = vadd.f32 %v3440, 1.0
        %v3473 = vadd.f32 %v3441, 1.0
        %v3474 = vadd.f32 %v3442, 1.0
        %v3475 = vadd.f32 %v3443, 1.0
        %v3476 = vadd.f32 %v3444, 1.0
        %v3477 = vadd.f32 %v3445, 1.0
        %v3478 = vadd.f32 %v3446, 1.0
        %v3479 = vadd.f32 %v3447, 1.0
        %v3480 = vadd.f32 %v3448, 1.0
        %v3481 = vadd.f32 %v3449, 1.0
        %v3482 = vadd.f32 %v3450, 1.0
        %v3483 = vadd.f32 %v3451, 1.0
        %v3484 = vadd.f32 %v3452, 1.0
        %v3485 = vadd.f32 %v3453, 1.0
        %v3486 = vadd.f32 %v3454, 1.0
        %v3487 = vadd.f32 %v3455, 1.0
        %v3488 = vadd.f32 %v3456, 1.0
        %v3489 = vadd.f32 %v3457, 1.0
        %v3490 = vadd.f32 %v3458, 1.0
        %v3491 = vadd.f32 %v3459, 1.0
        %v3492 = vadd.f32 %v3460, 1.0
        %v3493 = vadd.f32 %v3461, 1.0
        %v3494 = vadd.f32 %v3462, 1.0
        %v3495 = vadd.f32 %v3463, 1.0
        %v3496 = vadd.f32 %v3464, 1.0
        %v3497 = vadd.f32 %v3465, 1.0
        %v3498 = vadd.f32 %v3466, 1.0
        %v3499 = vadd.f32 %v3467, 1.0
        %v3500 = vadd.f32 %v3468, 1.0
        %v3501 = vadd.f32 %v3469, 1.0
        %v3502 = vadd.f32 %v3470, 1.0
        %v3503 = vadd.f32 %v3471, 1.0
        %v3504 = vrcp.pop %v3472
        %v3505 = vrcp.pop %v3473
        %v3506 = vrcp.pop %v3474
        %v3507 = vrcp.pop %v3475
        %v3508 = vrcp.pop %v3476
        %v3509 = vrcp.pop %v3477
        %v3510 = vrcp.pop %v3478
        %v3511 = vrcp.pop %v3479
        %v3512 = vrcp.pop %v3480
        %v3513 = vrcp.pop %v3481
        %v3514 = vrcp.pop %v3482
        %v3515 = vrcp.pop %v3483
        %v3516 = vrcp.pop %v3484
        %v3517 = vrcp.pop %v3485
        %v3518 = vrcp.pop %v3486
        %v3519 = vrcp.pop %v3487
        %v3520 = vrcp.pop %v3488
        %v3521 = vrcp.pop %v3489
        %v3522 = vrcp.pop %v3490
        %v3523 = vrcp.pop %v3491
        %v3524 = vrcp.pop %v3492
        %v3525 = vrcp.pop %v3493
        %v3526 = vrcp.pop %v3494
        %v3527 = vrcp.pop %v3495
        %v3528 = vrcp.pop %v3496
        %v3529 = vrcp.pop %v3497
        %v3530 = vrcp.pop %v3498
        %v3531 = vrcp.pop %v3499
        %v3532 = vrcp.pop %v3500
        %v3533 = vrcp.pop %v3501
        %v3534 = vrcp.pop %v3502
        %v3535 = vrcp.pop %v3503
        %v3536 = vmul.f32 %v3472, %v3504
        %v3537 = vmul.f32 %v3473, %v3505
        %v3538 = vmul.f32 %v3474, %v3506
        %v3539 = vmul.f32 %v3475, %v3507
        %v3540 = vmul.f32 %v3476, %v3508
        %v3541 = vmul.f32 %v3477, %v3509
        %v3542 = vmul.f32 %v3478, %v3510
        %v3543 = vmul.f32 %v3479, %v3511
        %v3544 = vmul.f32 %v3480, %v3512
        %v3545 = vmul.f32 %v3481, %v3513
        %v3546 = vmul.f32 %v3482, %v3514
        %v3547 = vmul.f32 %v3483, %v3515
        %v3548 = vmul.f32 %v3484, %v3516
        %v3549 = vmul.f32 %v3485, %v3517
        %v3550 = vmul.f32 %v3486, %v3518
        %v3551 = vmul.f32 %v3487, %v3519
        %v3552 = vmul.f32 %v3488, %v3520
        %v3553 = vmul.f32 %v3489, %v3521
        %v3554 = vmul.f32 %v3490, %v3522
        %v3555 = vmul.f32 %v3491, %v3523
        %v3556 = vmul.f32 %v3492, %v3524
        %v3557 = vmul.f32 %v3493, %v3525
        %v3558 = vmul.f32 %v3494, %v3526
        %v3559 = vmul.f32 %v3495, %v3527
        %v3560 = vmul.f32 %v3496, %v3528
        %v3561 = vmul.f32 %v3497, %v3529
        %v3562 = vmul.f32 %v3498, %v3530
        %v3563 = vmul.f32 %v3499, %v3531
        %v3564 = vmul.f32 %v3500, %v3532
        %v3565 = vmul.f32 %v3501, %v3533
        %v3566 = vmul.f32 %v3502, %v3534
        %v3567 = vmul.f32 %v3503, %v3535
        %v3568 = vsub.f32 2.0, %v3536
        %v3569 = vsub.f32 2.0, %v3537
        %v3570 = vsub.f32 2.0, %v3538
        %v3571 = vsub.f32 2.0, %v3539
        %v3572 = vsub.f32 2.0, %v3540
        %v3573 = vsub.f32 2.0, %v3541
        %v3574 = vsub.f32 2.0, %v3542
        %v3575 = vsub.f32 2.0, %v3543
        %v3576 = vsub.f32 2.0, %v3544
        %v3577 = vsub.f32 2.0, %v3545
        %v3578 = vsub.f32 2.0, %v3546
        %v3579 = vsub.f32 2.0, %v3547
        %v3580 = vsub.f32 2.0, %v3548
        %v3581 = vsub.f32 2.0, %v3549
        %v3582 = vsub.f32 2.0, %v3550
        %v3583 = vsub.f32 2.0, %v3551
        %v3584 = vsub.f32 2.0, %v3552
        %v3585 = vsub.f32 2.0, %v3553
        %v3586 = vsub.f32 2.0, %v3554
        %v3587 = vsub.f32 2.0, %v3555
        %v3588 = vsub.f32 2.0, %v3556
        %v3589 = vsub.f32 2.0, %v3557
        %v3590 = vsub.f32 2.0, %v3558
        %v3591 = vsub.f32 2.0, %v3559
        %v3592 = vsub.f32 2.0, %v3560
        %v3593 = vsub.f32 2.0, %v3561
        %v3594 = vsub.f32 2.0, %v3562
        %v3595 = vsub.f32 2.0, %v3563
        %v3596 = vsub.f32 2.0, %v3564
        %v3597 = vsub.f32 2.0, %v3565
        %v3598 = vsub.f32 2.0, %v3566
        %v3599 = vsub.f32 2.0, %v3567
        %v3600 = vmul.f32 %v3504, %v3568
        %v3601 = vmul.f32 %v3505, %v3569
        %v3602 = vmul.f32 %v3506, %v3570
        %v3603 = vmul.f32 %v3507, %v3571
        %v3604 = vmul.f32 %v3508, %v3572
        %v3605 = vmul.f32 %v3509, %v3573
        %v3606 = vmul.f32 %v3510, %v3574
        %v3607 = vmul.f32 %v3511, %v3575
        %v3608 = vmul.f32 %v3512, %v3576
        %v3609 = vmul.f32 %v3513, %v3577
        %v3610 = vmul.f32 %v3514, %v3578
        %v3611 = vmul.f32 %v3515, %v3579
        %v3612 = vmul.f32 %v3516, %v3580
        %v3613 = vmul.f32 %v3517, %v3581
        %v3614 = vmul.f32 %v3518, %v3582
        %v3615 = vmul.f32 %v3519, %v3583
        %v3616 = vmul.f32 %v3520, %v3584
        %v3617 = vmul.f32 %v3521, %v3585
        %v3618 = vmul.f32 %v3522, %v3586
        %v3619 = vmul.f32 %v3523, %v3587
        %v3620 = vmul.f32 %v3524, %v3588
        %v3621 = vmul.f32 %v3525, %v3589
        %v3622 = vmul.f32 %v3526, %v3590
        %v3623 = vmul.f32 %v3527, %v3591
        %v3624 = vmul.f32 %v3528, %v3592
        %v3625 = vmul.f32 %v3529, %v3593
        %v3626 = vmul.f32 %v3530, %v3594
        %v3627 = vmul.f32 %v3531, %v3595
        %v3628 = vmul.f32 %v3532, %v3596
        %v3629 = vmul.f32 %v3533, %v3597
        %v3630 = vmul.f32 %v3534, %v3598
        %v3631 = vmul.f32 %v3535, %v3599
        %v3632 = vmul.f32 %v3600, 2.0
        %v3633 = vmul.f32 %v3601, 2.0
        %v3634 = vmul.f32 %v3602, 2.0
        %v3635 = vmul.f32 %v3603, 2.0
        %v3636 = vmul.f32 %v3604, 2.0
        %v3637 = vmul.f32 %v3605, 2.0
        %v3638 = vmul.f32 %v3606, 2.0
        %v3639 = vmul.f32 %v3607, 2.0
        %v3640 = vmul.f32 %v3608, 2.0
        %v3641 = vmul.f32 %v3609, 2.0
        %v3642 = vmul.f32 %v3610, 2.0
        %v3643 = vmul.f32 %v3611, 2.0
        %v3644 = vmul.f32 %v3612, 2.0
        %v3645 = vmul.f32 %v3613, 2.0
        %v3646 = vmul.f32 %v3614, 2.0
        %v3647 = vmul.f32 %v3615, 2.0
        %v3648 = vmul.f32 %v3616, 2.0
        %v3649 = vmul.f32 %v3617, 2.0
        %v3650 = vmul.f32 %v3618, 2.0
        %v3651 = vmul.f32 %v3619, 2.0
        %v3652 = vmul.f32 %v3620, 2.0
        %v3653 = vmul.f32 %v3621, 2.0
        %v3654 = vmul.f32 %v3622, 2.0
        %v3655 = vmul.f32 %v3623, 2.0
        %v3656 = vmul.f32 %v3624, 2.0
        %v3657 = vmul.f32 %v3625, 2.0
        %v3658 = vmul.f32 %v3626, 2.0
        %v3659 = vmul.f32 %v3627, 2.0
        %v3660 = vmul.f32 %v3628, 2.0
        %v3661 = vmul.f32 %v3629, 2.0
        %v3662 = vmul.f32 %v3630, 2.0
        %v3663 = vmul.f32 %v3631, 2.0
        %v3664 = vsub.f32 1.0, %v3632
        %v3665 = vsub.f32 1.0, %v3633
        %v3666 = vsub.f32 1.0, %v3634
        %v3667 = vsub.f32 1.0, %v3635
        %v3668 = vsub.f32 1.0, %v3636
        %v3669 = vsub.f32 1.0, %v3637
        %v3670 = vsub.f32 1.0, %v3638
        %v3671 = vsub.f32 1.0, %v3639
        %v3672 = vsub.f32 1.0, %v3640
        %v3673 = vsub.f32 1.0, %v3641
        %v3674 = vsub.f32 1.0, %v3642
        %v3675 = vsub.f32 1.0, %v3643
        %v3676 = vsub.f32 1.0, %v3644
        %v3677 = vsub.f32 1.0, %v3645
        %v3678 = vsub.f32 1.0, %v3646
        %v3679 = vsub.f32 1.0, %v3647
        %v3680 = vsub.f32 1.0, %v3648
        %v3681 = vsub.f32 1.0, %v3649
        %v3682 = vsub.f32 1.0, %v3650
        %v3683 = vsub.f32 1.0, %v3651
        %v3684 = vsub.f32 1.0, %v3652
        %v3685 = vsub.f32 1.0, %v3653
        %v3686 = vsub.f32 1.0, %v3654
        %v3687 = vsub.f32 1.0, %v3655
        %v3688 = vsub.f32 1.0, %v3656
        %v3689 = vsub.f32 1.0, %v3657
        %v3690 = vsub.f32 1.0, %v3658
        %v3691 = vsub.f32 1.0, %v3659
        %v3692 = vsub.f32 1.0, %v3660
        %v3693 = vsub.f32 1.0, %v3661
        %v3694 = vsub.f32 1.0, %v3662
        %v3695 = vsub.f32 1.0, %v3663
        %v3696 = vmul.f32 %v3280, %v3664
        %v3697 = vmul.f32 %v3281, %v3665
        %v3698 = vmul.f32 %v3282, %v3666
        %v3699 = vmul.f32 %v3283, %v3667
        %v3700 = vmul.f32 %v3284, %v3668
        %v3701 = vmul.f32 %v3285, %v3669
        %v3702 = vmul.f32 %v3286, %v3670
        %v3703 = vmul.f32 %v3287, %v3671
        %v3704 = vmul.f32 %v3288, %v3672
        %v3705 = vmul.f32 %v3289, %v3673
        %v3706 = vmul.f32 %v3290, %v3674
        %v3707 = vmul.f32 %v3291, %v3675
        %v3708 = vmul.f32 %v3292, %v3676
        %v3709 = vmul.f32 %v3293, %v3677
        %v3710 = vmul.f32 %v3294, %v3678
        %v3711 = vmul.f32 %v3295, %v3679
        %v3712 = vmul.f32 %v3296, %v3680
        %v3713 = vmul.f32 %v3297, %v3681
        %v3714 = vmul.f32 %v3298, %v3682
        %v3715 = vmul.f32 %v3299, %v3683
        %v3716 = vmul.f32 %v3300, %v3684
        %v3717 = vmul.f32 %v3301, %v3685
        %v3718 = vmul.f32 %v3302, %v3686
        %v3719 = vmul.f32 %v3303, %v3687
        %v3720 = vmul.f32 %v3304, %v3688
        %v3721 = vmul.f32 %v3305, %v3689
        %v3722 = vmul.f32 %v3306, %v3690
        %v3723 = vmul.f32 %v3307, %v3691
        %v3724 = vmul.f32 %v3308, %v3692
        %v3725 = vmul.f32 %v3309, %v3693
        %v3726 = vmul.f32 %v3310, %v3694
        %v3727 = vmul.f32 %v3311, %v3695
        %v3728 = vld [vmem:[#allocation10] sm:$0xf]
        %v3729 = vld [vmem:[#allocation10 + $0x4] sm:$0xf]
        %v3730 = vld [vmem:[#allocation10 + $0x8] sm:$0xf]
        %v3731 = vld [vmem:[#allocation10 + $0xc] sm:$0xf]
        %v3732 = vld [vmem:[#allocation10 + $0x10] sm:$0xf]
        %v3733 = vld [vmem:[#allocation10 + $0x14] sm:$0xf]
        %v3734 = vld [vmem:[#allocation10 + $0x18] sm:$0xf]
        %v3735 = vld [vmem:[#allocation10 + $0x1c] sm:$0xf]
        %v3736 = vld [vmem:[#allocation10 + $0x20] sm:$0xf]
        %v3737 = vld [vmem:[#allocation10 + $0x24] sm:$0xf]
        %v3738 = vld [vmem:[#allocation10 + $0x28] sm:$0xf]
        %v3739 = vld [vmem:[#allocation10 + $0x2c] sm:$0xf]
        %v3740 = vld [vmem:[#allocation10 + $0x30] sm:$0xf]
        %v3741 = vld [vmem:[#allocation10 + $0x34] sm:$0xf]
        %v3742 = vld [vmem:[#allocation10 + $0x38] sm:$0xf]
        %v3743 = vld [vmem:[#allocation10 + $0x3c] sm:$0xf]
        %v3744 = vld [vmem:[%s8] sm:$0x1]
        %v3746 = vlaneseq
        %v3747 = vshrl.u32 %v3746, 7
        %v3748 = vsub.s32 0, %v3747
        %v3749 = vrot.slane %v3744, %v3748
        %v3767 = vunpack.c.l.b16 %v3728
        %v3768 = vunpack.c.l.b16 %v3729
        %v3769 = vunpack.c.l.b16 %v3730
        %v3770 = vunpack.c.l.b16 %v3731
        %v3771 = vunpack.c.l.b16 %v3732
        %v3772 = vunpack.c.l.b16 %v3733
        %v3773 = vunpack.c.l.b16 %v3734
        %v3774 = vunpack.c.l.b16 %v3735
        %v3775 = vunpack.c.l.b16 %v3736
        %v3776 = vunpack.c.l.b16 %v3737
        %v3777 = vunpack.c.l.b16 %v3738
        %v3778 = vunpack.c.l.b16 %v3739
        %v3779 = vunpack.c.l.b16 %v3740
        %v3780 = vunpack.c.l.b16 %v3741
        %v3781 = vunpack.c.l.b16 %v3742
        %v3782 = vunpack.c.l.b16 %v3743
        %v3783 = vpack.c.b16 %v3768, %v3767
        %v3784 = vpack.c.b16 %v3770, %v3769
        %v3785 = vpack.c.b16 %v3772, %v3771
        %v3786 = vpack.c.b16 %v3774, %v3773
        %v3787 = vpack.c.b16 %v3776, %v3775
        %v3788 = vpack.c.b16 %v3778, %v3777
        %v3789 = vpack.c.b16 %v3780, %v3779
        %v3790 = vpack.c.b16 %v3782, %v3781
        %3799 = vmatprep.subr.bf16.mxu0 0
        %3800 = vmatpush1.bf16.msra.mxu0 %v3783
        %3801 = vmatprep.subr.bf16.mxu0 0
        %3802 = vmatpush1.bf16.msra.mxu0 %v3784
        %3803 = vmatprep.subr.bf16.mxu0 0
        %3804 = vmatpush1.bf16.msra.mxu0 %v3785
        %3805 = vmatprep.subr.bf16.mxu0 0
        %3806 = vmatpush1.bf16.msra.mxu0 %v3786
        %3807 = vmatprep.subr.bf16.mxu0 0
        %3808 = vmatpush1.bf16.msra.mxu0 %v3787
        %3809 = vmatprep.subr.bf16.mxu0 0
        %3810 = vmatpush1.bf16.msra.mxu0 %v3788
        %3811 = vmatprep.subr.bf16.mxu0 0
        %3812 = vmatpush1.bf16.msra.mxu0 %v3789
        %3813 = vmatprep.subr.bf16.mxu0 0
        %3814 = vmatpush1.bf16.msra.mxu0 %v3790
        %3815 = vmatprep.subr.bf16.mxu0 0
        %3816 = vmatpush1.bf16.msra.mxu0 0
        %3817 = vmatprep.subr.bf16.mxu0 0
        %3818 = vmatpush1.bf16.msra.mxu0 0
        %3819 = vmatprep.subr.bf16.mxu0 0
        %3820 = vmatpush1.bf16.msra.mxu0 0
        %3821 = vmatprep.subr.bf16.mxu0 0
        %3822 = vmatpush1.bf16.msra.mxu0 0
        %3823 = vmatprep.subr.bf16.mxu0 0
        %3824 = vmatpush1.bf16.msra.mxu0 0
        %3825 = vmatprep.subr.bf16.mxu0 0
        %3826 = vmatpush1.bf16.msra.mxu0 0
        %3827 = vmatprep.subr.bf16.mxu0 0
        %3828 = vmatpush1.bf16.msra.mxu0 0
        %3829 = vmatprep.subr.bf16.mxu0 0
        %3830 = vmatpush1.bf16.msra.mxu0 0
        %3831 = vmatprep.mubr.bf16.mxu0 0
        %3832 = vmatmul.mubr.bf16.gmra.mrb[0].mxu0 %v990
        %v3833 = vpop.f32.mrb[0].mxu0
        %v3834 = vadd.f32 %v3749, %v3833
        %v3835 = vpop.f32.mrb[0].mxu0
        %v3836 = vpop.f32.mrb[0].mxu0
        %v3837 = vadd.f32 %v3749, %v3836
        %v3838 = vpop.f32.mrb[0].mxu0
        %3839 = vmatprep.mubr.bf16.mxu0 0
        %3840 = vmatmul.mubr.bf16.gmra.mrb[0].mxu0 %v991
        %v3841 = vpop.f32.mrb[0].mxu0
        %v3842 = vadd.f32 %v3749, %v3841
        %v3843 = vpop.f32.mrb[0].mxu0
        %v3844 = vpop.f32.mrb[0].mxu0
        %v3845 = vadd.f32 %v3749, %v3844
        %v3846 = vpop.f32.mrb[0].mxu0
        %3847 = vmatprep.mubr.bf16.mxu0 0
        %3848 = vmatmul.mubr.bf16.gmra.mrb[0].mxu0 %v992
        %v3849 = vpop.f32.mrb[0].mxu0
        %v3850 = vadd.f32 %v3749, %v3849
        %v3851 = vpop.f32.mrb[0].mxu0
        %v3852 = vpop.f32.mrb[0].mxu0
        %v3853 = vadd.f32 %v3749, %v3852
        %v3854 = vpop.f32.mrb[0].mxu0
        %3855 = vmatprep.mubr.bf16.mxu0 0
        %3856 = vmatmul.mubr.bf16.gmra.mrb[0].mxu0 %v993
        %v3857 = vpop.f32.mrb[0].mxu0
        %v3858 = vadd.f32 %v3749, %v3857
        %v3859 = vpop.f32.mrb[0].mxu0
        %v3860 = vpop.f32.mrb[0].mxu0
        %v3861 = vadd.f32 %v3749, %v3860
        %v3862 = vpop.f32.mrb[0].mxu0
        %3863 = vmatprep.mubr.bf16.mxu0 0
        %3864 = vmatmul.mubr.bf16.gmra.mrb[0].mxu0 %v994
        %v3865 = vpop.f32.mrb[0].mxu0
        %v3866 = vadd.f32 %v3749, %v3865
        %v3867 = vpop.f32.mrb[0].mxu0
        %v3868 = vpop.f32.mrb[0].mxu0
        %v3869 = vadd.f32 %v3749, %v3868
        %v3870 = vpop.f32.mrb[0].mxu0
        %3871 = vmatprep.mubr.bf16.mxu0 0
        %3872 = vmatmul.mubr.bf16.gmra.mrb[0].mxu0 %v995
        %v3873 = vpop.f32.mrb[0].mxu0
        %v3874 = vadd.f32 %v3749, %v3873
        %v3875 = vpop.f32.mrb[0].mxu0
        %v3876 = vpop.f32.mrb[0].mxu0
        %v3877 = vadd.f32 %v3749, %v3876
        %v3878 = vpop.f32.mrb[0].mxu0
        %3879 = vmatprep.mubr.bf16.mxu0 0
        %3880 = vmatmul.mubr.bf16.gmra.mrb[0].mxu0 %v996
        %v3881 = vpop.f32.mrb[0].mxu0
        %v3882 = vadd.f32 %v3749, %v3881
        %v3883 = vpop.f32.mrb[0].mxu0
        %v3884 = vpop.f32.mrb[0].mxu0
        %v3885 = vadd.f32 %v3749, %v3884
        %v3886 = vpop.f32.mrb[0].mxu0
        %3887 = vmatprep.mubr.bf16.mxu0 0
        %3888 = vmatmul.mubr.bf16.gmra.mrb[0].mxu0 %v997
        %v3889 = vpop.f32.mrb[0].mxu0
        %v3890 = vadd.f32 %v3749, %v3889
        %v3891 = vpop.f32.mrb[0].mxu0
        %v3892 = vpop.f32.mrb[0].mxu0
        %v3893 = vadd.f32 %v3749, %v3892
        %v3894 = vpop.f32.mrb[0].mxu0
        %3895 = vmatprep.mubr.bf16.mxu0 0
        %3896 = vmatmul.mubr.bf16.gmra.mrb[0].mxu0 %v998
        %v3897 = vpop.f32.mrb[0].mxu0
        %v3898 = vadd.f32 %v3749, %v3897
        %v3899 = vpop.f32.mrb[0].mxu0
        %v3900 = vpop.f32.mrb[0].mxu0
        %v3901 = vadd.f32 %v3749, %v3900
        %v3902 = vpop.f32.mrb[0].mxu0
        %3903 = vmatprep.mubr.bf16.mxu0 0
        %3904 = vmatmul.mubr.bf16.gmra.mrb[0].mxu0 %v999
        %v3905 = vpop.f32.mrb[0].mxu0
        %v3906 = vadd.f32 %v3749, %v3905
        %v3907 = vpop.f32.mrb[0].mxu0
        %v3908 = vpop.f32.mrb[0].mxu0
        %v3909 = vadd.f32 %v3749, %v3908
        %v3910 = vpop.f32.mrb[0].mxu0
        %3911 = vmatprep.mubr.bf16.mxu0 0
        %3912 = vmatmul.mubr.bf16.gmra.mrb[0].mxu0 %v1000
        %v3913 = vpop.f32.mrb[0].mxu0
        %v3914 = vadd.f32 %v3749, %v3913
        %v3915 = vpop.f32.mrb[0].mxu0
        %v3916 = vpop.f32.mrb[0].mxu0
        %v3917 = vadd.f32 %v3749, %v3916
        %v3918 = vpop.f32.mrb[0].mxu0
        %3919 = vmatprep.mubr.bf16.mxu0 0
        %3920 = vmatmul.mubr.bf16.gmra.mrb[0].mxu0 %v1001
        %v3921 = vpop.f32.mrb[0].mxu0
        %v3922 = vadd.f32 %v3749, %v3921
        %v3923 = vpop.f32.mrb[0].mxu0
        %v3924 = vpop.f32.mrb[0].mxu0
        %v3925 = vadd.f32 %v3749, %v3924
        %v3926 = vpop.f32.mrb[0].mxu0
        %3927 = vmatprep.mubr.bf16.mxu0 0
        %3928 = vmatmul.mubr.bf16.gmra.mrb[0].mxu0 %v1002
        %v3929 = vpop.f32.mrb[0].mxu0
        %v3930 = vadd.f32 %v3749, %v3929
        %v3931 = vpop.f32.mrb[0].mxu0
        %v3932 = vpop.f32.mrb[0].mxu0
        %v3933 = vadd.f32 %v3749, %v3932
        %v3934 = vpop.f32.mrb[0].mxu0
        %3935 = vmatprep.mubr.bf16.mxu0 0
        %3936 = vmatmul.mubr.bf16.gmra.mrb[0].mxu0 %v1003
        %v3937 = vpop.f32.mrb[0].mxu0
        %v3938 = vadd.f32 %v3749, %v3937
        %v3939 = vpop.f32.mrb[0].mxu0
        %v3940 = vpop.f32.mrb[0].mxu0
        %v3941 = vadd.f32 %v3749, %v3940
        %v3942 = vpop.f32.mrb[0].mxu0
        %3943 = vmatprep.mubr.bf16.mxu0 0
        %3944 = vmatmul.mubr.bf16.gmra.mrb[0].mxu0 %v1004
        %v3945 = vpop.f32.mrb[0].mxu0
        %v3946 = vadd.f32 %v3749, %v3945
        %v3947 = vpop.f32.mrb[0].mxu0
        %v3948 = vpop.f32.mrb[0].mxu0
        %v3949 = vadd.f32 %v3749, %v3948
        %v3950 = vpop.f32.mrb[0].mxu0
        %3951 = vmatprep.mubr.bf16.mxu0 0
        %3952 = vmatmul.mubr.bf16.gmra.mrb[0].mxu0 %v1005
        %v3953 = vpop.f32.mrb[0].mxu0
        %v3954 = vadd.f32 %v3749, %v3953
        %v3955 = vpop.f32.mrb[0].mxu0
        %v3956 = vpop.f32.mrb[0].mxu0
        %v3957 = vadd.f32 %v3749, %v3956
        %v3958 = vpop.f32.mrb[0].mxu0
        %3959 = vdwg.mxu0
        %v3960 = vmin.f32 %v3834, 20.0
        %v3961 = vmin.f32 %v3837, 20.0
        %v3962 = vmin.f32 %v3842, 20.0
        %v3963 = vmin.f32 %v3845, 20.0
        %v3964 = vmin.f32 %v3850, 20.0
        %v3965 = vmin.f32 %v3853, 20.0
        %v3966 = vmin.f32 %v3858, 20.0
        %v3967 = vmin.f32 %v3861, 20.0
        %v3968 = vmin.f32 %v3866, 20.0
        %v3969 = vmin.f32 %v3869, 20.0
        %v3970 = vmin.f32 %v3874, 20.0
        %v3971 = vmin.f32 %v3877, 20.0
        %v3972 = vmin.f32 %v3882, 20.0
        %v3973 = vmin.f32 %v3885, 20.0
        %v3974 = vmin.f32 %v3890, 20.0
        %v3975 = vmin.f32 %v3893, 20.0
        %v3976 = vmin.f32 %v3898, 20.0
        %v3977 = vmin.f32 %v3901, 20.0
        %v3978 = vmin.f32 %v3906, 20.0
        %v3979 = vmin.f32 %v3909, 20.0
        %v3980 = vmin.f32 %v3914, 20.0
        %v3981 = vmin.f32 %v3917, 20.0
        %v3982 = vmin.f32 %v3922, 20.0
        %v3983 = vmin.f32 %v3925, 20.0
        %v3984 = vmin.f32 %v3930, 20.0
        %v3985 = vmin.f32 %v3933, 20.0
        %v3986 = vmin.f32 %v3938, 20.0
        %v3987 = vmin.f32 %v3941, 20.0
        %v3988 = vmin.f32 %v3946, 20.0
        %v3989 = vmin.f32 %v3949, 20.0
        %v3990 = vmin.f32 %v3954, 20.0
        %v3991 = vmin.f32 %v3957, 20.0
        %v3992 = vmul.f32 %v3960, 1.442695
        %v3993 = vpow.pop %v3992
        %v3994 = vmul.f32 %v3961, 1.442695
        %v3995 = vpow.pop %v3994
        %v3996 = vmul.f32 %v3962, 1.442695
        %v3997 = vpow.pop %v3996
        %v3998 = vmul.f32 %v3963, 1.442695
        %v3999 = vpow.pop %v3998
        %v4000 = vmul.f32 %v3964, 1.442695
        %v4001 = vpow.pop %v4000
        %v4002 = vmul.f32 %v3965, 1.442695
        %v4003 = vpow.pop %v4002
        %v4004 = vmul.f32 %v3966, 1.442695
        %v4005 = vpow.pop %v4004
        %v4006 = vmul.f32 %v3967, 1.442695
        %v4007 = vpow.pop %v4006
        %v4008 = vmul.f32 %v3968, 1.442695
        %v4009 = vpow.pop %v4008
        %v4010 = vmul.f32 %v3969, 1.442695
        %v4011 = vpow.pop %v4010
        %v4012 = vmul.f32 %v3970, 1.442695
        %v4013 = vpow.pop %v4012
        %v4014 = vmul.f32 %v3971, 1.442695
        %v4015 = vpow.pop %v4014
        %v4016 = vmul.f32 %v3972, 1.442695
        %v4017 = vpow.pop %v4016
        %v4018 = vmul.f32 %v3973, 1.442695
        %v4019 = vpow.pop %v4018
        %v4020 = vmul.f32 %v3974, 1.442695
        %v4021 = vpow.pop %v4020
        %v4022 = vmul.f32 %v3975, 1.442695
        %v4023 = vpow.pop %v4022
        %v4024 = vmul.f32 %v3976, 1.442695
        %v4025 = vpow.pop %v4024
        %v4026 = vmul.f32 %v3977, 1.442695
        %v4027 = vpow.pop %v4026
        %v4028 = vmul.f32 %v3978, 1.442695
        %v4029 = vpow.pop %v4028
        %v4030 = vmul.f32 %v3979, 1.442695
        %v4031 = vpow.pop %v4030
        %v4032 = vmul.f32 %v3980, 1.442695
        %v4033 = vpow.pop %v4032
        %v4034 = vmul.f32 %v3981, 1.442695
        %v4035 = vpow.pop %v4034
        %v4036 = vmul.f32 %v3982, 1.442695
        %v4037 = vpow.pop %v4036
        %v4038 = vmul.f32 %v3983, 1.442695
        %v4039 = vpow.pop %v4038
        %v4040 = vmul.f32 %v3984, 1.442695
        %v4041 = vpow.pop %v4040
        %v4042 = vmul.f32 %v3985, 1.442695
        %v4043 = vpow.pop %v4042
        %v4044 = vmul.f32 %v3986, 1.442695
        %v4045 = vpow.pop %v4044
        %v4046 = vmul.f32 %v3987, 1.442695
        %v4047 = vpow.pop %v4046
        %v4048 = vmul.f32 %v3988, 1.442695
        %v4049 = vpow.pop %v4048
        %v4050 = vmul.f32 %v3989, 1.442695
        %v4051 = vpow.pop %v4050
        %v4052 = vmul.f32 %v3990, 1.442695
        %v4053 = vpow.pop %v4052
        %v4054 = vmul.f32 %v3991, 1.442695
        %v4055 = vpow.pop %v4054
        %v4056 = vadd.f32 %v3993, 1.0
        %v4057 = vadd.f32 %v3995, 1.0
        %v4058 = vadd.f32 %v3997, 1.0
        %v4059 = vadd.f32 %v3999, 1.0
        %v4060 = vadd.f32 %v4001, 1.0
        %v4061 = vadd.f32 %v4003, 1.0
        %v4062 = vadd.f32 %v4005, 1.0
        %v4063 = vadd.f32 %v4007, 1.0
        %v4064 = vadd.f32 %v4009, 1.0
        %v4065 = vadd.f32 %v4011, 1.0
        %v4066 = vadd.f32 %v4013, 1.0
        %v4067 = vadd.f32 %v4015, 1.0
        %v4068 = vadd.f32 %v4017, 1.0
        %v4069 = vadd.f32 %v4019, 1.0
        %v4070 = vadd.f32 %v4021, 1.0
        %v4071 = vadd.f32 %v4023, 1.0
        %v4072 = vadd.f32 %v4025, 1.0
        %v4073 = vadd.f32 %v4027, 1.0
        %v4074 = vadd.f32 %v4029, 1.0
        %v4075 = vadd.f32 %v4031, 1.0
        %v4076 = vadd.f32 %v4033, 1.0
        %v4077 = vadd.f32 %v4035, 1.0
        %v4078 = vadd.f32 %v4037, 1.0
        %v4079 = vadd.f32 %v4039, 1.0
        %v4080 = vadd.f32 %v4041, 1.0
        %v4081 = vadd.f32 %v4043, 1.0
        %v4082 = vadd.f32 %v4045, 1.0
        %v4083 = vadd.f32 %v4047, 1.0
        %v4084 = vadd.f32 %v4049, 1.0
        %v4085 = vadd.f32 %v4051, 1.0
        %v4086 = vadd.f32 %v4053, 1.0
        %v4087 = vadd.f32 %v4055, 1.0
        %v4088 = vmul.f32 %v4056, %v4056
        %v4089 = vmul.f32 %v4057, %v4057
        %v4090 = vmul.f32 %v4058, %v4058
        %v4091 = vmul.f32 %v4059, %v4059
        %v4092 = vmul.f32 %v4060, %v4060
        %v4093 = vmul.f32 %v4061, %v4061
        %v4094 = vmul.f32 %v4062, %v4062
        %v4095 = vmul.f32 %v4063, %v4063
        %v4096 = vmul.f32 %v4064, %v4064
        %v4097 = vmul.f32 %v4065, %v4065
        %v4098 = vmul.f32 %v4066, %v4066
        %v4099 = vmul.f32 %v4067, %v4067
        %v4100 = vmul.f32 %v4068, %v4068
        %v4101 = vmul.f32 %v4069, %v4069
        %v4102 = vmul.f32 %v4070, %v4070
        %v4103 = vmul.f32 %v4071, %v4071
        %v4104 = vmul.f32 %v4072, %v4072
        %v4105 = vmul.f32 %v4073, %v4073
        %v4106 = vmul.f32 %v4074, %v4074
        %v4107 = vmul.f32 %v4075, %v4075
        %v4108 = vmul.f32 %v4076, %v4076
        %v4109 = vmul.f32 %v4077, %v4077
        %v4110 = vmul.f32 %v4078, %v4078
        %v4111 = vmul.f32 %v4079, %v4079
        %v4112 = vmul.f32 %v4080, %v4080
        %v4113 = vmul.f32 %v4081, %v4081
        %v4114 = vmul.f32 %v4082, %v4082
        %v4115 = vmul.f32 %v4083, %v4083
        %v4116 = vmul.f32 %v4084, %v4084
        %v4117 = vmul.f32 %v4085, %v4085
        %v4118 = vmul.f32 %v4086, %v4086
        %v4119 = vmul.f32 %v4087, %v4087
        %v4120 = vadd.f32 %v4088, 1.0
        %v4121 = vadd.f32 %v4089, 1.0
        %v4122 = vadd.f32 %v4090, 1.0
        %v4123 = vadd.f32 %v4091, 1.0
        %v4124 = vadd.f32 %v4092, 1.0
        %v4125 = vadd.f32 %v4093, 1.0
        %v4126 = vadd.f32 %v4094, 1.0
        %v4127 = vadd.f32 %v4095, 1.0
        %v4128 = vadd.f32 %v4096, 1.0
        %v4129 = vadd.f32 %v4097, 1.0
        %v4130 = vadd.f32 %v4098, 1.0
        %v4131 = vadd.f32 %v4099, 1.0
        %v4132 = vadd.f32 %v4100, 1.0
        %v4133 = vadd.f32 %v4101, 1.0
        %v4134 = vadd.f32 %v4102, 1.0
        %v4135 = vadd.f32 %v4103, 1.0
        %v4136 = vadd.f32 %v4104, 1.0
        %v4137 = vadd.f32 %v4105, 1.0
        %v4138 = vadd.f32 %v4106, 1.0
        %v4139 = vadd.f32 %v4107, 1.0
        %v4140 = vadd.f32 %v4108, 1.0
        %v4141 = vadd.f32 %v4109, 1.0
        %v4142 = vadd.f32 %v4110, 1.0
        %v4143 = vadd.f32 %v4111, 1.0
        %v4144 = vadd.f32 %v4112, 1.0
        %v4145 = vadd.f32 %v4113, 1.0
        %v4146 = vadd.f32 %v4114, 1.0
        %v4147 = vadd.f32 %v4115, 1.0
        %v4148 = vadd.f32 %v4116, 1.0
        %v4149 = vadd.f32 %v4117, 1.0
        %v4150 = vadd.f32 %v4118, 1.0
        %v4151 = vadd.f32 %v4119, 1.0
        %v4152 = vrcp.pop %v4120
        %v4153 = vrcp.pop %v4121
        %v4154 = vrcp.pop %v4122
        %v4155 = vrcp.pop %v4123
        %v4156 = vrcp.pop %v4124
        %v4157 = vrcp.pop %v4125
        %v4158 = vrcp.pop %v4126
        %v4159 = vrcp.pop %v4127
        %v4160 = vrcp.pop %v4128
        %v4161 = vrcp.pop %v4129
        %v4162 = vrcp.pop %v4130
        %v4163 = vrcp.pop %v4131
        %v4164 = vrcp.pop %v4132
        %v4165 = vrcp.pop %v4133
        %v4166 = vrcp.pop %v4134
        %v4167 = vrcp.pop %v4135
        %v4168 = vrcp.pop %v4136
        %v4169 = vrcp.pop %v4137
        %v4170 = vrcp.pop %v4138
        %v4171 = vrcp.pop %v4139
        %v4172 = vrcp.pop %v4140
        %v4173 = vrcp.pop %v4141
        %v4174 = vrcp.pop %v4142
        %v4175 = vrcp.pop %v4143
        %v4176 = vrcp.pop %v4144
        %v4177 = vrcp.pop %v4145
        %v4178 = vrcp.pop %v4146
        %v4179 = vrcp.pop %v4147
        %v4180 = vrcp.pop %v4148
        %v4181 = vrcp.pop %v4149
        %v4182 = vrcp.pop %v4150
        %v4183 = vrcp.pop %v4151
        %v4184 = vmul.f32 %v4120, %v4152
        %v4185 = vmul.f32 %v4121, %v4153
        %v4186 = vmul.f32 %v4122, %v4154
        %v4187 = vmul.f32 %v4123, %v4155
        %v4188 = vmul.f32 %v4124, %v4156
        %v4189 = vmul.f32 %v4125, %v4157
        %v4190 = vmul.f32 %v4126, %v4158
        %v4191 = vmul.f32 %v4127, %v4159
        %v4192 = vmul.f32 %v4128, %v4160
        %v4193 = vmul.f32 %v4129, %v4161
        %v4194 = vmul.f32 %v4130, %v4162
        %v4195 = vmul.f32 %v4131, %v4163
        %v4196 = vmul.f32 %v4132, %v4164
        %v4197 = vmul.f32 %v4133, %v4165
        %v4198 = vmul.f32 %v4134, %v4166
        %v4199 = vmul.f32 %v4135, %v4167
        %v4200 = vmul.f32 %v4136, %v4168
        %v4201 = vmul.f32 %v4137, %v4169
        %v4202 = vmul.f32 %v4138, %v4170
        %v4203 = vmul.f32 %v4139, %v4171
        %v4204 = vmul.f32 %v4140, %v4172
        %v4205 = vmul.f32 %v4141, %v4173
        %v4206 = vmul.f32 %v4142, %v4174
        %v4207 = vmul.f32 %v4143, %v4175
        %v4208 = vmul.f32 %v4144, %v4176
        %v4209 = vmul.f32 %v4145, %v4177
        %v4210 = vmul.f32 %v4146, %v4178
        %v4211 = vmul.f32 %v4147, %v4179
        %v4212 = vmul.f32 %v4148, %v4180
        %v4213 = vmul.f32 %v4149, %v4181
        %v4214 = vmul.f32 %v4150, %v4182
        %v4215 = vmul.f32 %v4151, %v4183
        %v4216 = vsub.f32 2.0, %v4184
        %v4217 = vsub.f32 2.0, %v4185
        %v4218 = vsub.f32 2.0, %v4186
        %v4219 = vsub.f32 2.0, %v4187
        %v4220 = vsub.f32 2.0, %v4188
        %v4221 = vsub.f32 2.0, %v4189
        %v4222 = vsub.f32 2.0, %v4190
        %v4223 = vsub.f32 2.0, %v4191
        %v4224 = vsub.f32 2.0, %v4192
        %v4225 = vsub.f32 2.0, %v4193
        %v4226 = vsub.f32 2.0, %v4194
        %v4227 = vsub.f32 2.0, %v4195
        %v4228 = vsub.f32 2.0, %v4196
        %v4229 = vsub.f32 2.0, %v4197
        %v4230 = vsub.f32 2.0, %v4198
        %v4231 = vsub.f32 2.0, %v4199
        %v4232 = vsub.f32 2.0, %v4200
        %v4233 = vsub.f32 2.0, %v4201
        %v4234 = vsub.f32 2.0, %v4202
        %v4235 = vsub.f32 2.0, %v4203
        %v4236 = vsub.f32 2.0, %v4204
        %v4237 = vsub.f32 2.0, %v4205
        %v4238 = vsub.f32 2.0, %v4206
        %v4239 = vsub.f32 2.0, %v4207
        %v4240 = vsub.f32 2.0, %v4208
        %v4241 = vsub.f32 2.0, %v4209
        %v4242 = vsub.f32 2.0, %v4210
        %v4243 = vsub.f32 2.0, %v4211
        %v4244 = vsub.f32 2.0, %v4212
        %v4245 = vsub.f32 2.0, %v4213
        %v4246 = vsub.f32 2.0, %v4214
        %v4247 = vsub.f32 2.0, %v4215
        %v4248 = vmul.f32 %v4152, %v4216
        %v4249 = vmul.f32 %v4153, %v4217
        %v4250 = vmul.f32 %v4154, %v4218
        %v4251 = vmul.f32 %v4155, %v4219
        %v4252 = vmul.f32 %v4156, %v4220
        %v4253 = vmul.f32 %v4157, %v4221
        %v4254 = vmul.f32 %v4158, %v4222
        %v4255 = vmul.f32 %v4159, %v4223
        %v4256 = vmul.f32 %v4160, %v4224
        %v4257 = vmul.f32 %v4161, %v4225
        %v4258 = vmul.f32 %v4162, %v4226
        %v4259 = vmul.f32 %v4163, %v4227
        %v4260 = vmul.f32 %v4164, %v4228
        %v4261 = vmul.f32 %v4165, %v4229
        %v4262 = vmul.f32 %v4166, %v4230
        %v4263 = vmul.f32 %v4167, %v4231
        %v4264 = vmul.f32 %v4168, %v4232
        %v4265 = vmul.f32 %v4169, %v4233
        %v4266 = vmul.f32 %v4170, %v4234
        %v4267 = vmul.f32 %v4171, %v4235
        %v4268 = vmul.f32 %v4172, %v4236
        %v4269 = vmul.f32 %v4173, %v4237
        %v4270 = vmul.f32 %v4174, %v4238
        %v4271 = vmul.f32 %v4175, %v4239
        %v4272 = vmul.f32 %v4176, %v4240
        %v4273 = vmul.f32 %v4177, %v4241
        %v4274 = vmul.f32 %v4178, %v4242
        %v4275 = vmul.f32 %v4179, %v4243
        %v4276 = vmul.f32 %v4180, %v4244
        %v4277 = vmul.f32 %v4181, %v4245
        %v4278 = vmul.f32 %v4182, %v4246
        %v4279 = vmul.f32 %v4183, %v4247
        %v4280 = vmul.f32 %v4248, 2.0
        %v4281 = vmul.f32 %v4249, 2.0
        %v4282 = vmul.f32 %v4250, 2.0
        %v4283 = vmul.f32 %v4251, 2.0
        %v4284 = vmul.f32 %v4252, 2.0
        %v4285 = vmul.f32 %v4253, 2.0
        %v4286 = vmul.f32 %v4254, 2.0
        %v4287 = vmul.f32 %v4255, 2.0
        %v4288 = vmul.f32 %v4256, 2.0
        %v4289 = vmul.f32 %v4257, 2.0
        %v4290 = vmul.f32 %v4258, 2.0
        %v4291 = vmul.f32 %v4259, 2.0
        %v4292 = vmul.f32 %v4260, 2.0
        %v4293 = vmul.f32 %v4261, 2.0
        %v4294 = vmul.f32 %v4262, 2.0
        %v4295 = vmul.f32 %v4263, 2.0
        %v4296 = vmul.f32 %v4264, 2.0
        %v4297 = vmul.f32 %v4265, 2.0
        %v4298 = vmul.f32 %v4266, 2.0
        %v4299 = vmul.f32 %v4267, 2.0
        %v4300 = vmul.f32 %v4268, 2.0
        %v4301 = vmul.f32 %v4269, 2.0
        %v4302 = vmul.f32 %v4270, 2.0
        %v4303 = vmul.f32 %v4271, 2.0
        %v4304 = vmul.f32 %v4272, 2.0
        %v4305 = vmul.f32 %v4273, 2.0
        %v4306 = vmul.f32 %v4274, 2.0
        %v4307 = vmul.f32 %v4275, 2.0
        %v4308 = vmul.f32 %v4276, 2.0
        %v4309 = vmul.f32 %v4277, 2.0
        %v4310 = vmul.f32 %v4278, 2.0
        %v4311 = vmul.f32 %v4279, 2.0
        %v4312 = vsub.f32 1.0, %v4280
        %v4313 = vsub.f32 1.0, %v4281
        %v4314 = vsub.f32 1.0, %v4282
        %v4315 = vsub.f32 1.0, %v4283
        %v4316 = vsub.f32 1.0, %v4284
        %v4317 = vsub.f32 1.0, %v4285
        %v4318 = vsub.f32 1.0, %v4286
        %v4319 = vsub.f32 1.0, %v4287
        %v4320 = vsub.f32 1.0, %v4288
        %v4321 = vsub.f32 1.0, %v4289
        %v4322 = vsub.f32 1.0, %v4290
        %v4323 = vsub.f32 1.0, %v4291
        %v4324 = vsub.f32 1.0, %v4292
        %v4325 = vsub.f32 1.0, %v4293
        %v4326 = vsub.f32 1.0, %v4294
        %v4327 = vsub.f32 1.0, %v4295
        %v4328 = vsub.f32 1.0, %v4296
        %v4329 = vsub.f32 1.0, %v4297
        %v4330 = vsub.f32 1.0, %v4298
        %v4331 = vsub.f32 1.0, %v4299
        %v4332 = vsub.f32 1.0, %v4300
        %v4333 = vsub.f32 1.0, %v4301
        %v4334 = vsub.f32 1.0, %v4302
        %v4335 = vsub.f32 1.0, %v4303
        %v4336 = vsub.f32 1.0, %v4304
        %v4337 = vsub.f32 1.0, %v4305
        %v4338 = vsub.f32 1.0, %v4306
        %v4339 = vsub.f32 1.0, %v4307
        %v4340 = vsub.f32 1.0, %v4308
        %v4341 = vsub.f32 1.0, %v4309
        %v4342 = vsub.f32 1.0, %v4310
        %v4343 = vsub.f32 1.0, %v4311
        %v4344 = vmul.f32 %v3834, %v4312
        %v4345 = vmul.f32 %v3837, %v4313
        %v4346 = vmul.f32 %v3842, %v4314
        %v4347 = vmul.f32 %v3845, %v4315
        %v4348 = vmul.f32 %v3850, %v4316
        %v4349 = vmul.f32 %v3853, %v4317
        %v4350 = vmul.f32 %v3858, %v4318
        %v4351 = vmul.f32 %v3861, %v4319
        %v4352 = vmul.f32 %v3866, %v4320
        %v4353 = vmul.f32 %v3869, %v4321
        %v4354 = vmul.f32 %v3874, %v4322
        %v4355 = vmul.f32 %v3877, %v4323
        %v4356 = vmul.f32 %v3882, %v4324
        %v4357 = vmul.f32 %v3885, %v4325
        %v4358 = vmul.f32 %v3890, %v4326
        %v4359 = vmul.f32 %v3893, %v4327
        %v4360 = vmul.f32 %v3898, %v4328
        %v4361 = vmul.f32 %v3901, %v4329
        %v4362 = vmul.f32 %v3906, %v4330
        %v4363 = vmul.f32 %v3909, %v4331
        %v4364 = vmul.f32 %v3914, %v4332
        %v4365 = vmul.f32 %v3917, %v4333
        %v4366 = vmul.f32 %v3922, %v4334
        %v4367 = vmul.f32 %v3925, %v4335
        %v4368 = vmul.f32 %v3930, %v4336
        %v4369 = vmul.f32 %v3933, %v4337
        %v4370 = vmul.f32 %v3938, %v4338
        %v4371 = vmul.f32 %v3941, %v4339
        %v4372 = vmul.f32 %v3946, %v4340
        %v4373 = vmul.f32 %v3949, %v4341
        %v4374 = vmul.f32 %v3954, %v4342
        %v4375 = vmul.f32 %v3957, %v4343
        %v4376 = vpack.c.bf16 %v3697, %v3696
        %v4377 = vpack.c.bf16 %v3699, %v3698
        %v4378 = vpack.c.bf16 %v3701, %v3700
        %v4379 = vpack.c.bf16 %v3703, %v3702
        %v4380 = vpack.c.bf16 %v3705, %v3704
        %v4381 = vpack.c.bf16 %v3707, %v3706
        %v4382 = vpack.c.bf16 %v3709, %v3708
        %v4383 = vpack.c.bf16 %v3711, %v3710
        %v4384 = vpack.c.bf16 %v3713, %v3712
        %v4385 = vpack.c.bf16 %v3715, %v3714
        %v4386 = vpack.c.bf16 %v3717, %v3716
        %v4387 = vpack.c.bf16 %v3719, %v3718
        %v4388 = vpack.c.bf16 %v3721, %v3720
        %v4389 = vpack.c.bf16 %v3723, %v3722
        %v4390 = vpack.c.bf16 %v3725, %v3724
        %v4391 = vpack.c.bf16 %v3727, %v3726
        %v4392 = vpack.c.bf16 %v4345, %v4344
        %v4393 = vpack.c.bf16 %v4347, %v4346
        %v4394 = vpack.c.bf16 %v4349, %v4348
        %v4395 = vpack.c.bf16 %v4351, %v4350
        %v4396 = vpack.c.bf16 %v4353, %v4352
        %v4397 = vpack.c.bf16 %v4355, %v4354
        %v4398 = vpack.c.bf16 %v4357, %v4356
        %v4399 = vpack.c.bf16 %v4359, %v4358
        %v4400 = vpack.c.bf16 %v4361, %v4360
        %v4401 = vpack.c.bf16 %v4363, %v4362
        %v4402 = vpack.c.bf16 %v4365, %v4364
        %v4403 = vpack.c.bf16 %v4367, %v4366
        %v4404 = vpack.c.bf16 %v4369, %v4368
        %v4405 = vpack.c.bf16 %v4371, %v4370
        %v4406 = vpack.c.bf16 %v4373, %v4372
        %v4407 = vpack.c.bf16 %v4375, %v4374
        %v4408 = vld [vmem:[#allocation11] sm:$0xf]
        %v4409 = vld [vmem:[#allocation11 + $0x4] sm:$0xf]
        %v4410 = vld [vmem:[#allocation11 + $0x8] sm:$0xf]
        %v4411 = vld [vmem:[#allocation11 + $0xc] sm:$0xf]
        %v4412 = vld [vmem:[#allocation11 + $0x10] sm:$0xf]
        %v4413 = vld [vmem:[#allocation11 + $0x14] sm:$0xf]
        %v4414 = vld [vmem:[#allocation11 + $0x18] sm:$0xf]
        %v4415 = vld [vmem:[#allocation11 + $0x1c] sm:$0xf]
        %v4416 = vld [vmem:[#allocation11 + $0x20] sm:$0xf]
        %v4417 = vld [vmem:[#allocation11 + $0x24] sm:$0xf]
        %v4418 = vld [vmem:[#allocation11 + $0x28] sm:$0xf]
        %v4419 = vld [vmem:[#allocation11 + $0x2c] sm:$0xf]
        %v4420 = vld [vmem:[#allocation11 + $0x30] sm:$0xf]
        %v4421 = vld [vmem:[#allocation11 + $0x34] sm:$0xf]
        %v4422 = vld [vmem:[#allocation11 + $0x38] sm:$0xf]
        %v4423 = vld [vmem:[#allocation11 + $0x3c] sm:$0xf]
        %v4424 = vld [vmem:[#allocation11 + $0x40] sm:$0xf]
        %v4425 = vld [vmem:[#allocation11 + $0x44] sm:$0xf]
        %v4426 = vld [vmem:[#allocation11 + $0x48] sm:$0xf]
        %v4427 = vld [vmem:[#allocation11 + $0x4c] sm:$0xf]
        %v4428 = vld [vmem:[#allocation11 + $0x50] sm:$0xf]
        %v4429 = vld [vmem:[#allocation11 + $0x54] sm:$0xf]
        %v4430 = vld [vmem:[#allocation11 + $0x58] sm:$0xf]
        %v4431 = vld [vmem:[#allocation11 + $0x5c] sm:$0xf]
        %v4432 = vld [vmem:[#allocation11 + $0x60] sm:$0xf]
        %v4433 = vld [vmem:[#allocation11 + $0x64] sm:$0xf]
        %v4434 = vld [vmem:[#allocation11 + $0x68] sm:$0xf]
        %v4435 = vld [vmem:[#allocation11 + $0x6c] sm:$0xf]
        %v4436 = vld [vmem:[#allocation11 + $0x70] sm:$0xf]
        %v4437 = vld [vmem:[#allocation11 + $0x74] sm:$0xf]
        %v4438 = vld [vmem:[#allocation11 + $0x78] sm:$0xf]
        %v4439 = vld [vmem:[#allocation11 + $0x7c] sm:$0xf]
        %v4440 = vld [vmem:[%s12] sm:$0x1]
        %v4442 = vlaneseq
        %v4443 = vshrl.u32 %v4442, 7
        %v4444 = vsub.s32 0, %v4443
        %v4445 = vrot.slane %v4440, %v4444
        %v4479 = vunpack.c.l.b16 %v4408
        %v4480 = vunpack.c.l.b16 %v4409
        %v4481 = vunpack.c.l.b16 %v4410
        %v4482 = vunpack.c.l.b16 %v4411
        %v4483 = vunpack.c.l.b16 %v4412
        %v4484 = vunpack.c.l.b16 %v4413
        %v4485 = vunpack.c.l.b16 %v4414
        %v4486 = vunpack.c.l.b16 %v4415
        %v4487 = vunpack.c.l.b16 %v4416
        %v4488 = vunpack.c.l.b16 %v4417
        %v4489 = vunpack.c.l.b16 %v4418
        %v4490 = vunpack.c.l.b16 %v4419
        %v4491 = vunpack.c.l.b16 %v4420
        %v4492 = vunpack.c.l.b16 %v4421
        %v4493 = vunpack.c.l.b16 %v4422
        %v4494 = vunpack.c.l.b16 %v4423
        %v4495 = vunpack.c.l.b16 %v4424
        %v4496 = vunpack.c.l.b16 %v4425
        %v4497 = vunpack.c.l.b16 %v4426
        %v4498 = vunpack.c.l.b16 %v4427
        %v4499 = vunpack.c.l.b16 %v4428
        %v4500 = vunpack.c.l.b16 %v4429
        %v4501 = vunpack.c.l.b16 %v4430
        %v4502 = vunpack.c.l.b16 %v4431
        %v4503 = vunpack.c.l.b16 %v4432
        %v4504 = vunpack.c.l.b16 %v4433
        %v4505 = vunpack.c.l.b16 %v4434
        %v4506 = vunpack.c.l.b16 %v4435
        %v4507 = vunpack.c.l.b16 %v4436
        %v4508 = vunpack.c.l.b16 %v4437
        %v4509 = vunpack.c.l.b16 %v4438
        %v4510 = vunpack.c.l.b16 %v4439
        %v4511 = vpack.c.b16 %v4480, %v4479
        %v4512 = vpack.c.b16 %v4482, %v4481
        %v4513 = vpack.c.b16 %v4484, %v4483
        %v4514 = vpack.c.b16 %v4486, %v4485
        %v4515 = vpack.c.b16 %v4488, %v4487
        %v4516 = vpack.c.b16 %v4490, %v4489
        %v4517 = vpack.c.b16 %v4492, %v4491
        %v4518 = vpack.c.b16 %v4494, %v4493
        %v4519 = vpack.c.b16 %v4496, %v4495
        %v4520 = vpack.c.b16 %v4498, %v4497
        %v4521 = vpack.c.b16 %v4500, %v4499
        %v4522 = vpack.c.b16 %v4502, %v4501
        %v4523 = vpack.c.b16 %v4504, %v4503
        %v4524 = vpack.c.b16 %v4506, %v4505
        %v4525 = vpack.c.b16 %v4508, %v4507
        %v4526 = vpack.c.b16 %v4510, %v4509
        %4543 = vmatprep.subr.bf16.mxu0 0
        %4544 = vmatpush1.bf16.msra.mxu0 %v4511
        %4545 = vmatprep.subr.bf16.mxu0 0
        %4546 = vmatpush1.bf16.msra.mxu0 %v4512
        %4547 = vmatprep.subr.bf16.mxu0 0
        %4548 = vmatpush1.bf16.msra.mxu0 %v4513
        %4549 = vmatprep.subr.bf16.mxu0 0
        %4550 = vmatpush1.bf16.msra.mxu0 %v4514
        %4551 = vmatprep.subr.bf16.mxu0 0
        %4552 = vmatpush1.bf16.msra.mxu0 %v4515
        %4553 = vmatprep.subr.bf16.mxu0 0
        %4554 = vmatpush1.bf16.msra.mxu0 %v4516
        %4555 = vmatprep.subr.bf16.mxu0 0
        %4556 = vmatpush1.bf16.msra.mxu0 %v4517
        %4557 = vmatprep.subr.bf16.mxu0 0
        %4558 = vmatpush1.bf16.msra.mxu0 %v4518
        %4559 = vmatprep.subr.bf16.mxu0 0
        %4560 = vmatpush1.bf16.msra.mxu0 %v4519
        %4561 = vmatprep.subr.bf16.mxu0 0
        %4562 = vmatpush1.bf16.msra.mxu0 %v4520
        %4563 = vmatprep.subr.bf16.mxu0 0
        %4564 = vmatpush1.bf16.msra.mxu0 %v4521
        %4565 = vmatprep.subr.bf16.mxu0 0
        %4566 = vmatpush1.bf16.msra.mxu0 %v4522
        %4567 = vmatprep.subr.bf16.mxu0 0
        %4568 = vmatpush1.bf16.msra.mxu0 %v4523
        %4569 = vmatprep.subr.bf16.mxu0 0
        %4570 = vmatpush1.bf16.msra.mxu0 %v4524
        %4571 = vmatprep.subr.bf16.mxu0 0
        %4572 = vmatpush1.bf16.msra.mxu0 %v4525
        %4573 = vmatprep.subr.bf16.mxu0 0
        %4574 = vmatpush1.bf16.msra.mxu0 %v4526
        %4575 = vmatprep.mubr.bf16.mxu0 %v4392
        %4576 = vmatmul.mubr.bf16.gmra.mrb[0].mxu0 %v4376
        %v4577 = vpop.f32.mrb[0].mxu0
        %v4578 = vadd.f32 %v4445, %v4577
        %v4579 = vpop.f32.mrb[0].mxu0
        %v4580 = vpop.f32.mrb[0].mxu0
        %v4581 = vadd.f32 %v4445, %v4580
        %v4582 = vpop.f32.mrb[0].mxu0
        %4583 = vmatprep.mubr.bf16.mxu0 %v4393
        %4584 = vmatmul.mubr.bf16.gmra.mrb[0].mxu0 %v4377
        %v4585 = vpop.f32.mrb[0].mxu0
        %v4586 = vadd.f32 %v4445, %v4585
        %v4587 = vpop.f32.mrb[0].mxu0
        %v4588 = vpop.f32.mrb[0].mxu0
        %v4589 = vadd.f32 %v4445, %v4588
        %v4590 = vpop.f32.mrb[0].mxu0
        %4591 = vmatprep.mubr.bf16.mxu0 %v4394
        %4592 = vmatmul.mubr.bf16.gmra.mrb[0].mxu0 %v4378
        %v4593 = vpop.f32.mrb[0].mxu0
        %v4594 = vadd.f32 %v4445, %v4593
        %v4595 = vpop.f32.mrb[0].mxu0
        %v4596 = vpop.f32.mrb[0].mxu0
        %v4597 = vadd.f32 %v4445, %v4596
        %v4598 = vpop.f32.mrb[0].mxu0
        %4599 = vmatprep.mubr.bf16.mxu0 %v4395
        %4600 = vmatmul.mubr.bf16.gmra.mrb[0].mxu0 %v4379
        %v4601 = vpop.f32.mrb[0].mxu0
        %v4602 = vadd.f32 %v4445, %v4601
        %v4603 = vpop.f32.mrb[0].mxu0
        %v4604 = vpop.f32.mrb[0].mxu0
        %v4605 = vadd.f32 %v4445, %v4604
        %v4606 = vpop.f32.mrb[0].mxu0
        %4607 = vmatprep.mubr.bf16.mxu0 %v4396
        %4608 = vmatmul.mubr.bf16.gmra.mrb[0].mxu0 %v4380
        %v4609 = vpop.f32.mrb[0].mxu0
        %v4610 = vadd.f32 %v4445, %v4609
        %v4611 = vpop.f32.mrb[0].mxu0
        %v4612 = vpop.f32.mrb[0].mxu0
        %v4613 = vadd.f32 %v4445, %v4612
        %v4614 = vpop.f32.mrb[0].mxu0
        %4615 = vmatprep.mubr.bf16.mxu0 %v4397
        %4616 = vmatmul.mubr.bf16.gmra.mrb[0].mxu0 %v4381
        %v4617 = vpop.f32.mrb[0].mxu0
        %v4618 = vadd.f32 %v4445, %v4617
        %v4619 = vpop.f32.mrb[0].mxu0
        %v4620 = vpop.f32.mrb[0].mxu0
        %v4621 = vadd.f32 %v4445, %v4620
        %v4622 = vpop.f32.mrb[0].mxu0
        %4623 = vmatprep.mubr.bf16.mxu0 %v4398
        %4624 = vmatmul.mubr.bf16.gmra.mrb[0].mxu0 %v4382
        %v4625 = vpop.f32.mrb[0].mxu0
        %v4626 = vadd.f32 %v4445, %v4625
        %v4627 = vpop.f32.mrb[0].mxu0
        %v4628 = vpop.f32.mrb[0].mxu0
        %v4629 = vadd.f32 %v4445, %v4628
        %v4630 = vpop.f32.mrb[0].mxu0
        %4631 = vmatprep.mubr.bf16.mxu0 %v4399
        %4632 = vmatmul.mubr.bf16.gmra.mrb[0].mxu0 %v4383
        %v4633 = vpop.f32.mrb[0].mxu0
        %v4634 = vadd.f32 %v4445, %v4633
        %v4635 = vpop.f32.mrb[0].mxu0
        %v4636 = vpop.f32.mrb[0].mxu0
        %v4637 = vadd.f32 %v4445, %v4636
        %v4638 = vpop.f32.mrb[0].mxu0
        %4639 = vmatprep.mubr.bf16.mxu0 %v4400
        %4640 = vmatmul.mubr.bf16.gmra.mrb[0].mxu0 %v4384
        %v4641 = vpop.f32.mrb[0].mxu0
        %v4642 = vadd.f32 %v4445, %v4641
        %v4643 = vpop.f32.mrb[0].mxu0
        %v4644 = vpop.f32.mrb[0].mxu0
        %v4645 = vadd.f32 %v4445, %v4644
        %v4646 = vpop.f32.mrb[0].mxu0
        %4647 = vmatprep.mubr.bf16.mxu0 %v4401
        %4648 = vmatmul.mubr.bf16.gmra.mrb[0].mxu0 %v4385
        %v4649 = vpop.f32.mrb[0].mxu0
        %v4650 = vadd.f32 %v4445, %v4649
        %v4651 = vpop.f32.mrb[0].mxu0
        %v4652 = vpop.f32.mrb[0].mxu0
        %v4653 = vadd.f32 %v4445, %v4652
        %v4654 = vpop.f32.mrb[0].mxu0
        %4655 = vmatprep.mubr.bf16.mxu0 %v4402
        %4656 = vmatmul.mubr.bf16.gmra.mrb[0].mxu0 %v4386
        %v4657 = vpop.f32.mrb[0].mxu0
        %v4658 = vadd.f32 %v4445, %v4657
        %v4659 = vpop.f32.mrb[0].mxu0
        %v4660 = vpop.f32.mrb[0].mxu0
        %v4661 = vadd.f32 %v4445, %v4660
        %v4662 = vpop.f32.mrb[0].mxu0
        %4663 = vmatprep.mubr.bf16.mxu0 %v4403
        %4664 = vmatmul.mubr.bf16.gmra.mrb[0].mxu0 %v4387
        %v4665 = vpop.f32.mrb[0].mxu0
        %v4666 = vadd.f32 %v4445, %v4665
        %v4667 = vpop.f32.mrb[0].mxu0
        %v4668 = vpop.f32.mrb[0].mxu0
        %v4669 = vadd.f32 %v4445, %v4668
        %v4670 = vpop.f32.mrb[0].mxu0
        %4671 = vmatprep.mubr.bf16.mxu0 %v4404
        %4672 = vmatmul.mubr.bf16.gmra.mrb[0].mxu0 %v4388
        %v4673 = vpop.f32.mrb[0].mxu0
        %v4674 = vadd.f32 %v4445, %v4673
        %v4675 = vpop.f32.mrb[0].mxu0
        %v4676 = vpop.f32.mrb[0].mxu0
        %v4677 = vadd.f32 %v4445, %v4676
        %v4678 = vpop.f32.mrb[0].mxu0
        %4679 = vmatprep.mubr.bf16.mxu0 %v4405
        %4680 = vmatmul.mubr.bf16.gmra.mrb[0].mxu0 %v4389
        %v4681 = vpop.f32.mrb[0].mxu0
        %v4682 = vadd.f32 %v4445, %v4681
        %v4683 = vpop.f32.mrb[0].mxu0
        %v4684 = vpop.f32.mrb[0].mxu0
        %v4685 = vadd.f32 %v4445, %v4684
        %v4686 = vpop.f32.mrb[0].mxu0
        %4687 = vmatprep.mubr.bf16.mxu0 %v4406
        %4688 = vmatmul.mubr.bf16.gmra.mrb[0].mxu0 %v4390
        %v4689 = vpop.f32.mrb[0].mxu0
        %v4690 = vadd.f32 %v4445, %v4689
        %v4691 = vpop.f32.mrb[0].mxu0
        %v4692 = vpop.f32.mrb[0].mxu0
        %v4693 = vadd.f32 %v4445, %v4692
        %v4694 = vpop.f32.mrb[0].mxu0
        %4695 = vmatprep.mubr.bf16.mxu0 %v4407
        %4696 = vmatmul.mubr.bf16.gmra.mrb[0].mxu0 %v4391
        %v4697 = vpop.f32.mrb[0].mxu0
        %v4698 = vadd.f32 %v4445, %v4697
        %v4699 = vpop.f32.mrb[0].mxu0
        %v4700 = vpop.f32.mrb[0].mxu0
        %v4701 = vadd.f32 %v4445, %v4700
        %v4702 = vpop.f32.mrb[0].mxu0
        %4703 = vdwg.mxu0
        %v4704 = vadd.f32 %v4578, 3.0
        %v4705 = vadd.f32 %v4581, 3.0
        %v4706 = vadd.f32 %v4586, 3.0
        %v4707 = vadd.f32 %v4589, 3.0
        %v4708 = vadd.f32 %v4594, 3.0
        %v4709 = vadd.f32 %v4597, 3.0
        %v4710 = vadd.f32 %v4602, 3.0
        %v4711 = vadd.f32 %v4605, 3.0
        %v4712 = vadd.f32 %v4610, 3.0
        %v4713 = vadd.f32 %v4613, 3.0
        %v4714 = vadd.f32 %v4618, 3.0
        %v4715 = vadd.f32 %v4621, 3.0
        %v4716 = vadd.f32 %v4626, 3.0
        %v4717 = vadd.f32 %v4629, 3.0
        %v4718 = vadd.f32 %v4634, 3.0
        %v4719 = vadd.f32 %v4637, 3.0
        %v4720 = vadd.f32 %v4642, 3.0
        %v4721 = vadd.f32 %v4645, 3.0
        %v4722 = vadd.f32 %v4650, 3.0
        %v4723 = vadd.f32 %v4653, 3.0
        %v4724 = vadd.f32 %v4658, 3.0
        %v4725 = vadd.f32 %v4661, 3.0
        %v4726 = vadd.f32 %v4666, 3.0
        %v4727 = vadd.f32 %v4669, 3.0
        %v4728 = vadd.f32 %v4674, 3.0
        %v4729 = vadd.f32 %v4677, 3.0
        %v4730 = vadd.f32 %v4682, 3.0
        %v4731 = vadd.f32 %v4685, 3.0
        %v4732 = vadd.f32 %v4690, 3.0
        %v4733 = vadd.f32 %v4693, 3.0
        %v4734 = vadd.f32 %v4698, 3.0
        %v4735 = vadd.f32 %v4701, 3.0
        %v4736 = vmax.f32 %v4704, 0.0
        %v4737 = vmax.f32 %v4705, 0.0
        %v4738 = vmax.f32 %v4706, 0.0
        %v4739 = vmax.f32 %v4707, 0.0
        %v4740 = vmax.f32 %v4708, 0.0
        %v4741 = vmax.f32 %v4709, 0.0
        %v4742 = vmax.f32 %v4710, 0.0
        %v4743 = vmax.f32 %v4711, 0.0
        %v4744 = vmax.f32 %v4712, 0.0
        %v4745 = vmax.f32 %v4713, 0.0
        %v4746 = vmax.f32 %v4714, 0.0
        %v4747 = vmax.f32 %v4715, 0.0
        %v4748 = vmax.f32 %v4716, 0.0
        %v4749 = vmax.f32 %v4717, 0.0
        %v4750 = vmax.f32 %v4718, 0.0
        %v4751 = vmax.f32 %v4719, 0.0
        %v4752 = vmax.f32 %v4720, 0.0
        %v4753 = vmax.f32 %v4721, 0.0
        %v4754 = vmax.f32 %v4722, 0.0
        %v4755 = vmax.f32 %v4723, 0.0
        %v4756 = vmax.f32 %v4724, 0.0
        %v4757 = vmax.f32 %v4725, 0.0
        %v4758 = vmax.f32 %v4726, 0.0
        %v4759 = vmax.f32 %v4727, 0.0
        %v4760 = vmax.f32 %v4728, 0.0
        %v4761 = vmax.f32 %v4729, 0.0
        %v4762 = vmax.f32 %v4730, 0.0
        %v4763 = vmax.f32 %v4731, 0.0
        %v4764 = vmax.f32 %v4732, 0.0
        %v4765 = vmax.f32 %v4733, 0.0
        %v4766 = vmax.f32 %v4734, 0.0
        %v4767 = vmax.f32 %v4735, 0.0
        %v4768 = vmin.f32 %v4736, 6.0
        %v4769 = vmin.f32 %v4737, 6.0
        %v4770 = vmin.f32 %v4738, 6.0
        %v4771 = vmin.f32 %v4739, 6.0
        %v4772 = vmin.f32 %v4740, 6.0
        %v4773 = vmin.f32 %v4741, 6.0
        %v4774 = vmin.f32 %v4742, 6.0
        %v4775 = vmin.f32 %v4743, 6.0
        %v4776 = vmin.f32 %v4744, 6.0
        %v4777 = vmin.f32 %v4745, 6.0
        %v4778 = vmin.f32 %v4746, 6.0
        %v4779 = vmin.f32 %v4747, 6.0
        %v4780 = vmin.f32 %v4748, 6.0
        %v4781 = vmin.f32 %v4749, 6.0
        %v4782 = vmin.f32 %v4750, 6.0
        %v4783 = vmin.f32 %v4751, 6.0
        %v4784 = vmin.f32 %v4752, 6.0
        %v4785 = vmin.f32 %v4753, 6.0
        %v4786 = vmin.f32 %v4754, 6.0
        %v4787 = vmin.f32 %v4755, 6.0
        %v4788 = vmin.f32 %v4756, 6.0
        %v4789 = vmin.f32 %v4757, 6.0
        %v4790 = vmin.f32 %v4758, 6.0
        %v4791 = vmin.f32 %v4759, 6.0
        %v4792 = vmin.f32 %v4760, 6.0
        %v4793 = vmin.f32 %v4761, 6.0
        %v4794 = vmin.f32 %v4762, 6.0
        %v4795 = vmin.f32 %v4763, 6.0
        %v4796 = vmin.f32 %v4764, 6.0
        %v4797 = vmin.f32 %v4765, 6.0
        %v4798 = vmin.f32 %v4766, 6.0
        %v4799 = vmin.f32 %v4767, 6.0
        %v4800 = vmul.f32 %v4578, %v4768
        %v4801 = vmul.f32 %v4581, %v4769
        %v4802 = vmul.f32 %v4586, %v4770
        %v4803 = vmul.f32 %v4589, %v4771
        %v4804 = vmul.f32 %v4594, %v4772
        %v4805 = vmul.f32 %v4597, %v4773
        %v4806 = vmul.f32 %v4602, %v4774
        %v4807 = vmul.f32 %v4605, %v4775
        %v4808 = vmul.f32 %v4610, %v4776
        %v4809 = vmul.f32 %v4613, %v4777
        %v4810 = vmul.f32 %v4618, %v4778
        %v4811 = vmul.f32 %v4621, %v4779
        %v4812 = vmul.f32 %v4626, %v4780
        %v4813 = vmul.f32 %v4629, %v4781
        %v4814 = vmul.f32 %v4634, %v4782
        %v4815 = vmul.f32 %v4637, %v4783
        %v4816 = vmul.f32 %v4642, %v4784
        %v4817 = vmul.f32 %v4645, %v4785
        %v4818 = vmul.f32 %v4650, %v4786
        %v4819 = vmul.f32 %v4653, %v4787
        %v4820 = vmul.f32 %v4658, %v4788
        %v4821 = vmul.f32 %v4661, %v4789
        %v4822 = vmul.f32 %v4666, %v4790
        %v4823 = vmul.f32 %v4669, %v4791
        %v4824 = vmul.f32 %v4674, %v4792
        %v4825 = vmul.f32 %v4677, %v4793
        %v4826 = vmul.f32 %v4682, %v4794
        %v4827 = vmul.f32 %v4685, %v4795
        %v4828 = vmul.f32 %v4690, %v4796
        %v4829 = vmul.f32 %v4693, %v4797
        %v4830 = vmul.f32 %v4698, %v4798
        %v4831 = vmul.f32 %v4701, %v4799
        %v4832 = vmul.f32 %v4800, 0.16666667
        %v4833 = vmul.f32 %v4801, 0.16666667
        %v4834 = vmul.f32 %v4802, 0.16666667
        %v4835 = vmul.f32 %v4803, 0.16666667
        %v4836 = vmul.f32 %v4804, 0.16666667
        %v4837 = vmul.f32 %v4805, 0.16666667
        %v4838 = vmul.f32 %v4806, 0.16666667
        %v4839 = vmul.f32 %v4807, 0.16666667
        %v4840 = vmul.f32 %v4808, 0.16666667
        %v4841 = vmul.f32 %v4809, 0.16666667
        %v4842 = vmul.f32 %v4810, 0.16666667
        %v4843 = vmul.f32 %v4811, 0.16666667
        %v4844 = vmul.f32 %v4812, 0.16666667
        %v4845 = vmul.f32 %v4813, 0.16666667
        %v4846 = vmul.f32 %v4814, 0.16666667
        %v4847 = vmul.f32 %v4815, 0.16666667
        %v4848 = vmul.f32 %v4816, 0.16666667
        %v4849 = vmul.f32 %v4817, 0.16666667
        %v4850 = vmul.f32 %v4818, 0.16666667
        %v4851 = vmul.f32 %v4819, 0.16666667
        %v4852 = vmul.f32 %v4820, 0.16666667
        %v4853 = vmul.f32 %v4821, 0.16666667
        %v4854 = vmul.f32 %v4822, 0.16666667
        %v4855 = vmul.f32 %v4823, 0.16666667
        %v4856 = vmul.f32 %v4824, 0.16666667
        %v4857 = vmul.f32 %v4825, 0.16666667
        %v4858 = vmul.f32 %v4826, 0.16666667
        %v4859 = vmul.f32 %v4827, 0.16666667
        %v4860 = vmul.f32 %v4828, 0.16666667
        %v4861 = vmul.f32 %v4829, 0.16666667
        %v4862 = vmul.f32 %v4830, 0.16666667
        %v4863 = vmul.f32 %v4831, 0.16666667
        %4864 = vst [vmem:[%s531] sm:$0xff] %v4832
        %4865 = vst [vmem:[%s531 + $0x8] sm:$0xff] %v4833
        %4866 = vst [vmem:[%s531 + $0x10] sm:$0xff] %v4834
        %4867 = vst [vmem:[%s531 + $0x18] sm:$0xff] %v4835
        %4868 = vst [vmem:[%s531 + $0x20] sm:$0xff] %v4836
        %4869 = vst [vmem:[%s531 + $0x28] sm:$0xff] %v4837
        %4870 = vst [vmem:[%s531 + $0x30] sm:$0xff] %v4838
        %4871 = vst [vmem:[%s531 + $0x38] sm:$0xff] %v4839
        %4872 = vst [vmem:[%s531 + $0x40] sm:$0xff] %v4840
        %4873 = vst [vmem:[%s531 + $0x48] sm:$0xff] %v4841
        %4874 = vst [vmem:[%s531 + $0x50] sm:$0xff] %v4842
        %4875 = vst [vmem:[%s531 + $0x58] sm:$0xff] %v4843
        %4876 = vst [vmem:[%s531 + $0x60] sm:$0xff] %v4844
        %4877 = vst [vmem:[%s531 + $0x68] sm:$0xff] %v4845
        %4878 = vst [vmem:[%s531 + $0x70] sm:$0xff] %v4846
        %4879 = vst [vmem:[%s531 + $0x78] sm:$0xff] %v4847
        %4880 = vst [vmem:[%s531 + $0x80] sm:$0xff] %v4848
        %4881 = vst [vmem:[%s531 + $0x88] sm:$0xff] %v4849
        %4882 = vst [vmem:[%s531 + $0x90] sm:$0xff] %v4850
        %4883 = vst [vmem:[%s531 + $0x98] sm:$0xff] %v4851
        %4884 = vst [vmem:[%s531 + $0xa0] sm:$0xff] %v4852
        %4885 = vst [vmem:[%s531 + $0xa8] sm:$0xff] %v4853
        %4886 = vst [vmem:[%s531 + $0xb0] sm:$0xff] %v4854
        %4887 = vst [vmem:[%s531 + $0xb8] sm:$0xff] %v4855
        %4888 = vst [vmem:[%s531 + $0xc0] sm:$0xff] %v4856
        %4889 = vst [vmem:[%s531 + $0xc8] sm:$0xff] %v4857
        %4890 = vst [vmem:[%s531 + $0xd0] sm:$0xff] %v4858
        %4891 = vst [vmem:[%s531 + $0xd8] sm:$0xff] %v4859
        %4892 = vst [vmem:[%s531 + $0xe0] sm:$0xff] %v4860
        %4893 = vst [vmem:[%s531 + $0xe8] sm:$0xff] %v4861
        %4894 = vst [vmem:[%s531 + $0xf0] sm:$0xff] %v4862
        %4895 = vst [vmem:[%s531 + $0xf8] sm:$0xff] %v4863
        %s4896 = sand.u32 %s319, 1
        %s4897 = scalar_lea.sflag [#allocation4], %s4896
        %s4898 = sand.u32 %s319, 1
        %s4899 = smul.addr %s4898, 256
        %s4900 = scalar_lea.vmem [#allocation13], %s4899
        // Predicated region
        $region97: #{tpu_custom_call.1} parent=71 // pred_check
          %p4901 = pneg %p329
        $region98: #{tpu_custom_call.1} parent=71 // pred_check_branch
          %4903 = sbr.rel (%p4901) target = $region100
        $region99: #{tpu_custom_call.1} parent=71 // pred_region
          %s4905 = ssub.s32 4096, 4096
          %4906 = vsyncadd %s4897, %s4905
          %s4907 = smul.addr %s33, 32
          %s4908 = smul.addr %s4907, 128
          %s4909 = scalar_lea.hbm %s13, %s4908
          %s4910 = sshll.u32 %s4900, 4
          %s4911 = int_to_ptr.vmem [resolvable:$true] %s4910
          %4916 = dma.vmem_to_hbm [thread:$0]  %s4911, 4096, %s4909, %s4897, 128, 128, 8
        $region100: #{tpu_custom_call.1} parent=71 // pred_fallthru
          _
      $region72: #{tpu_custom_call.1} parent=5 // pred_fallthru
        _
      %p4917 = scmp.le.s32.totalorder 2, %s28
      // Predicated region
      $region101: #{tpu_custom_call.1} parent=5 // pred_check
        %p4918 = pneg %p4917
      $region102: #{tpu_custom_call.1} parent=5 // pred_check_branch
        %4920 = sbr.rel (%p4918) target = $region104
      $region103: #{tpu_custom_call.1} parent=5 // pred_region
        %s4921 = ssub.s32 %s28, 2
        // Predicated region
        $region105: #{tpu_custom_call.1} parent=103 // pred_check
          %p4922 = pneg %p335
        $region106: #{tpu_custom_call.1} parent=103 // pred_check_branch
          %4924 = sbr.rel (%p4922) target = $region108
        $region107: #{tpu_custom_call.1} parent=103 // pred_region
          %s4925 = sand.u32 %s320, 1
          %s4926 = scalar_lea.sflag [#allocation4], %s4925
          %s4927 = sand.u32 %s320, 1
          %s4928 = smul.addr %s4927, 256
          %s4929 = scalar_lea.vmem [#allocation13], %s4928
          %4930 = dma.done %s4926, 4096
        $region108: #{tpu_custom_call.1} parent=103 // pred_fallthru
          _
      $region104: #{tpu_custom_call.1} parent=5 // pred_fallthru
        _
    $region6: #{tpu_custom_call.1} parent=1 // loop_footer
      %s32 = sadd.s32 1, %s28
    $region7: #{tpu_custom_call.1} parent=1 // loop_footer_branch
      %27 = sbr.rel target = $region3
    $region8: #{tpu_custom_call.1} parent=1 // loop_exit
      _
    %4931 = vsyncpa [#allocation3], 1
    %s4932 = scalar_lea.sflag [#allocation3], 1
    %4933 = vsyncpa %s4932, 1
    %4934 = vsyncpa [#allocation6], 1
    %4935 = vsyncpa [#allocation9], 1
    %4936 = vsyncpa [#allocation12], 1
    %4937 = vsyncpa [#allocation4], 1
    %s4938 = scalar_lea.sflag [#allocation4], 1
    %4939 = vsyncpa %s4938, 1

</llo_original>
